<compile_context>
chip_gen: v6e
topology: v6e:2x2x1
jax: 0.10.0
libtpu: 0.0.40
codegen_flags: <defaults>
</compile_context>

<pallas_src>
import jax
import jax.numpy as jnp
from jax import lax
from jax.experimental import pallas as pl
from jax.experimental.pallas import tpu as pltpu

LEAKY_SLOPE = 0.2
BN_EPS = 1e-5
MXU_DTYPE = jnp.bfloat16     # MXU operand dtype (f32 accumulation everywhere)


# ---------------------------------------------------------------------------
# Kernel 1: fused  down-conv (4x4, s2, p1) -> ReLU -> transposed conv (4x4, s2, p1)
#           plus per-image BatchNorm partial statistics.  One grid step == one image.
# ---------------------------------------------------------------------------
def down_up_kernel(xcol_ref, wd_ref, wu_ref, yph_ref, stats_ref, dpad_ref):
    # xcol_ref : (1, P, 16*Cin)      bf16  im2col of LeakyReLU(x), P = Ho*Wo
    # wd_ref   : (16*Cin, Cmid)      bf16  down-conv weight, rows ordered (ky,kx,ci)
    # wu_ref   : (16, Cmid, Cout)    bf16  up-conv weight per (phase, tap)
    # yph_ref  : (1, 4, P, Cout)     f32   pre-norm up-conv output, phase-major
    # stats_ref: (1, 2, Cout)        f32   per-image [sum, sum of squares]
    # dpad_ref : (Ho+2, Wo+2, Cmid)  f32   VMEM scratch: zero-padded down activations
    hp2, wp2, cmid = dpad_ref.shape
    ho, wo = hp2 - 2, wp2 - 2
    p = ho * wo
    cout = wu_ref.shape[2]

    # ---- down conv: a single MXU matmul over K = 16*Cin ---------------------
    d = jnp.dot(xcol_ref[0], wd_ref[...],
                preferred_element_type=jnp.float32)          # (P, Cmid) f32
    d = jnp.maximum(d, 0.0)                                  # up_relu (ReLU)

    # ---- stage ReLU(d) into the zero-padded spatial scratch ------------------
    dpad_ref[...] = jnp.zeros_like(dpad_ref)
    dpad_ref[1:ho + 1, 1:wo + 1, :] = d.reshape(ho, wo, cmid)

    # ---- transposed conv, phase-decomposed -----------------------------------
    # output pixel (2i+pr, 2j+pc, :) =
    #   sum_{o,q in {0,1}}  dpad[i+pr+o, j+pc+q, :] @ Wu[:, :, 3-pr-2o, 3-pc-2q]
    sum_acc = jnp.zeros((1, cout), jnp.float32)
    sq_acc = jnp.zeros((1, cout), jnp.float32)
    for pr in range(2):
        for pc in range(2):
            acc = jnp.zeros((p, cout), jnp.float32)
            for o in range(2):
                for q in range(2):
                    idx = ((pr * 2 + pc) * 2 + o) * 2 + q
                    win = dpad_ref[pr + o:pr + o + ho, pc + q:pc + q + wo, :]
                    acc = acc + jnp.dot(
                        win.reshape(p, cmid).astype(MXU_DTYPE),
                        wu_ref[idx],
                        preferred_element_type=jnp.float32)
            yph_ref[0, pr * 2 + pc] = acc
            sum_acc = sum_acc + jnp.sum(acc, axis=0, keepdims=True)
            sq_acc = sq_acc + jnp.sum(acc * acc, axis=0, keepdims=True)

    stats_ref[0, 0:1, :] = sum_acc
    stats_ref[0, 1:2, :] = sq_acc


# ---------------------------------------------------------------------------
# Kernel 2: apply the per-channel BatchNorm affine (second pass of the 2-pass BN).
# ---------------------------------------------------------------------------
def bn_affine_kernel(y_ref, scale_ref, shift_ref, out_ref):
    # y_ref/out_ref: (1, 4, P, Cout) f32 ; scale_ref/shift_ref: (1, Cout) f32
    out_ref[...] = y_ref[...] * scale_ref[...] + shift_ref[...]


# ---------------------------------------------------------------------------
# Wrapper: layout plumbing (XLA) + the two pallas_calls.
# ---------------------------------------------------------------------------
def unet_innermost_block(x_nchw, params):
    """Forward of UNetSkipConnectionBlk(is_innermost=True, norm=BatchNorm2d)."""
    wd, wu, gamma, beta = params
    n, cin, h, w = x_nchw.shape
    assert h % 2 == 0 and w % 2 == 0, "spatial dims must be even (stride-2 conv)"
    cmid = wd.shape[0]
    cout = wu.shape[1]
    assert wd.shape == (cmid, cin, 4, 4)
    assert wu.shape == (cmid, cout, 4, 4)
    ho, wo = h // 2, w // 2
    p = ho * wo

    xf = x_nchw.astype(jnp.float32)

    # ---- layout plumbing, fused by XLA into one pass over x -----------------
    # NCHW -> NHWC, LeakyReLU(0.2), zero-pad, 4x4/stride-2 im2col, cast to bf16.
    x_nhwc = jnp.transpose(xf, (0, 2, 3, 1))
    x_lrelu = jnp.where(x_nhwc >= 0, x_nhwc, LEAKY_SLOPE * x_nhwc)
    xp = jnp.pad(x_lrelu, ((0, 0), (1, 1), (1, 1), (0, 0)))
    taps = []
    for ky in range(4):
        for kx in range(4):
            taps.append(xp[:, ky:ky + 2 * ho:2, kx:kx + 2 * wo:2, :])
    xcol = jnp.stack(taps, axis=3).reshape(n, p, 16 * cin).astype(MXU_DTYPE)

    # down-conv weight (Cmid, Cin, 4, 4) -> (16*Cin, Cmid), rows ordered (ky,kx,ci)
    wd_mat = jnp.transpose(wd, (2, 3, 1, 0)).reshape(16 * cin, cmid).astype(MXU_DTYPE)

    # up-conv weight (Cmid, Cout, 4, 4) -> (16, Cmid, Cout), indexed by (pr,pc,o,q)
    wu_taps = []
    for pr in range(2):
        for pc in range(2):
            for o in range(2):
                for q in range(2):
                    wu_taps.append(wu[:, :, 3 - pr - 2 * o, 3 - pc - 2 * q])
    wu_r = jnp.stack(wu_taps, axis=0).astype(MXU_DTYPE)

    # ---- pass 1: fused down/up conv + BN partial statistics -----------------
    y_pre, stats = pl.pallas_call(
        down_up_kernel,
        out_shape=(jax.ShapeDtypeStruct((n, 4, p, cout), jnp.float32),
                   jax.ShapeDtypeStruct((n, 2, cout), jnp.float32)),
        grid_spec=pltpu.PrefetchScalarGridSpec(
            num_scalar_prefetch=0,
            grid=(n,),
            in_specs=[
                pl.BlockSpec((1, p, 16 * cin), lambda i: (i, 0, 0)),
                pl.BlockSpec((16 * cin, cmid), lambda i: (0, 0)),
                pl.BlockSpec((16, cmid, cout), lambda i: (0, 0, 0)),
            ],
            out_specs=[
                pl.BlockSpec((1, 4, p, cout), lambda i: (i, 0, 0, 0)),
                pl.BlockSpec((1, 2, cout), lambda i: (i, 0, 0)),
            ],
            scratch_shapes=[pltpu.VMEM((ho + 2, wo + 2, cmid), jnp.float32)],
        ),
        compiler_params=pltpu.CompilerParams(
            dimension_semantics=("parallel",),
            vmem_limit_bytes=32 * 1024 * 1024),
    )(xcol, wd_mat, wu_r)

    # ---- finalize BatchNorm statistics (tiny, plain JAX) ---------------------
    count = float(n * h * w)
    total = jnp.sum(stats, axis=0)                     # (2, Cout)
    mean = total[0] / count
    var = total[1] / count - mean * mean               # biased variance (training BN)
    inv_std = lax.rsqrt(var + BN_EPS)
    scale = (gamma * inv_std).reshape(1, cout).astype(jnp.float32)
    shift = (beta - gamma * mean * inv_std).reshape(1, cout).astype(jnp.float32)

    # ---- pass 2: apply the per-channel affine normalization ------------------
    y_norm = pl.pallas_call(
        bn_affine_kernel,
        out_shape=jax.ShapeDtypeStruct((n, 4, p, cout), jnp.float32),
        grid_spec=pltpu.PrefetchScalarGridSpec(
            num_scalar_prefetch=0,
            grid=(n,),
            in_specs=[
                pl.BlockSpec((1, 4, p, cout), lambda i: (i, 0, 0, 0)),
                pl.BlockSpec((1, cout), lambda i: (0, 0)),
                pl.BlockSpec((1, cout), lambda i: (0, 0)),
            ],
            out_specs=pl.BlockSpec((1, 4, p, cout), lambda i: (i, 0, 0, 0)),
        ),
        compiler_params=pltpu.CompilerParams(
            dimension_semantics=("parallel",)),
    )(y_pre, scale, shift)

    # ---- phase layout -> NCHW, then the skip concat --------------------------
    yph = y_norm.reshape(n, 2, 2, ho, wo, cout)                    # (n,pr,pc,i,j,c)
    y_nchw = jnp.transpose(yph, (0, 5, 3, 1, 4, 2)).reshape(n, cout, h, w)
    return jnp.concatenate([xf, y_nchw], axis=1)                   # cat([x, blk(x)])


# ---------------------------------------------------------------------------
# Pure-JAX/XLA reference (lax convolutions), mirroring the kernel's
# bf16-operand / f32-accumulation numerics.
# ---------------------------------------------------------------------------
def _reference(x_nchw, params):
    wd, wu, gamma, beta = params
    xf = x_nchw.astype(jnp.float32)
    h0 = jnp.where(xf >= 0, xf, LEAKY_SLOPE * xf).astype(MXU_DTYPE)
    d = lax.conv_general_dilated(
        h0, wd.astype(MXU_DTYPE), window_strides=(2, 2),
        padding=((1, 1), (1, 1)),
        dimension_numbers=("NCHW", "OIHW", "NCHW"),
        preferred_element_type=jnp.float32)
    d = jnp.maximum(d, 0.0).astype(MXU_DTYPE)
    # ConvTranspose2d(k=4, s=2, p=1) == lhs-dilated conv with the flipped kernel.
    wu_flip = jnp.flip(wu, axis=(2, 3)).transpose(1, 0, 2, 3).astype(MXU_DTYPE)
    y = lax.conv_general_dilated(
        d, wu_flip, window_strides=(1, 1),
        padding=((2, 2), (2, 2)), lhs_dilation=(2, 2),
        dimension_numbers=("NCHW", "OIHW", "NCHW"),
        preferred_element_type=jnp.float32)
    mean = jnp.mean(y, axis=(0, 2, 3), keepdims=True)
    var = jnp.mean((y - mean) ** 2, axis=(0, 2, 3), keepdims=True)
    y = (y - mean) * lax.rsqrt(var + BN_EPS)
    y = y * gamma.reshape(1, -1, 1, 1) + beta.reshape(1, -1, 1, 1)
    return jnp.concatenate([xf, y], axis=1)


if __name__ == "__main__":
    key = jax.random.PRNGKey(0)
    kx, kd, ku = jax.random.split(key, 3)

    # UNetSkipConnectionBlk(inner_ch=16, output_ch=8, submodule=None,
    #                       norm_layer=BatchNorm2d, is_innermost=True)
    # innermost => input_ch = output_ch; BatchNorm2d => conv biases disabled.
    N, Cin, H, W = 2, 8, 16, 16
    Cmid, Cout = 16, Cin

    x = jax.random.normal(kx, (N, Cin, H, W), jnp.float32)
    wd = 0.1 * jax.random.normal(kd, (Cmid, Cin, 4, 4), jnp.float32)   # Conv2d weight
    wu = 0.1 * jax.random.normal(ku, (Cmid, Cout, 4, 4), jnp.float32)  # ConvT2d weight
    gamma = jnp.ones((Cout,), jnp.float32)                             # BN weight (init)
    beta = jnp.zeros((Cout,), jnp.float32)                             # BN bias (init)
    params = (wd, wu, gamma, beta)

    fwd = jax.jit(unet_innermost_block)
    out = jax.block_until_ready(fwd(x, params))
    ref = jax.block_until_ready(_reference(x, params))

    assert out.shape == (N, Cin + Cout, H, W), out.shape
    max_err = float(jnp.max(jnp.abs(out - ref)))
    assert jnp.allclose(out, ref, atol=5e-3, rtol=5e-3), f"max_err={max_err}"

    print("KERNEL_OK")
</pallas_src>

<mosaic_0001>
module attributes {stable_mosaic.version = 11 : i64} {
  func.func @down_up_kernel(%arg0: i32, %arg1: memref<1x64x128xbf16, #tpu.memory_space<vmem>>, %arg2: memref<128x16xbf16, #tpu.memory_space<vmem>>, %arg3: memref<16x16x8xbf16, #tpu.memory_space<vmem>>, %arg4: memref<1x4x64x8xf32, #tpu.memory_space<vmem>>, %arg5: memref<1x2x8xf32, #tpu.memory_space<vmem>>, %arg6: memref<10x10x16xf32, #tpu.memory_space<vmem>>) attributes {dimension_semantics = [#tpu.dimension_semantics<parallel>], iteration_bounds = array<i64: 2>, scalar_prefetch = 0 : i64, scratch_operands = 1 : i64, tpu.core_type = #tpu.core_type<tc>, window_params = [{transform_indices = @transform_0, window_bounds = array<i64: 1, 64, 128>}, {pipeline_mode = #tpu.pipeline_mode<synchronous>, transform_indices = @transform_1, window_bounds = array<i64: 128, 16>}, {pipeline_mode = #tpu.pipeline_mode<synchronous>, transform_indices = @transform_2, window_bounds = array<i64: 16, 16, 8>}, {transform_indices = @transform_3, window_bounds = array<i64: 1, 4, 64, 8>}, {transform_indices = @transform_4, window_bounds = array<i64: 1, 2, 8>}]} {
    %c0 = arith.constant 0 : index
    %c0_0 = arith.constant 0 : index
    %c0_1 = arith.constant 0 : index
    %0 = vector.load %arg1[%c0, %c0_0, %c0_1] : memref<1x64x128xbf16, #tpu.memory_space<vmem>>, vector<1x64x128xbf16>
    %1 = vector.shape_cast %0 : vector<1x64x128xbf16> to vector<64x128xbf16>
    %c0_2 = arith.constant 0 : index
    %c0_3 = arith.constant 0 : index
    %2 = vector.load %arg2[%c0_2, %c0_3] : memref<128x16xbf16, #tpu.memory_space<vmem>>, vector<128x16xbf16>
    %cst = arith.constant dense<0.000000e+00> : vector<64x16xf32>
    %3 = tpu.matmul %1, %2, %cst {dimension_numbers = #tpu.dot_dimension_numbers<[1], [0], [0], [1], [0, 0, 1, 1], [], []>} : vector<64x128xbf16>, vector<128x16xbf16>, vector<64x16xf32> -> vector<64x16xf32>
    %cst_4 = arith.constant 0.000000e+00 : f32
    %4 = vector.broadcast %cst_4 : f32 to vector<64x16xf32>
    %5 = arith.maximumf %3, %4 : vector<64x16xf32>
    %cst_5 = arith.constant 0.000000e+00 : f32
    %6 = vector.broadcast %cst_5 : f32 to vector<10x10x16xf32>
    %c0_6 = arith.constant 0 : index
    %c0_7 = arith.constant 0 : index
    %c0_8 = arith.constant 0 : index
    %7 = vector.load %arg6[%c0_6, %c0_7, %c0_8] : memref<10x10x16xf32, #tpu.memory_space<vmem>>, vector<10x10x16xf32>
    tpu.vector_store %arg6[%c0_6, %c0_7, %c0_8], %6 {strides = array<i32>} : memref<10x10x16xf32, #tpu.memory_space<vmem>>, vector<10x10x16xf32>,
    %8 = vector.shape_cast %5 : vector<64x16xf32> to vector<8x8x16xf32>
    %c1 = arith.constant 1 : index
    %c1_9 = arith.constant 1 : index
    %c0_10 = arith.constant 0 : index
    %9 = vector.load %arg6[%c1, %c1_9, %c0_10] : memref<10x10x16xf32, #tpu.memory_space<vmem>>, vector<8x8x16xf32>
    tpu.vector_store %arg6[%c1, %c1_9, %c0_10], %8 {strides = array<i32>} : memref<10x10x16xf32, #tpu.memory_space<vmem>>, vector<8x8x16xf32>,
    %cst_11 = arith.constant 0.000000e+00 : f32
    %10 = vector.broadcast %cst_11 : f32 to vector<1x8xf32>
    %cst_12 = arith.constant 0.000000e+00 : f32
    %11 = vector.broadcast %cst_12 : f32 to vector<1x8xf32>
    %cst_13 = arith.constant 0.000000e+00 : f32
    %12 = vector.broadcast %cst_13 : f32 to vector<64x8xf32>
    %c0_14 = arith.constant 0 : index
    %c0_15 = arith.constant 0 : index
    %c0_16 = arith.constant 0 : index
    %13 = vector.load %arg6[%c0_14, %c0_15, %c0_16] : memref<10x10x16xf32, #tpu.memory_space<vmem>>, vector<8x8x16xf32>
    %14 = vector.shape_cast %13 : vector<8x8x16xf32> to vector<64x16xf32>
    %15 = arith.truncf %14 : vector<64x16xf32> to vector<64x16xbf16>
    %c0_17 = arith.constant 0 : index
    %c0_18 = arith.constant 0 : index
    %c0_19 = arith.constant 0 : index
    %16 = vector.load %arg3[%c0_17, %c0_18, %c0_19] : memref<16x16x8xbf16, #tpu.memory_space<vmem>>, vector<1x16x8xbf16>
    %17 = vector.shape_cast %16 : vector<1x16x8xbf16> to vector<16x8xbf16>
    %cst_20 = arith.constant dense<0.000000e+00> : vector<64x8xf32>
    %18 = tpu.matmul %15, %17, %cst_20 {dimension_numbers = #tpu.dot_dimension_numbers<[1], [0], [0], [1], [0, 0, 1, 1], [], []>} : vector<64x16xbf16>, vector<16x8xbf16>, vector<64x8xf32> -> vector<64x8xf32>
    %19 = arith.addf %12, %18 : vector<64x8xf32>
    %c0_21 = arith.constant 0 : index
    %c1_22 = arith.constant 1 : index
    %c0_23 = arith.constant 0 : index
    %20 = vector.load %arg6[%c0_21, %c1_22, %c0_23] : memref<10x10x16xf32, #tpu.memory_space<vmem>>, vector<8x8x16xf32>
    %21 = vector.shape_cast %20 : vector<8x8x16xf32> to vector<64x16xf32>
    %22 = arith.truncf %21 : vector<64x16xf32> to vector<64x16xbf16>
    %c1_24 = arith.constant 1 : index
    %c0_25 = arith.constant 0 : index
    %c0_26 = arith.constant 0 : index
    %23 = vector.load %arg3[%c1_24, %c0_25, %c0_26] : memref<16x16x8xbf16, #tpu.memory_space<vmem>>, vector<1x16x8xbf16>
    %24 = vector.shape_cast %23 : vector<1x16x8xbf16> to vector<16x8xbf16>
    %cst_27 = arith.constant dense<0.000000e+00> : vector<64x8xf32>
    %25 = tpu.matmul %22, %24, %cst_27 {dimension_numbers = #tpu.dot_dimension_numbers<[1], [0], [0], [1], [0, 0, 1, 1], [], []>} : vector<64x16xbf16>, vector<16x8xbf16>, vector<64x8xf32> -> vector<64x8xf32>
    %26 = arith.addf %19, %25 : vector<64x8xf32>
    %c1_28 = arith.constant 1 : index
    %c0_29 = arith.constant 0 : index
    %c0_30 = arith.constant 0 : index
    %27 = vector.load %arg6[%c1_28, %c0_29, %c0_30] : memref<10x10x16xf32, #tpu.memory_space<vmem>>, vector<8x8x16xf32>
    %28 = vector.shape_cast %27 : vector<8x8x16xf32> to vector<64x16xf32>
    %29 = arith.truncf %28 : vector<64x16xf32> to vector<64x16xbf16>
    %c2 = arith.constant 2 : index
    %c0_31 = arith.constant 0 : index
    %c0_32 = arith.constant 0 : index
    %30 = vector.load %arg3[%c2, %c0_31, %c0_32] : memref<16x16x8xbf16, #tpu.memory_space<vmem>>, vector<1x16x8xbf16>
    %31 = vector.shape_cast %30 : vector<1x16x8xbf16> to vector<16x8xbf16>
    %cst_33 = arith.constant dense<0.000000e+00> : vector<64x8xf32>
    %32 = tpu.matmul %29, %31, %cst_33 {dimension_numbers = #tpu.dot_dimension_numbers<[1], [0], [0], [1], [0, 0, 1, 1], [], []>} : vector<64x16xbf16>, vector<16x8xbf16>, vector<64x8xf32> -> vector<64x8xf32>
    %33 = arith.addf %26, %32 : vector<64x8xf32>
    %c1_34 = arith.constant 1 : index
    %c1_35 = arith.constant 1 : index
    %c0_36 = arith.constant 0 : index
    %34 = vector.load %arg6[%c1_34, %c1_35, %c0_36] : memref<10x10x16xf32, #tpu.memory_space<vmem>>, vector<8x8x16xf32>
    %35 = vector.shape_cast %34 : vector<8x8x16xf32> to vector<64x16xf32>
    %36 = arith.truncf %35 : vector<64x16xf32> to vector<64x16xbf16>
    %c3 = arith.constant 3 : index
    %c0_37 = arith.constant 0 : index
    %c0_38 = arith.constant 0 : index
    %37 = vector.load %arg3[%c3, %c0_37, %c0_38] : memref<16x16x8xbf16, #tpu.memory_space<vmem>>, vector<1x16x8xbf16>
    %38 = vector.shape_cast %37 : vector<1x16x8xbf16> to vector<16x8xbf16>
    %cst_39 = arith.constant dense<0.000000e+00> : vector<64x8xf32>
    %39 = tpu.matmul %36, %38, %cst_39 {dimension_numbers = #tpu.dot_dimension_numbers<[1], [0], [0], [1], [0, 0, 1, 1], [], []>} : vector<64x16xbf16>, vector<16x8xbf16>, vector<64x8xf32> -> vector<64x8xf32>
    %40 = arith.addf %33, %39 : vector<64x8xf32>
    %c0_40 = arith.constant 0 : index
    %c0_41 = arith.constant 0 : index
    %c0_42 = arith.constant 0 : index
    %c0_43 = arith.constant 0 : index
    %41 = vector.load %arg4[%c0_40, %c0_41, %c0_42, %c0_43] : memref<1x4x64x8xf32, #tpu.memory_space<vmem>>, vector<1x1x64x8xf32>
    %42 = vector.shape_cast %41 : vector<1x1x64x8xf32> to vector<64x8xf32>
    %43 = vector.shape_cast %40 : vector<64x8xf32> to vector<1x1x64x8xf32>
    tpu.vector_store %arg4[%c0_40, %c0_41, %c0_42, %c0_43], %43 {strides = array<i32>} : memref<1x4x64x8xf32, #tpu.memory_space<vmem>>, vector<1x1x64x8xf32>,
    %cst_44 = arith.constant dense<0.000000e+00> : vector<8xf32>
    %44 = vector.multi_reduction <add>, %40, %cst_44 [0] : vector<64x8xf32> to vector<8xf32>
    %45 = vector.shape_cast %44 : vector<8xf32> to vector<1x8xf32>
    %46 = arith.addf %10, %45 : vector<1x8xf32>
    %47 = arith.mulf %40, %40 : vector<64x8xf32>
    %cst_45 = arith.constant dense<0.000000e+00> : vector<8xf32>
    %48 = vector.multi_reduction <add>, %47, %cst_45 [0] : vector<64x8xf32> to vector<8xf32>
    %49 = vector.shape_cast %48 : vector<8xf32> to vector<1x8xf32>
    %50 = arith.addf %11, %49 : vector<1x8xf32>
    %cst_46 = arith.constant 0.000000e+00 : f32
    %51 = vector.broadcast %cst_46 : f32 to vector<64x8xf32>
    %c0_47 = arith.constant 0 : index
    %c1_48 = arith.constant 1 : index
    %c0_49 = arith.constant 0 : index
    %52 = vector.load %arg6[%c0_47, %c1_48, %c0_49] : memref<10x10x16xf32, #tpu.memory_space<vmem>>, vector<8x8x16xf32>
    %53 = vector.shape_cast %52 : vector<8x8x16xf32> to vector<64x16xf32>
    %54 = arith.truncf %53 : vector<64x16xf32> to vector<64x16xbf16>
    %c4 = arith.constant 4 : index
    %c0_50 = arith.constant 0 : index
    %c0_51 = arith.constant 0 : index
    %55 = vector.load %arg3[%c4, %c0_50, %c0_51] : memref<16x16x8xbf16, #tpu.memory_space<vmem>>, vector<1x16x8xbf16>
    %56 = vector.shape_cast %55 : vector<1x16x8xbf16> to vector<16x8xbf16>
    %cst_52 = arith.constant dense<0.000000e+00> : vector<64x8xf32>
    %57 = tpu.matmul %54, %56, %cst_52 {dimension_numbers = #tpu.dot_dimension_numbers<[1], [0], [0], [1], [0, 0, 1, 1], [], []>} : vector<64x16xbf16>, vector<16x8xbf16>, vector<64x8xf32> -> vector<64x8xf32>
    %58 = arith.addf %51, %57 : vector<64x8xf32>
    %c0_53 = arith.constant 0 : index
    %c2_54 = arith.constant 2 : index
    %c0_55 = arith.constant 0 : index
    %59 = vector.load %arg6[%c0_53, %c2_54, %c0_55] : memref<10x10x16xf32, #tpu.memory_space<vmem>>, vector<8x8x16xf32>
    %60 = vector.shape_cast %59 : vector<8x8x16xf32> to vector<64x16xf32>
    %61 = arith.truncf %60 : vector<64x16xf32> to vector<64x16xbf16>
    %c5 = arith.constant 5 : index
    %c0_56 = arith.constant 0 : index
    %c0_57 = arith.constant 0 : index
    %62 = vector.load %arg3[%c5, %c0_56, %c0_57] : memref<16x16x8xbf16, #tpu.memory_space<vmem>>, vector<1x16x8xbf16>
    %63 = vector.shape_cast %62 : vector<1x16x8xbf16> to vector<16x8xbf16>
    %cst_58 = arith.constant dense<0.000000e+00> : vector<64x8xf32>
    %64 = tpu.matmul %61, %63, %cst_58 {dimension_numbers = #tpu.dot_dimension_numbers<[1], [0], [0], [1], [0, 0, 1, 1], [], []>} : vector<64x16xbf16>, vector<16x8xbf16>, vector<64x8xf32> -> vector<64x8xf32>
    %65 = arith.addf %58, %64 : vector<64x8xf32>
    %c1_59 = arith.constant 1 : index
    %c1_60 = arith.constant 1 : index
    %c0_61 = arith.constant 0 : index
    %66 = vector.load %arg6[%c1_59, %c1_60, %c0_61] : memref<10x10x16xf32, #tpu.memory_space<vmem>>, vector<8x8x16xf32>
    %67 = vector.shape_cast %66 : vector<8x8x16xf32> to vector<64x16xf32>
    %68 = arith.truncf %67 : vector<64x16xf32> to vector<64x16xbf16>
    %c6 = arith.constant 6 : index
    %c0_62 = arith.constant 0 : index
    %c0_63 = arith.constant 0 : index
    %69 = vector.load %arg3[%c6, %c0_62, %c0_63] : memref<16x16x8xbf16, #tpu.memory_space<vmem>>, vector<1x16x8xbf16>
    %70 = vector.shape_cast %69 : vector<1x16x8xbf16> to vector<16x8xbf16>
    %cst_64 = arith.constant dense<0.000000e+00> : vector<64x8xf32>
    %71 = tpu.matmul %68, %70, %cst_64 {dimension_numbers = #tpu.dot_dimension_numbers<[1], [0], [0], [1], [0, 0, 1, 1], [], []>} : vector<64x16xbf16>, vector<16x8xbf16>, vector<64x8xf32> -> vector<64x8xf32>
    %72 = arith.addf %65, %71 : vector<64x8xf32>
    %c1_65 = arith.constant 1 : index
    %c2_66 = arith.constant 2 : index
    %c0_67 = arith.constant 0 : index
    %73 = vector.load %arg6[%c1_65, %c2_66, %c0_67] : memref<10x10x16xf32, #tpu.memory_space<vmem>>, vector<8x8x16xf32>
    %74 = vector.shape_cast %73 : vector<8x8x16xf32> to vector<64x16xf32>
    %75 = arith.truncf %74 : vector<64x16xf32> to vector<64x16xbf16>
    %c7 = arith.constant 7 : index
    %c0_68 = arith.constant 0 : index
    %c0_69 = arith.constant 0 : index
    %76 = vector.load %arg3[%c7, %c0_68, %c0_69] : memref<16x16x8xbf16, #tpu.memory_space<vmem>>, vector<1x16x8xbf16>
    %77 = vector.shape_cast %76 : vector<1x16x8xbf16> to vector<16x8xbf16>
    %cst_70 = arith.constant dense<0.000000e+00> : vector<64x8xf32>
    %78 = tpu.matmul %75, %77, %cst_70 {dimension_numbers = #tpu.dot_dimension_numbers<[1], [0], [0], [1], [0, 0, 1, 1], [], []>} : vector<64x16xbf16>, vector<16x8xbf16>, vector<64x8xf32> -> vector<64x8xf32>
    %79 = arith.addf %72, %78 : vector<64x8xf32>
    %c0_71 = arith.constant 0 : index
    %c1_72 = arith.constant 1 : index
    %c0_73 = arith.constant 0 : index
    %c0_74 = arith.constant 0 : index
    %80 = vector.load %arg4[%c0_71, %c1_72, %c0_73, %c0_74] : memref<1x4x64x8xf32, #tpu.memory_space<vmem>>, vector<1x1x64x8xf32>
    %81 = vector.shape_cast %80 : vector<1x1x64x8xf32> to vector<64x8xf32>
    %82 = vector.shape_cast %79 : vector<64x8xf32> to vector<1x1x64x8xf32>
    tpu.vector_store %arg4[%c0_71, %c1_72, %c0_73, %c0_74], %82 {strides = array<i32>} : memref<1x4x64x8xf32, #tpu.memory_space<vmem>>, vector<1x1x64x8xf32>,
    %cst_75 = arith.constant dense<0.000000e+00> : vector<8xf32>
    %83 = vector.multi_reduction <add>, %79, %cst_75 [0] : vector<64x8xf32> to vector<8xf32>
    %84 = vector.shape_cast %83 : vector<8xf32> to vector<1x8xf32>
    %85 = arith.addf %46, %84 : vector<1x8xf32>
    %86 = arith.mulf %79, %79 : vector<64x8xf32>
    %cst_76 = arith.constant dense<0.000000e+00> : vector<8xf32>
    %87 = vector.multi_reduction <add>, %86, %cst_76 [0] : vector<64x8xf32> to vector<8xf32>
    %88 = vector.shape_cast %87 : vector<8xf32> to vector<1x8xf32>
    %89 = arith.addf %50, %88 : vector<1x8xf32>
    %cst_77 = arith.constant 0.000000e+00 : f32
    %90 = vector.broadcast %cst_77 : f32 to vector<64x8xf32>
    %c1_78 = arith.constant 1 : index
    %c0_79 = arith.constant 0 : index
    %c0_80 = arith.constant 0 : index
    %91 = vector.load %arg6[%c1_78, %c0_79, %c0_80] : memref<10x10x16xf32, #tpu.memory_space<vmem>>, vector<8x8x16xf32>
    %92 = vector.shape_cast %91 : vector<8x8x16xf32> to vector<64x16xf32>
    %93 = arith.truncf %92 : vector<64x16xf32> to vector<64x16xbf16>
    %c8 = arith.constant 8 : index
    %c0_81 = arith.constant 0 : index
    %c0_82 = arith.constant 0 : index
    %94 = vector.load %arg3[%c8, %c0_81, %c0_82] : memref<16x16x8xbf16, #tpu.memory_space<vmem>>, vector<1x16x8xbf16>
    %95 = vector.shape_cast %94 : vector<1x16x8xbf16> to vector<16x8xbf16>
    %cst_83 = arith.constant dense<0.000000e+00> : vector<64x8xf32>
    %96 = tpu.matmul %93, %95, %cst_83 {dimension_numbers = #tpu.dot_dimension_numbers<[1], [0], [0], [1], [0, 0, 1, 1], [], []>} : vector<64x16xbf16>, vector<16x8xbf16>, vector<64x8xf32> -> vector<64x8xf32>
    %97 = arith.addf %90, %96 : vector<64x8xf32>
    %c1_84 = arith.constant 1 : index
    %c1_85 = arith.constant 1 : index
    %c0_86 = arith.constant 0 : index
    %98 = vector.load %arg6[%c1_84, %c1_85, %c0_86] : memref<10x10x16xf32, #tpu.memory_space<vmem>>, vector<8x8x16xf32>
    %99 = vector.shape_cast %98 : vector<8x8x16xf32> to vector<64x16xf32>
    %100 = arith.truncf %99 : vector<64x16xf32> to vector<64x16xbf16>
    %c9 = arith.constant 9 : index
    %c0_87 = arith.constant 0 : index
    %c0_88 = arith.constant 0 : index
    %101 = vector.load %arg3[%c9, %c0_87, %c0_88] : memref<16x16x8xbf16, #tpu.memory_space<vmem>>, vector<1x16x8xbf16>
    %102 = vector.shape_cast %101 : vector<1x16x8xbf16> to vector<16x8xbf16>
    %cst_89 = arith.constant dense<0.000000e+00> : vector<64x8xf32>
    %103 = tpu.matmul %100, %102, %cst_89 {dimension_numbers = #tpu.dot_dimension_numbers<[1], [0], [0], [1], [0, 0, 1, 1], [], []>} : vector<64x16xbf16>, vector<16x8xbf16>, vector<64x8xf32> -> vector<64x8xf32>
    %104 = arith.addf %97, %103 : vector<64x8xf32>
    %c2_90 = arith.constant 2 : index
    %c0_91 = arith.constant 0 : index
    %c0_92 = arith.constant 0 : index
    %105 = vector.load %arg6[%c2_90, %c0_91, %c0_92] : memref<10x10x16xf32, #tpu.memory_space<vmem>>, vector<8x8x16xf32>
    %106 = vector.shape_cast %105 : vector<8x8x16xf32> to vector<64x16xf32>
    %107 = arith.truncf %106 : vector<64x16xf32> to vector<64x16xbf16>
    %c10 = arith.constant 10 : index
    %c0_93 = arith.constant 0 : index
    %c0_94 = arith.constant 0 : index
    %108 = vector.load %arg3[%c10, %c0_93, %c0_94] : memref<16x16x8xbf16, #tpu.memory_space<vmem>>, vector<1x16x8xbf16>
    %109 = vector.shape_cast %108 : vector<1x16x8xbf16> to vector<16x8xbf16>
    %cst_95 = arith.constant dense<0.000000e+00> : vector<64x8xf32>
    %110 = tpu.matmul %107, %109, %cst_95 {dimension_numbers = #tpu.dot_dimension_numbers<[1], [0], [0], [1], [0, 0, 1, 1], [], []>} : vector<64x16xbf16>, vector<16x8xbf16>, vector<64x8xf32> -> vector<64x8xf32>
    %111 = arith.addf %104, %110 : vector<64x8xf32>
    %c2_96 = arith.constant 2 : index
    %c1_97 = arith.constant 1 : index
    %c0_98 = arith.constant 0 : index
    %112 = vector.load %arg6[%c2_96, %c1_97, %c0_98] : memref<10x10x16xf32, #tpu.memory_space<vmem>>, vector<8x8x16xf32>
    %113 = vector.shape_cast %112 : vector<8x8x16xf32> to vector<64x16xf32>
    %114 = arith.truncf %113 : vector<64x16xf32> to vector<64x16xbf16>
    %c11 = arith.constant 11 : index
    %c0_99 = arith.constant 0 : index
    %c0_100 = arith.constant 0 : index
    %115 = vector.load %arg3[%c11, %c0_99, %c0_100] : memref<16x16x8xbf16, #tpu.memory_space<vmem>>, vector<1x16x8xbf16>
    %116 = vector.shape_cast %115 : vector<1x16x8xbf16> to vector<16x8xbf16>
    %cst_101 = arith.constant dense<0.000000e+00> : vector<64x8xf32>
    %117 = tpu.matmul %114, %116, %cst_101 {dimension_numbers = #tpu.dot_dimension_numbers<[1], [0], [0], [1], [0, 0, 1, 1], [], []>} : vector<64x16xbf16>, vector<16x8xbf16>, vector<64x8xf32> -> vector<64x8xf32>
    %118 = arith.addf %111, %117 : vector<64x8xf32>
    %c0_102 = arith.constant 0 : index
    %c2_103 = arith.constant 2 : index
    %c0_104 = arith.constant 0 : index
    %c0_105 = arith.constant 0 : index
    %119 = vector.load %arg4[%c0_102, %c2_103, %c0_104, %c0_105] : memref<1x4x64x8xf32, #tpu.memory_space<vmem>>, vector<1x1x64x8xf32>
    %120 = vector.shape_cast %119 : vector<1x1x64x8xf32> to vector<64x8xf32>
    %121 = vector.shape_cast %118 : vector<64x8xf32> to vector<1x1x64x8xf32>
    tpu.vector_store %arg4[%c0_102, %c2_103, %c0_104, %c0_105], %121 {strides = array<i32>} : memref<1x4x64x8xf32, #tpu.memory_space<vmem>>, vector<1x1x64x8xf32>,
    %cst_106 = arith.constant dense<0.000000e+00> : vector<8xf32>
    %122 = vector.multi_reduction <add>, %118, %cst_106 [0] : vector<64x8xf32> to vector<8xf32>
    %123 = vector.shape_cast %122 : vector<8xf32> to vector<1x8xf32>
    %124 = arith.addf %85, %123 : vector<1x8xf32>
    %125 = arith.mulf %118, %118 : vector<64x8xf32>
    %cst_107 = arith.constant dense<0.000000e+00> : vector<8xf32>
    %126 = vector.multi_reduction <add>, %125, %cst_107 [0] : vector<64x8xf32> to vector<8xf32>
    %127 = vector.shape_cast %126 : vector<8xf32> to vector<1x8xf32>
    %128 = arith.addf %89, %127 : vector<1x8xf32>
    %cst_108 = arith.constant 0.000000e+00 : f32
    %129 = vector.broadcast %cst_108 : f32 to vector<64x8xf32>
    %c1_109 = arith.constant 1 : index
    %c1_110 = arith.constant 1 : index
    %c0_111 = arith.constant 0 : index
    %130 = vector.load %arg6[%c1_109, %c1_110, %c0_111] : memref<10x10x16xf32, #tpu.memory_space<vmem>>, vector<8x8x16xf32>
    %131 = vector.shape_cast %130 : vector<8x8x16xf32> to vector<64x16xf32>
    %132 = arith.truncf %131 : vector<64x16xf32> to vector<64x16xbf16>
    %c12 = arith.constant 12 : index
    %c0_112 = arith.constant 0 : index
    %c0_113 = arith.constant 0 : index
    %133 = vector.load %arg3[%c12, %c0_112, %c0_113] : memref<16x16x8xbf16, #tpu.memory_space<vmem>>, vector<1x16x8xbf16>
    %134 = vector.shape_cast %133 : vector<1x16x8xbf16> to vector<16x8xbf16>
    %cst_114 = arith.constant dense<0.000000e+00> : vector<64x8xf32>
    %135 = tpu.matmul %132, %134, %cst_114 {dimension_numbers = #tpu.dot_dimension_numbers<[1], [0], [0], [1], [0, 0, 1, 1], [], []>} : vector<64x16xbf16>, vector<16x8xbf16>, vector<64x8xf32> -> vector<64x8xf32>
    %136 = arith.addf %129, %135 : vector<64x8xf32>
    %c1_115 = arith.constant 1 : index
    %c2_116 = arith.constant 2 : index
    %c0_117 = arith.constant 0 : index
    %137 = vector.load %arg6[%c1_115, %c2_116, %c0_117] : memref<10x10x16xf32, #tpu.memory_space<vmem>>, vector<8x8x16xf32>
    %138 = vector.shape_cast %137 : vector<8x8x16xf32> to vector<64x16xf32>
    %139 = arith.truncf %138 : vector<64x16xf32> to vector<64x16xbf16>
    %c13 = arith.constant 13 : index
    %c0_118 = arith.constant 0 : index
    %c0_119 = arith.constant 0 : index
    %140 = vector.load %arg3[%c13, %c0_118, %c0_119] : memref<16x16x8xbf16, #tpu.memory_space<vmem>>, vector<1x16x8xbf16>
    %141 = vector.shape_cast %140 : vector<1x16x8xbf16> to vector<16x8xbf16>
    %cst_120 = arith.constant dense<0.000000e+00> : vector<64x8xf32>
    %142 = tpu.matmul %139, %141, %cst_120 {dimension_numbers = #tpu.dot_dimension_numbers<[1], [0], [0], [1], [0, 0, 1, 1], [], []>} : vector<64x16xbf16>, vector<16x8xbf16>, vector<64x8xf32> -> vector<64x8xf32>
    %143 = arith.addf %136, %142 : vector<64x8xf32>
    %c2_121 = arith.constant 2 : index
    %c1_122 = arith.constant 1 : index
    %c0_123 = arith.constant 0 : index
    %144 = vector.load %arg6[%c2_121, %c1_122, %c0_123] : memref<10x10x16xf32, #tpu.memory_space<vmem>>, vector<8x8x16xf32>
    %145 = vector.shape_cast %144 : vector<8x8x16xf32> to vector<64x16xf32>
    %146 = arith.truncf %145 : vector<64x16xf32> to vector<64x16xbf16>
    %c14 = arith.constant 14 : index
    %c0_124 = arith.constant 0 : index
    %c0_125 = arith.constant 0 : index
    %147 = vector.load %arg3[%c14, %c0_124, %c0_125] : memref<16x16x8xbf16, #tpu.memory_space<vmem>>, vector<1x16x8xbf16>
    %148 = vector.shape_cast %147 : vector<1x16x8xbf16> to vector<16x8xbf16>
    %cst_126 = arith.constant dense<0.000000e+00> : vector<64x8xf32>
    %149 = tpu.matmul %146, %148, %cst_126 {dimension_numbers = #tpu.dot_dimension_numbers<[1], [0], [0], [1], [0, 0, 1, 1], [], []>} : vector<64x16xbf16>, vector<16x8xbf16>, vector<64x8xf32> -> vector<64x8xf32>
    %150 = arith.addf %143, %149 : vector<64x8xf32>
    %c2_127 = arith.constant 2 : index
    %c2_128 = arith.constant 2 : index
    %c0_129 = arith.constant 0 : index
    %151 = vector.load %arg6[%c2_127, %c2_128, %c0_129] : memref<10x10x16xf32, #tpu.memory_space<vmem>>, vector<8x8x16xf32>
    %152 = vector.shape_cast %151 : vector<8x8x16xf32> to vector<64x16xf32>
    %153 = arith.truncf %152 : vector<64x16xf32> to vector<64x16xbf16>
    %c15 = arith.constant 15 : index
    %c0_130 = arith.constant 0 : index
    %c0_131 = arith.constant 0 : index
    %154 = vector.load %arg3[%c15, %c0_130, %c0_131] : memref<16x16x8xbf16, #tpu.memory_space<vmem>>, vector<1x16x8xbf16>
    %155 = vector.shape_cast %154 : vector<1x16x8xbf16> to vector<16x8xbf16>
    %cst_132 = arith.constant dense<0.000000e+00> : vector<64x8xf32>
    %156 = tpu.matmul %153, %155, %cst_132 {dimension_numbers = #tpu.dot_dimension_numbers<[1], [0], [0], [1], [0, 0, 1, 1], [], []>} : vector<64x16xbf16>, vector<16x8xbf16>, vector<64x8xf32> -> vector<64x8xf32>
    %157 = arith.addf %150, %156 : vector<64x8xf32>
    %c0_133 = arith.constant 0 : index
    %c3_134 = arith.constant 3 : index
    %c0_135 = arith.constant 0 : index
    %c0_136 = arith.constant 0 : index
    %158 = vector.load %arg4[%c0_133, %c3_134, %c0_135, %c0_136] : memref<1x4x64x8xf32, #tpu.memory_space<vmem>>, vector<1x1x64x8xf32>
    %159 = vector.shape_cast %158 : vector<1x1x64x8xf32> to vector<64x8xf32>
    %160 = vector.shape_cast %157 : vector<64x8xf32> to vector<1x1x64x8xf32>
    tpu.vector_store %arg4[%c0_133, %c3_134, %c0_135, %c0_136], %160 {strides = array<i32>} : memref<1x4x64x8xf32, #tpu.memory_space<vmem>>, vector<1x1x64x8xf32>,
    %cst_137 = arith.constant dense<0.000000e+00> : vector<8xf32>
    %161 = vector.multi_reduction <add>, %157, %cst_137 [0] : vector<64x8xf32> to vector<8xf32>
    %162 = vector.shape_cast %161 : vector<8xf32> to vector<1x8xf32>
    %163 = arith.addf %124, %162 : vector<1x8xf32>
    %164 = arith.mulf %157, %157 : vector<64x8xf32>
    %cst_138 = arith.constant dense<0.000000e+00> : vector<8xf32>
    %165 = vector.multi_reduction <add>, %164, %cst_138 [0] : vector<64x8xf32> to vector<8xf32>
    %166 = vector.shape_cast %165 : vector<8xf32> to vector<1x8xf32>
    %167 = arith.addf %128, %166 : vector<1x8xf32>
    %c0_139 = arith.constant 0 : index
    %c0_140 = arith.constant 0 : index
    %c0_141 = arith.constant 0 : index
    %168 = vector.load %arg5[%c0_139, %c0_140, %c0_141] : memref<1x2x8xf32, #tpu.memory_space<vmem>>, vector<1x1x8xf32>
    %169 = vector.shape_cast %168 : vector<1x1x8xf32> to vector<1x8xf32>
    %170 = vector.shape_cast %163 : vector<1x8xf32> to vector<1x1x8xf32>
    tpu.vector_store %arg5[%c0_139, %c0_140, %c0_141], %170 {strides = array<i32>} : memref<1x2x8xf32, #tpu.memory_space<vmem>>, vector<1x1x8xf32>,
    %c0_142 = arith.constant 0 : index
    %c1_143 = arith.constant 1 : index
    %c0_144 = arith.constant 0 : index
    %171 = vector.load %arg5[%c0_142, %c1_143, %c0_144] : memref<1x2x8xf32, #tpu.memory_space<vmem>>, vector<1x1x8xf32>
    %172 = vector.shape_cast %171 : vector<1x1x8xf32> to vector<1x8xf32>
    %173 = vector.shape_cast %167 : vector<1x8xf32> to vector<1x1x8xf32>
    tpu.vector_store %arg5[%c0_142, %c1_143, %c0_144], %173 {strides = array<i32>} : memref<1x2x8xf32, #tpu.memory_space<vmem>>, vector<1x1x8xf32>,
    return
  }
  func.func @transform_0(%arg0: i32) -> (i32, i32, i32) {
    %c0_i32 = arith.constant 0 : i32
    %c0_i32_0 = arith.constant 0 : i32
    %c0_i32_1 = arith.constant 0 : i32
    return %arg0, %c0_i32, %c0_i32_0 : i32, i32, i32
  }
  func.func @transform_1(%arg0: i32) -> (i32, i32) {
    %c0_i32 = arith.constant 0 : i32
    %c0_i32_0 = arith.constant 0 : i32
    %c0_i32_1 = arith.constant 0 : i32
    return %c0_i32, %c0_i32_0 : i32, i32
  }
  func.func @transform_2(%arg0: i32) -> (i32, i32, i32) {
    %c0_i32 = arith.constant 0 : i32
    %c0_i32_0 = arith.constant 0 : i32
    %c0_i32_1 = arith.constant 0 : i32
    %c0_i32_2 = arith.constant 0 : i32
    return %c0_i32, %c0_i32_0, %c0_i32_1 : i32, i32, i32
  }
  func.func @transform_3(%arg0: i32) -> (i32, i32, i32, i32) {
    %c0_i32 = arith.constant 0 : i32
    %c0_i32_0 = arith.constant 0 : i32
    %c0_i32_1 = arith.constant 0 : i32
    %c0_i32_2 = arith.constant 0 : i32
    return %arg0, %c0_i32, %c0_i32_0, %c0_i32_1 : i32, i32, i32, i32
  }
  func.func @transform_4(%arg0: i32) -> (i32, i32, i32) {
    %c0_i32 = arith.constant 0 : i32
    %c0_i32_0 = arith.constant 0 : i32
    %c0_i32_1 = arith.constant 0 : i32
    return %arg0, %c0_i32, %c0_i32_0 : i32, i32, i32
  }
}

module attributes {stable_mosaic.version = 11 : i64} {
  func.func @bn_affine_kernel(%arg0: i32, %arg1: memref<1x4x64x8xf32, #tpu.memory_space<vmem>>, %arg2: memref<1x8xf32, #tpu.memory_space<vmem>>, %arg3: memref<1x8xf32, #tpu.memory_space<vmem>>, %arg4: memref<1x4x64x8xf32, #tpu.memory_space<vmem>>) attributes {dimension_semantics = [#tpu.dimension_semantics<parallel>], iteration_bounds = array<i64: 2>, scalar_prefetch = 0 : i64, scratch_operands = 0 : i64, tpu.core_type = #tpu.core_type<tc>, window_params = [{transform_indices = @transform_0, window_bounds = array<i64: 1, 4, 64, 8>}, {pipeline_mode = #tpu.pipeline_mode<synchronous>, transform_indices = @transform_1, window_bounds = array<i64: 1, 8>}, {pipeline_mode = #tpu.pipeline_mode<synchronous>, transform_indices = @transform_2, window_bounds = array<i64: 1, 8>}, {transform_indices = @transform_3, window_bounds = array<i64: 1, 4, 64, 8>}]} {
    %c0 = arith.constant 0 : index
    %c0_0 = arith.constant 0 : index
    %c0_1 = arith.constant 0 : index
    %c0_2 = arith.constant 0 : index
    %0 = vector.load %arg1[%c0, %c0_0, %c0_1, %c0_2] : memref<1x4x64x8xf32, #tpu.memory_space<vmem>>, vector<1x4x64x8xf32>
    %c0_3 = arith.constant 0 : index
    %c0_4 = arith.constant 0 : index
    %1 = vector.load %arg2[%c0_3, %c0_4] : memref<1x8xf32, #tpu.memory_space<vmem>>, vector<1x8xf32>
    %2 = vector.shape_cast %1 : vector<1x8xf32> to vector<1x1x1x8xf32>
    %3 = vector.broadcast %2 : vector<1x1x1x8xf32> to vector<1x4x64x8xf32>
    %4 = arith.mulf %0, %3 : vector<1x4x64x8xf32>
    %c0_5 = arith.constant 0 : index
    %c0_6 = arith.constant 0 : index
    %5 = vector.load %arg3[%c0_5, %c0_6] : memref<1x8xf32, #tpu.memory_space<vmem>>, vector<1x8xf32>
    %6 = vector.shape_cast %5 : vector<1x8xf32> to vector<1x1x1x8xf32>
    %7 = vector.broadcast %6 : vector<1x1x1x8xf32> to vector<1x4x64x8xf32>
    %8 = arith.addf %4, %7 : vector<1x4x64x8xf32>
    %c0_7 = arith.constant 0 : index
    %c0_8 = arith.constant 0 : index
    %c0_9 = arith.constant 0 : index
    %c0_10 = arith.constant 0 : index
    %9 = vector.load %arg4[%c0_7, %c0_8, %c0_9, %c0_10] : memref<1x4x64x8xf32, #tpu.memory_space<vmem>>, vector<1x4x64x8xf32>
    tpu.vector_store %arg4[%c0_7, %c0_8, %c0_9, %c0_10], %8 {strides = array<i32>} : memref<1x4x64x8xf32, #tpu.memory_space<vmem>>, vector<1x4x64x8xf32>,
    return
  }
  func.func @transform_0(%arg0: i32) -> (i32, i32, i32, i32) {
    %c0_i32 = arith.constant 0 : i32
    %c0_i32_0 = arith.constant 0 : i32
    %c0_i32_1 = arith.constant 0 : i32
    %c0_i32_2 = arith.constant 0 : i32
    return %arg0, %c0_i32, %c0_i32_0, %c0_i32_1 : i32, i32, i32, i32
  }
  func.func @transform_1(%arg0: i32) -> (i32, i32) {
    %c0_i32 = arith.constant 0 : i32
    %c0_i32_0 = arith.constant 0 : i32
    %c0_i32_1 = arith.constant 0 : i32
    return %c0_i32, %c0_i32_0 : i32, i32
  }
  func.func @transform_2(%arg0: i32) -> (i32, i32) {
    %c0_i32 = arith.constant 0 : i32
    %c0_i32_0 = arith.constant 0 : i32
    %c0_i32_1 = arith.constant 0 : i32
    return %c0_i32, %c0_i32_0 : i32, i32
  }
  func.func @transform_3(%arg0: i32) -> (i32, i32, i32, i32) {
    %c0_i32 = arith.constant 0 : i32
    %c0_i32_0 = arith.constant 0 : i32
    %c0_i32_1 = arith.constant 0 : i32
    %c0_i32_2 = arith.constant 0 : i32
    return %arg0, %c0_i32, %c0_i32_0, %c0_i32_1 : i32, i32, i32, i32
  }
}

</mosaic_0001>

<llo_original>
// kernel: unet_innermost_block.3
$region0: #{unet_innermost_block.3}
  #allocation0 [shape = 'u32[]', space=smem, size = 0x4, offset = 0x4, fixed_abs, tag = 'smem constant byte address 0x4 - core index']
  #allocation1 [shape = 'u32[144,128]{1,0:T(1,128)}', space=vmem, size = 0x12000, scoped, tag = 'internal scratch']
  %s0 = inlined_call_operand.vmem [shape: f32[2,4,64,8], index: 0, kind: input, shape index: {}]
  %s1 = inlined_call_operand.vmem [shape: f32[1,8], index: 1, kind: input, shape index: {}]
  %s2 = inlined_call_operand.vmem [shape: f32[1,8], index: 2, kind: input, shape index: {}]
  %s3 = inlined_call_operand.vmem [shape: f32[2,4,64,8], index: 3, kind: output, shape index: {}]
  %s4 = sld [smem:[#allocation0]]
  $region45: #{unet_innermost_block.3} parent=0
    _
  %s6 = ssub.s32 1, %s4
  %s7 = scalar_select 0, %s6, %s4
  loop: start=0, step=1, limit=4
  $region2: #{unet_innermost_block.3} parent=0 // loop_pre_header
    _
  $region3: #{unet_innermost_block.3} parent=0 // loop_header
    %s9 = sphi 0, %s13
    %p10 = scmp.ge.s32.totalorder %s9, 4
    %s19 = sphi 0, %s21
    %s22 = sphi 0, %s19
    %s23 = sphi 0, %s22
    %s39 = sphi 0, %s23
    %s43 = sphi 0, %s43
    %s45 = sphi 0, %s43
    %s46 = sphi 0, %s45
    %s60 = sphi 0, %s46
    %s64 = sphi 0, %s64
    %s66 = sphi 0, %s64
    %s67 = sphi 0, %s66
    %s81 = sphi 0, %s67
    %s87 = sphi 0, %s89
    %s90 = sphi 0, %s87
    %s91 = sphi 0, %s90
    %s107 = sphi 0, %s91
  $region4: #{unet_innermost_block.3} parent=0 // loop_header_branch
    %12 = sbr.rel (%p10) target = $region8
  $region5: #{unet_innermost_block.3} parent=0 // loop_body
    %s14 = ssub.s32 %s9, 1
    %s15 = ssub.s32 %s9, 2
    %s16 = sadd.s32 %s9, 1
    %s17 = ssub.s32 %s9, %s16
    %p18 = scmp.eq.s32.totalorder %s17, 0
    %s20 = sadd.s32 %s19, 1
    %s21 = scalar_select %p18, %s19, %s20
    %p24 = pneg %p18
    %p25 = scmp.eq.s32.totalorder %s9, 1
    %p26 = por %p24, %p25
    %p27 = scmp.ne.s32.totalorder %s19, %s22
    %p28 = scmp.eq.s32.totalorder %s9, 0
    %p29 = por %p27, %p28
    %p30 = scmp.ne.s32.totalorder %s19, %s22
    %p31 = scmp.eq.s32.totalorder %s14, 1
    %p32 = por %p30, %p31
    %p33 = scmp.ne.s32.totalorder %s22, %s23
    %p34 = scmp.eq.s32.totalorder %s14, 0
    %p35 = por %p33, %p34
    %p36 = scmp.ne.s32.totalorder %s22, %s23
    %p37 = scmp.eq.s32.totalorder %s15, 1
    %p38 = por %p36, %p37
    %p40 = scmp.ne.s32.totalorder %s23, %s39
    %p41 = scmp.eq.s32.totalorder %s15, 0
    %p42 = por %p40, %p41
    %s44 = sadd.s32 %s43, 1
    %p47 = scmp.eq.s32.totalorder %s9, 1
    %p48 = scmp.ne.s32.totalorder %s43, %s45
    %p49 = scmp.eq.s32.totalorder %s9, 0
    %p50 = por %p48, %p49
    %p51 = scmp.ne.s32.totalorder %s43, %s45
    %p52 = scmp.eq.s32.totalorder %s14, 1
    %p53 = por %p51, %p52
    %p54 = scmp.ne.s32.totalorder %s45, %s46
    %p55 = scmp.eq.s32.totalorder %s14, 0
    %p56 = por %p54, %p55
    %p57 = scmp.ne.s32.totalorder %s45, %s46
    %p58 = scmp.eq.s32.totalorder %s15, 1
    %p59 = por %p57, %p58
    %p61 = scmp.ne.s32.totalorder %s46, %s60
    %p62 = scmp.eq.s32.totalorder %s15, 0
    %p63 = por %p61, %p62
    %s65 = sadd.s32 %s64, 1
    %p68 = scmp.eq.s32.totalorder %s9, 1
    %p69 = scmp.ne.s32.totalorder %s64, %s66
    %p70 = scmp.eq.s32.totalorder %s9, 0
    %p71 = por %p69, %p70
    %p72 = scmp.ne.s32.totalorder %s64, %s66
    %p73 = scmp.eq.s32.totalorder %s14, 1
    %p74 = por %p72, %p73
    %p75 = scmp.ne.s32.totalorder %s66, %s67
    %p76 = scmp.eq.s32.totalorder %s14, 0
    %p77 = por %p75, %p76
    %p78 = scmp.ne.s32.totalorder %s66, %s67
    %p79 = scmp.eq.s32.totalorder %s15, 1
    %p80 = por %p78, %p79
    %p82 = scmp.ne.s32.totalorder %s67, %s81
    %p83 = scmp.eq.s32.totalorder %s15, 0
    %p84 = por %p82, %p83
    %s85 = ssub.s32 %s9, %s16
    %p86 = scmp.eq.s32.totalorder %s85, 0
    %s88 = sadd.s32 %s87, 1
    %s89 = scalar_select %p86, %s87, %s88
    %p92 = pneg %p86
    %p93 = scmp.eq.s32.totalorder %s9, 1
    %p94 = por %p92, %p93
    %p95 = scmp.ne.s32.totalorder %s87, %s90
    %p96 = scmp.eq.s32.totalorder %s9, 0
    %p97 = por %p95, %p96
    %p98 = scmp.ne.s32.totalorder %s87, %s90
    %p99 = scmp.eq.s32.totalorder %s14, 1
    %p100 = por %p98, %p99
    %p101 = scmp.ne.s32.totalorder %s90, %s91
    %p102 = scmp.eq.s32.totalorder %s14, 0
    %p103 = por %p101, %p102
    %p104 = scmp.ne.s32.totalorder %s90, %s91
    %p105 = scmp.eq.s32.totalorder %s15, 1
    %p106 = por %p104, %p105
    %p108 = scmp.ne.s32.totalorder %s91, %s107
    %p109 = scmp.eq.s32.totalorder %s15, 0
    %p110 = por %p108, %p109
    %p111 = scmp.le.s32.totalorder 1, %s9
    %p112 = scmp.lt.s32.totalorder %s9, 3
    %p113 = pnand %p111, %p112
    %p114 = pneg %p113
    // Predicated region
    $region9: #{unet_innermost_block.3} parent=5 // pred_check
      _
    $region10: #{unet_innermost_block.3} parent=5 // pred_check_branch
      %116 = sbr.rel (%p113) target = $region12
    $region11: #{unet_innermost_block.3} parent=5 // pred_region
      %s117 = ssub.s32 %s9, 1
      // Predicated region
      $region13: #{unet_innermost_block.3} parent=11 // pred_check
        %p118 = pneg %p56
      $region14: #{unet_innermost_block.3} parent=11 // pred_check_branch
        %120 = sbr.rel (%p118) target = $region16
      $region15: #{unet_innermost_block.3} parent=11 // pred_region
        _
      $region16: #{unet_innermost_block.3} parent=11 // pred_fallthru
        _
      // Predicated region
      $region17: #{unet_innermost_block.3} parent=11 // pred_check
        %p121 = pneg %p77
      $region18: #{unet_innermost_block.3} parent=11 // pred_check_branch
        %123 = sbr.rel (%p121) target = $region20
      $region19: #{unet_innermost_block.3} parent=11 // pred_region
        _
      $region20: #{unet_innermost_block.3} parent=11 // pred_fallthru
        _
    $region12: #{unet_innermost_block.3} parent=5 // pred_fallthru
      _
    %p124 = scmp.lt.s32.totalorder %s9, 2
    // Predicated region
    $region21: #{unet_innermost_block.3} parent=5 // pred_check
      %p125 = pneg %p124
    $region22: #{unet_innermost_block.3} parent=5 // pred_check_branch
      %127 = sbr.rel (%p125) target = $region24
    $region23: #{unet_innermost_block.3} parent=5 // pred_region
      // Predicated region
      $region25: #{unet_innermost_block.3} parent=23 // pred_check
        %p128 = pneg %p29
      $region26: #{unet_innermost_block.3} parent=23 // pred_check_branch
        %130 = sbr.rel (%p128) target = $region28
      $region27: #{unet_innermost_block.3} parent=23 // pred_region
        %p131 = scmp.lt.s32.totalorder %s9, 1
        %s132 = scalar_select %p131, %s9, 1
        %s133 = smul.addr %s132, 32
        %s134 = smul.addr %s133, 8
        %s135 = scalar_lea.vmem %s0, %s134
      $region28: #{unet_innermost_block.3} parent=23 // pred_fallthru
        _
    $region24: #{unet_innermost_block.3} parent=5 // pred_fallthru
      _
    %p136 = scmp.le.s32.totalorder 1, %s9
    %p137 = scmp.lt.s32.totalorder %s9, 3
    %p138 = pnand %p136, %p137
    %p139 = pneg %p138
    // Predicated region
    $region29: #{unet_innermost_block.3} parent=5 // pred_check
      _
    $region30: #{unet_innermost_block.3} parent=5 // pred_check_branch
      %141 = sbr.rel (%p138) target = $region32
    $region31: #{unet_innermost_block.3} parent=5 // pred_region
      %s142 = ssub.s32 %s9, 1
      %p143 = scmp.lt.s32.totalorder %s14, 1
      %s144 = scalar_select %p143, %s14, 1
      %s145 = smul.addr %s144, 32
      %s146 = smul.addr %s145, 8
      %s147 = scalar_lea.vmem %s0, %s146
      %p148 = pneg %p35
      %p149 = pneg %p32
      %p150 = pneg %p56
      %p151 = pneg %p53
      %p152 = pneg %p77
      %p153 = pneg %p74
      %p154 = pneg %p103
      %p155 = pneg %p100
      %p156 = scmp.lt.s32.totalorder %s14, 1
      %s157 = scalar_select %p156, %s14, 1
      %s158 = smul.addr %s157, 32
      %s159 = smul.addr %s158, 8
      %s160 = scalar_lea.vmem %s3, %s159
      %p161 = scmp.lt.s32.totalorder %s14, 1
      %s162 = scalar_select %p161, %s14, 1
      %s163 = smul.addr %s162, 32
      %s164 = smul.addr %s163, 8
      %s165 = scalar_lea.vmem %s0, %s164
      %p166 = scmp.lt.s32.totalorder %s14, 1
      %s167 = scalar_select %p166, %s14, 1
      %s168 = smul.addr %s167, 32
      %s169 = smul.addr %s168, 8
      %s170 = scalar_lea.vmem %s3, %s169
      %v171 = vld [vmem:[%s165] sm:$0xff]
      %v172 = vld [vmem:[%s165 + $0x8] sm:$0xff]
      %v173 = vld [vmem:[%s165 + $0x10] sm:$0xff]
      %v174 = vld [vmem:[%s165 + $0x18] sm:$0xff]
      %v175 = vld [vmem:[%s165 + $0x20] sm:$0xff]
      %v176 = vld [vmem:[%s165 + $0x28] sm:$0xff]
      %v177 = vld [vmem:[%s165 + $0x30] sm:$0xff]
      %v178 = vld [vmem:[%s165 + $0x38] sm:$0xff]
      %v179 = vld [vmem:[%s165 + $0x40] sm:$0xff]
      %v180 = vld [vmem:[%s165 + $0x48] sm:$0xff]
      %v181 = vld [vmem:[%s165 + $0x50] sm:$0xff]
      %v182 = vld [vmem:[%s165 + $0x58] sm:$0xff]
      %v183 = vld [vmem:[%s165 + $0x60] sm:$0xff]
      %v184 = vld [vmem:[%s165 + $0x68] sm:$0xff]
      %v185 = vld [vmem:[%s165 + $0x70] sm:$0xff]
      %v186 = vld [vmem:[%s165 + $0x78] sm:$0xff]
      %v187 = vld [vmem:[%s165 + $0x80] sm:$0xff]
      %v188 = vld [vmem:[%s165 + $0x88] sm:$0xff]
      %v189 = vld [vmem:[%s165 + $0x90] sm:$0xff]
      %v190 = vld [vmem:[%s165 + $0x98] sm:$0xff]
      %v191 = vld [vmem:[%s165 + $0xa0] sm:$0xff]
      %v192 = vld [vmem:[%s165 + $0xa8] sm:$0xff]
      %v193 = vld [vmem:[%s165 + $0xb0] sm:$0xff]
      %v194 = vld [vmem:[%s165 + $0xb8] sm:$0xff]
      %v195 = vld [vmem:[%s165 + $0xc0] sm:$0xff]
      %v196 = vld [vmem:[%s165 + $0xc8] sm:$0xff]
      %v197 = vld [vmem:[%s165 + $0xd0] sm:$0xff]
      %v198 = vld [vmem:[%s165 + $0xd8] sm:$0xff]
      %v199 = vld [vmem:[%s165 + $0xe0] sm:$0xff]
      %v200 = vld [vmem:[%s165 + $0xe8] sm:$0xff]
      %v201 = vld [vmem:[%s165 + $0xf0] sm:$0xff]
      %v202 = vld [vmem:[%s165 + $0xf8] sm:$0xff]
      %v203 = vld [vmem:[%s1] sm:$0x1]
      %v205 = vlaneseq
      %v206 = vshrl.u32 %v205, 7
      %v207 = vsub.s32 0, %v206
      %v208 = vrot.slane %v203, %v207
      %v210 = vmul.f32 %v171, %v208
      %v211 = vmul.f32 %v172, %v208
      %v212 = vmul.f32 %v173, %v208
      %v213 = vmul.f32 %v174, %v208
      %v214 = vmul.f32 %v175, %v208
      %v215 = vmul.f32 %v176, %v208
      %v216 = vmul.f32 %v177, %v208
      %v217 = vmul.f32 %v178, %v208
      %v218 = vmul.f32 %v179, %v208
      %v219 = vmul.f32 %v180, %v208
      %v220 = vmul.f32 %v181, %v208
      %v221 = vmul.f32 %v182, %v208
      %v222 = vmul.f32 %v183, %v208
      %v223 = vmul.f32 %v184, %v208
      %v224 = vmul.f32 %v185, %v208
      %v225 = vmul.f32 %v186, %v208
      %v226 = vmul.f32 %v187, %v208
      %v227 = vmul.f32 %v188, %v208
      %v228 = vmul.f32 %v189, %v208
      %v229 = vmul.f32 %v190, %v208
      %v230 = vmul.f32 %v191, %v208
      %v231 = vmul.f32 %v192, %v208
      %v232 = vmul.f32 %v193, %v208
      %v233 = vmul.f32 %v194, %v208
      %v234 = vmul.f32 %v195, %v208
      %v235 = vmul.f32 %v196, %v208
      %v236 = vmul.f32 %v197, %v208
      %v237 = vmul.f32 %v198, %v208
      %v238 = vmul.f32 %v199, %v208
      %v239 = vmul.f32 %v200, %v208
      %v240 = vmul.f32 %v201, %v208
      %v241 = vmul.f32 %v202, %v208
      %v242 = vld [vmem:[%s2] sm:$0x1]
      %v244 = vlaneseq
      %v245 = vshrl.u32 %v244, 7
      %v246 = vsub.s32 0, %v245
      %v247 = vrot.slane %v242, %v246
      %v249 = vadd.f32 %v210, %v247
      %v250 = vadd.f32 %v211, %v247
      %v251 = vadd.f32 %v212, %v247
      %v252 = vadd.f32 %v213, %v247
      %v253 = vadd.f32 %v214, %v247
      %v254 = vadd.f32 %v215, %v247
      %v255 = vadd.f32 %v216, %v247
      %v256 = vadd.f32 %v217, %v247
      %v257 = vadd.f32 %v218, %v247
      %v258 = vadd.f32 %v219, %v247
      %v259 = vadd.f32 %v220, %v247
      %v260 = vadd.f32 %v221, %v247
      %v261 = vadd.f32 %v222, %v247
      %v262 = vadd.f32 %v223, %v247
      %v263 = vadd.f32 %v224, %v247
      %v264 = vadd.f32 %v225, %v247
      %v265 = vadd.f32 %v226, %v247
      %v266 = vadd.f32 %v227, %v247
      %v267 = vadd.f32 %v228, %v247
      %v268 = vadd.f32 %v229, %v247
      %v269 = vadd.f32 %v230, %v247
      %v270 = vadd.f32 %v231, %v247
      %v271 = vadd.f32 %v232, %v247
      %v272 = vadd.f32 %v233, %v247
      %v273 = vadd.f32 %v234, %v247
      %v274 = vadd.f32 %v235, %v247
      %v275 = vadd.f32 %v236, %v247
      %v276 = vadd.f32 %v237, %v247
      %v277 = vadd.f32 %v238, %v247
      %v278 = vadd.f32 %v239, %v247
      %v279 = vadd.f32 %v240, %v247
      %v280 = vadd.f32 %v241, %v247
      %vm281 = vcmask 64512
      %282 = vst.msk [vmem:[%s170] sm:$0xff] %vm281, %v249
      %283 = vst.msk [vmem:[%s170 + $0x8] sm:$0xff] %vm281, %v250
      %284 = vst.msk [vmem:[%s170 + $0x10] sm:$0xff] %vm281, %v251
      %285 = vst.msk [vmem:[%s170 + $0x18] sm:$0xff] %vm281, %v252
      %286 = vst.msk [vmem:[%s170 + $0x20] sm:$0xff] %vm281, %v253
      %287 = vst.msk [vmem:[%s170 + $0x28] sm:$0xff] %vm281, %v254
      %288 = vst.msk [vmem:[%s170 + $0x30] sm:$0xff] %vm281, %v255
      %289 = vst.msk [vmem:[%s170 + $0x38] sm:$0xff] %vm281, %v256
      %290 = vst.msk [vmem:[%s170 + $0x40] sm:$0xff] %vm281, %v257
      %291 = vst.msk [vmem:[%s170 + $0x48] sm:$0xff] %vm281, %v258
      %292 = vst.msk [vmem:[%s170 + $0x50] sm:$0xff] %vm281, %v259
      %293 = vst.msk [vmem:[%s170 + $0x58] sm:$0xff] %vm281, %v260
      %294 = vst.msk [vmem:[%s170 + $0x60] sm:$0xff] %vm281, %v261
      %295 = vst.msk [vmem:[%s170 + $0x68] sm:$0xff] %vm281, %v262
      %296 = vst.msk [vmem:[%s170 + $0x70] sm:$0xff] %vm281, %v263
      %297 = vst.msk [vmem:[%s170 + $0x78] sm:$0xff] %vm281, %v264
      %298 = vst.msk [vmem:[%s170 + $0x80] sm:$0xff] %vm281, %v265
      %299 = vst.msk [vmem:[%s170 + $0x88] sm:$0xff] %vm281, %v266
      %300 = vst.msk [vmem:[%s170 + $0x90] sm:$0xff] %vm281, %v267
      %301 = vst.msk [vmem:[%s170 + $0x98] sm:$0xff] %vm281, %v268
      %302 = vst.msk [vmem:[%s170 + $0xa0] sm:$0xff] %vm281, %v269
      %303 = vst.msk [vmem:[%s170 + $0xa8] sm:$0xff] %vm281, %v270
      %304 = vst.msk [vmem:[%s170 + $0xb0] sm:$0xff] %vm281, %v271
      %305 = vst.msk [vmem:[%s170 + $0xb8] sm:$0xff] %vm281, %v272
      %306 = vst.msk [vmem:[%s170 + $0xc0] sm:$0xff] %vm281, %v273
      %307 = vst.msk [vmem:[%s170 + $0xc8] sm:$0xff] %vm281, %v274
      %308 = vst.msk [vmem:[%s170 + $0xd0] sm:$0xff] %vm281, %v275
      %309 = vst.msk [vmem:[%s170 + $0xd8] sm:$0xff] %vm281, %v276
      %310 = vst.msk [vmem:[%s170 + $0xe0] sm:$0xff] %vm281, %v277
      %311 = vst.msk [vmem:[%s170 + $0xe8] sm:$0xff] %vm281, %v278
      %312 = vst.msk [vmem:[%s170 + $0xf0] sm:$0xff] %vm281, %v279
      %313 = vst.msk [vmem:[%s170 + $0xf8] sm:$0xff] %vm281, %v280
      %p314 = scmp.lt.s32.totalorder %s14, 1
      %s315 = scalar_select %p314, %s14, 1
      %s316 = smul.addr %s315, 32
      %s317 = smul.addr %s316, 8
      %s318 = scalar_lea.vmem %s3, %s317
      // Predicated region
      $region33: #{unet_innermost_block.3} parent=31 // pred_check
        %p319 = pneg %p100
      $region34: #{unet_innermost_block.3} parent=31 // pred_check_branch
        %321 = sbr.rel (%p319) target = $region36
      $region35: #{unet_innermost_block.3} parent=31 // pred_region
        _
      $region36: #{unet_innermost_block.3} parent=31 // pred_fallthru
        _
    $region32: #{unet_innermost_block.3} parent=5 // pred_fallthru
      _
    %p322 = scmp.le.s32.totalorder 2, %s9
    // Predicated region
    $region37: #{unet_innermost_block.3} parent=5 // pred_check
      %p323 = pneg %p322
    $region38: #{unet_innermost_block.3} parent=5 // pred_check_branch
      %325 = sbr.rel (%p323) target = $region40
    $region39: #{unet_innermost_block.3} parent=5 // pred_region
      %s326 = ssub.s32 %s9, 2
      // Predicated region
      $region41: #{unet_innermost_block.3} parent=39 // pred_check
        %p327 = pneg %p106
      $region42: #{unet_innermost_block.3} parent=39 // pred_check_branch
        %329 = sbr.rel (%p327) target = $region44
      $region43: #{unet_innermost_block.3} parent=39 // pred_region
        %p330 = scmp.lt.s32.totalorder %s15, 1
        %s331 = scalar_select %p330, %s15, 1
        %s332 = smul.addr %s331, 32
        %s333 = smul.addr %s332, 8
        %s334 = scalar_lea.vmem %s3, %s333
      $region44: #{unet_innermost_block.3} parent=39 // pred_fallthru
        _
    $region40: #{unet_innermost_block.3} parent=5 // pred_fallthru
      _
  $region6: #{unet_innermost_block.3} parent=0 // loop_footer
    %s13 = sadd.s32 1, %s9
  $region7: #{unet_innermost_block.3} parent=0 // loop_footer_branch
    %8 = sbr.rel target = $region3
  $region8: #{unet_innermost_block.3} parent=0 // loop_exit
    _

// kernel: unet_innermost_block.2
$region0: #{unet_innermost_block.2}
  #allocation0 [shape = 'u32[]', space=smem, size = 0x4, offset = 0x4, fixed_abs, tag = 'smem constant byte address 0x4 - core index']
  #allocation1 [shape = 'u32[144,128]{1,0:T(1,128)}', space=vmem, size = 0x12000, scoped, tag = 'internal scratch']
  #allocation2 [shape = 'f32[10,10,16]{2,1,0:T(8,128)}', space=vmem, size = 0x14000, scoped, tag = 'scratch operand']
  %s0 = inlined_call_operand.vmem [shape: bf16[2,64,128], index: 0, kind: input, shape index: {}]
  %s1 = inlined_call_operand.vmem [shape: bf16[128,16], index: 1, kind: input, shape index: {}]
  %s2 = inlined_call_operand.vmem [shape: bf16[16,16,8], index: 2, kind: input, shape index: {}]
  %s3 = inlined_call_operand.vmem [shape: f32[2,4,64,8], index: 3, kind: output, shape index: {0}]
  %s4 = inlined_call_operand.vmem [shape: f32[2,2,8], index: 4, kind: output, shape index: {1}]
  %5 = xla_tuple %s3, %s4
  %s6 = sld [smem:[#allocation0]]
  $region53: #{unet_innermost_block.2} parent=0
    _
  %s8 = ssub.s32 1, %s6
  %s9 = scalar_select 0, %s8, %s6
  loop: start=0, step=1, limit=4
  $region2: #{unet_innermost_block.2} parent=0 // loop_pre_header
    _
  $region3: #{unet_innermost_block.2} parent=0 // loop_header
    %s11 = sphi 0, %s15
    %p12 = scmp.ge.s32.totalorder %s11, 4
    %s21 = sphi 0, %s23
    %s24 = sphi 0, %s21
    %s25 = sphi 0, %s24
    %s41 = sphi 0, %s25
    %s45 = sphi 0, %s45
    %s47 = sphi 0, %s45
    %s48 = sphi 0, %s47
    %s62 = sphi 0, %s48
    %s66 = sphi 0, %s66
    %s68 = sphi 0, %s66
    %s69 = sphi 0, %s68
    %s83 = sphi 0, %s69
    %s89 = sphi 0, %s91
    %s92 = sphi 0, %s89
    %s93 = sphi 0, %s92
    %s109 = sphi 0, %s93
    %s115 = sphi 0, %s117
    %s118 = sphi 0, %s115
    %s119 = sphi 0, %s118
    %s135 = sphi 0, %s119
  $region4: #{unet_innermost_block.2} parent=0 // loop_header_branch
    %14 = sbr.rel (%p12) target = $region8
  $region5: #{unet_innermost_block.2} parent=0 // loop_body
    %s16 = ssub.s32 %s11, 1
    %s17 = ssub.s32 %s11, 2
    %s18 = sadd.s32 %s11, 1
    %s19 = ssub.s32 %s11, %s18
    %p20 = scmp.eq.s32.totalorder %s19, 0
    %s22 = sadd.s32 %s21, 1
    %s23 = scalar_select %p20, %s21, %s22
    %p26 = pneg %p20
    %p27 = scmp.eq.s32.totalorder %s11, 1
    %p28 = por %p26, %p27
    %p29 = scmp.ne.s32.totalorder %s21, %s24
    %p30 = scmp.eq.s32.totalorder %s11, 0
    %p31 = por %p29, %p30
    %p32 = scmp.ne.s32.totalorder %s21, %s24
    %p33 = scmp.eq.s32.totalorder %s16, 1
    %p34 = por %p32, %p33
    %p35 = scmp.ne.s32.totalorder %s24, %s25
    %p36 = scmp.eq.s32.totalorder %s16, 0
    %p37 = por %p35, %p36
    %p38 = scmp.ne.s32.totalorder %s24, %s25
    %p39 = scmp.eq.s32.totalorder %s17, 1
    %p40 = por %p38, %p39
    %p42 = scmp.ne.s32.totalorder %s25, %s41
    %p43 = scmp.eq.s32.totalorder %s17, 0
    %p44 = por %p42, %p43
    %s46 = sadd.s32 %s45, 1
    %p49 = scmp.eq.s32.totalorder %s11, 1
    %p50 = scmp.ne.s32.totalorder %s45, %s47
    %p51 = scmp.eq.s32.totalorder %s11, 0
    %p52 = por %p50, %p51
    %p53 = scmp.ne.s32.totalorder %s45, %s47
    %p54 = scmp.eq.s32.totalorder %s16, 1
    %p55 = por %p53, %p54
    %p56 = scmp.ne.s32.totalorder %s47, %s48
    %p57 = scmp.eq.s32.totalorder %s16, 0
    %p58 = por %p56, %p57
    %p59 = scmp.ne.s32.totalorder %s47, %s48
    %p60 = scmp.eq.s32.totalorder %s17, 1
    %p61 = por %p59, %p60
    %p63 = scmp.ne.s32.totalorder %s48, %s62
    %p64 = scmp.eq.s32.totalorder %s17, 0
    %p65 = por %p63, %p64
    %s67 = sadd.s32 %s66, 1
    %p70 = scmp.eq.s32.totalorder %s11, 1
    %p71 = scmp.ne.s32.totalorder %s66, %s68
    %p72 = scmp.eq.s32.totalorder %s11, 0
    %p73 = por %p71, %p72
    %p74 = scmp.ne.s32.totalorder %s66, %s68
    %p75 = scmp.eq.s32.totalorder %s16, 1
    %p76 = por %p74, %p75
    %p77 = scmp.ne.s32.totalorder %s68, %s69
    %p78 = scmp.eq.s32.totalorder %s16, 0
    %p79 = por %p77, %p78
    %p80 = scmp.ne.s32.totalorder %s68, %s69
    %p81 = scmp.eq.s32.totalorder %s17, 1
    %p82 = por %p80, %p81
    %p84 = scmp.ne.s32.totalorder %s69, %s83
    %p85 = scmp.eq.s32.totalorder %s17, 0
    %p86 = por %p84, %p85
    %s87 = ssub.s32 %s11, %s18
    %p88 = scmp.eq.s32.totalorder %s87, 0
    %s90 = sadd.s32 %s89, 1
    %s91 = scalar_select %p88, %s89, %s90
    %p94 = pneg %p88
    %p95 = scmp.eq.s32.totalorder %s11, 1
    %p96 = por %p94, %p95
    %p97 = scmp.ne.s32.totalorder %s89, %s92
    %p98 = scmp.eq.s32.totalorder %s11, 0
    %p99 = por %p97, %p98
    %p100 = scmp.ne.s32.totalorder %s89, %s92
    %p101 = scmp.eq.s32.totalorder %s16, 1
    %p102 = por %p100, %p101
    %p103 = scmp.ne.s32.totalorder %s92, %s93
    %p104 = scmp.eq.s32.totalorder %s16, 0
    %p105 = por %p103, %p104
    %p106 = scmp.ne.s32.totalorder %s92, %s93
    %p107 = scmp.eq.s32.totalorder %s17, 1
    %p108 = por %p106, %p107
    %p110 = scmp.ne.s32.totalorder %s93, %s109
    %p111 = scmp.eq.s32.totalorder %s17, 0
    %p112 = por %p110, %p111
    %s113 = ssub.s32 %s11, %s18
    %p114 = scmp.eq.s32.totalorder %s113, 0
    %s116 = sadd.s32 %s115, 1
    %s117 = scalar_select %p114, %s115, %s116
    %p120 = pneg %p114
    %p121 = scmp.eq.s32.totalorder %s11, 1
    %p122 = por %p120, %p121
    %p123 = scmp.ne.s32.totalorder %s115, %s118
    %p124 = scmp.eq.s32.totalorder %s11, 0
    %p125 = por %p123, %p124
    %p126 = scmp.ne.s32.totalorder %s115, %s118
    %p127 = scmp.eq.s32.totalorder %s16, 1
    %p128 = por %p126, %p127
    %p129 = scmp.ne.s32.totalorder %s118, %s119
    %p130 = scmp.eq.s32.totalorder %s16, 0
    %p131 = por %p129, %p130
    %p132 = scmp.ne.s32.totalorder %s118, %s119
    %p133 = scmp.eq.s32.totalorder %s17, 1
    %p134 = por %p132, %p133
    %p136 = scmp.ne.s32.totalorder %s119, %s135
    %p137 = scmp.eq.s32.totalorder %s17, 0
    %p138 = por %p136, %p137
    %p139 = scmp.le.s32.totalorder 1, %s11
    %p140 = scmp.lt.s32.totalorder %s11, 3
    %p141 = pnand %p139, %p140
    %p142 = pneg %p141
    // Predicated region
    $region9: #{unet_innermost_block.2} parent=5 // pred_check
      _
    $region10: #{unet_innermost_block.2} parent=5 // pred_check_branch
      %144 = sbr.rel (%p141) target = $region12
    $region11: #{unet_innermost_block.2} parent=5 // pred_region
      %s145 = ssub.s32 %s11, 1
      // Predicated region
      $region13: #{unet_innermost_block.2} parent=11 // pred_check
        %p146 = pneg %p58
      $region14: #{unet_innermost_block.2} parent=11 // pred_check_branch
        %148 = sbr.rel (%p146) target = $region16
      $region15: #{unet_innermost_block.2} parent=11 // pred_region
        _
      $region16: #{unet_innermost_block.2} parent=11 // pred_fallthru
        _
      // Predicated region
      $region17: #{unet_innermost_block.2} parent=11 // pred_check
        %p149 = pneg %p79
      $region18: #{unet_innermost_block.2} parent=11 // pred_check_branch
        %151 = sbr.rel (%p149) target = $region20
      $region19: #{unet_innermost_block.2} parent=11 // pred_region
        _
      $region20: #{unet_innermost_block.2} parent=11 // pred_fallthru
        _
    $region12: #{unet_innermost_block.2} parent=5 // pred_fallthru
      _
    %p152 = scmp.lt.s32.totalorder %s11, 2
    // Predicated region
    $region21: #{unet_innermost_block.2} parent=5 // pred_check
      %p153 = pneg %p152
    $region22: #{unet_innermost_block.2} parent=5 // pred_check_branch
      %155 = sbr.rel (%p153) target = $region24
    $region23: #{unet_innermost_block.2} parent=5 // pred_region
      // Predicated region
      $region25: #{unet_innermost_block.2} parent=23 // pred_check
        %p156 = pneg %p31
      $region26: #{unet_innermost_block.2} parent=23 // pred_check_branch
        %158 = sbr.rel (%p156) target = $region28
      $region27: #{unet_innermost_block.2} parent=23 // pred_region
        %p159 = scmp.lt.s32.totalorder %s11, 1
        %s160 = scalar_select %p159, %s11, 1
        %s161 = smul.addr %s160, 8
        %s162 = smul.addr %s161, 4
        %s163 = scalar_lea.vmem %s0, %s162
      $region28: #{unet_innermost_block.2} parent=23 // pred_fallthru
        _
    $region24: #{unet_innermost_block.2} parent=5 // pred_fallthru
      _
    %p164 = scmp.le.s32.totalorder 1, %s11
    %p165 = scmp.lt.s32.totalorder %s11, 3
    %p166 = pnand %p164, %p165
    %p167 = pneg %p166
    // Predicated region
    $region29: #{unet_innermost_block.2} parent=5 // pred_check
      _
    $region30: #{unet_innermost_block.2} parent=5 // pred_check_branch
      %169 = sbr.rel (%p166) target = $region32
    $region31: #{unet_innermost_block.2} parent=5 // pred_region
      %s170 = ssub.s32 %s11, 1
      %p171 = scmp.lt.s32.totalorder %s16, 1
      %s172 = scalar_select %p171, %s16, 1
      %s173 = smul.addr %s172, 8
      %s174 = smul.addr %s173, 4
      %s175 = scalar_lea.vmem %s0, %s174
      %p176 = pneg %p37
      %p177 = pneg %p34
      %p178 = pneg %p58
      %p179 = pneg %p55
      %p180 = pneg %p79
      %p181 = pneg %p76
      %p182 = pneg %p105
      %p183 = pneg %p102
      %p184 = scmp.lt.s32.totalorder %s16, 1
      %s185 = scalar_select %p184, %s16, 1
      %s186 = smul.addr %s185, 32
      %s187 = smul.addr %s186, 8
      %s188 = scalar_lea.vmem %s3, %s187
      %p189 = pneg %p131
      %p190 = pneg %p128
      %p191 = scmp.lt.s32.totalorder %s16, 1
      %s192 = scalar_select %p191, %s16, 1
      %s193 = smul.addr %s192, 2
      %s194 = scalar_lea.vmem %s4, %s193
      %p195 = scmp.lt.s32.totalorder %s16, 1
      %s196 = scalar_select %p195, %s16, 1
      %s197 = smul.addr %s196, 8
      %s198 = smul.addr %s197, 4
      %s199 = scalar_lea.vmem %s0, %s198
      %p200 = scmp.lt.s32.totalorder %s16, 1
      %s201 = scalar_select %p200, %s16, 1
      %s202 = smul.addr %s201, 32
      %s203 = smul.addr %s202, 8
      %s204 = scalar_lea.vmem %s3, %s203
      %p205 = scmp.lt.s32.totalorder %s16, 1
      %s206 = scalar_select %p205, %s16, 1
      %s207 = smul.addr %s206, 2
      %s208 = scalar_lea.vmem %s4, %s207
      %v210 = vld [vmem:[%s199] sm:$0xf]
      %v211 = vld [vmem:[%s199 + $0x4] sm:$0xf]
      %v212 = vld [vmem:[%s199 + $0x8] sm:$0xf]
      %v213 = vld [vmem:[%s199 + $0xc] sm:$0xf]
      %v214 = vld [vmem:[%s199 + $0x10] sm:$0xf]
      %v215 = vld [vmem:[%s199 + $0x14] sm:$0xf]
      %v216 = vld [vmem:[%s199 + $0x18] sm:$0xf]
      %v217 = vld [vmem:[%s199 + $0x1c] sm:$0xf]
      %v218 = vld [vmem:[%s1] sm:$0xf]
      %v219 = vld [vmem:[%s1 + $0x4] sm:$0xf]
      %v220 = vld [vmem:[%s1 + $0x8] sm:$0xf]
      %v221 = vld [vmem:[%s1 + $0xc] sm:$0xf]
      %v222 = vld [vmem:[%s1 + $0x10] sm:$0xf]
      %v223 = vld [vmem:[%s1 + $0x14] sm:$0xf]
      %v224 = vld [vmem:[%s1 + $0x18] sm:$0xf]
      %v225 = vld [vmem:[%s1 + $0x1c] sm:$0xf]
      %v226 = vld [vmem:[%s1 + $0x20] sm:$0xf]
      %v227 = vld [vmem:[%s1 + $0x24] sm:$0xf]
      %v228 = vld [vmem:[%s1 + $0x28] sm:$0xf]
      %v229 = vld [vmem:[%s1 + $0x2c] sm:$0xf]
      %v230 = vld [vmem:[%s1 + $0x30] sm:$0xf]
      %v231 = vld [vmem:[%s1 + $0x34] sm:$0xf]
      %v232 = vld [vmem:[%s1 + $0x38] sm:$0xf]
      %v233 = vld [vmem:[%s1 + $0x3c] sm:$0xf]
      %v242 = vunpack.c.l.b16 %v210
      %v243 = vunpack.c.l.b16 %v211
      %v244 = vunpack.c.l.b16 %v212
      %v245 = vunpack.c.l.b16 %v213
      %v246 = vunpack.c.l.b16 %v214
      %v247 = vunpack.c.l.b16 %v215
      %v248 = vunpack.c.l.b16 %v216
      %v249 = vunpack.c.l.b16 %v217
      %v250 = vpack.c.b16 %v243, %v242
      %v251 = vpack.c.b16 %v245, %v244
      %v252 = vpack.c.b16 %v247, %v246
      %v253 = vpack.c.b16 %v249, %v248
      %v274 = vunpack.c.l.b16 %v218
      %v275 = vunpack.c.l.b16 %v219
      %v276 = vunpack.c.l.b16 %v220
      %v277 = vunpack.c.l.b16 %v221
      %v278 = vunpack.c.l.b16 %v222
      %v279 = vunpack.c.l.b16 %v223
      %v280 = vunpack.c.l.b16 %v224
      %v281 = vunpack.c.l.b16 %v225
      %v282 = vunpack.c.l.b16 %v226
      %v283 = vunpack.c.l.b16 %v227
      %v284 = vunpack.c.l.b16 %v228
      %v285 = vunpack.c.l.b16 %v229
      %v286 = vunpack.c.l.b16 %v230
      %v287 = vunpack.c.l.b16 %v231
      %v288 = vunpack.c.l.b16 %v232
      %v289 = vunpack.c.l.b16 %v233
      %v290 = vpack.c.b16 %v275, %v274
      %v291 = vpack.c.b16 %v277, %v276
      %v292 = vpack.c.b16 %v279, %v278
      %v293 = vpack.c.b16 %v281, %v280
      %v294 = vpack.c.b16 %v283, %v282
      %v295 = vpack.c.b16 %v285, %v284
      %v296 = vpack.c.b16 %v287, %v286
      %v297 = vpack.c.b16 %v289, %v288
      %306 = vmatprep.subr.bf16.mxu0 0
      %307 = vmatpush1.bf16.msra.mxu0 %v297
      %308 = vmatprep.subr.bf16.mxu0 0
      %309 = vmatpush1.bf16.msra.mxu0 %v296
      %310 = vmatprep.subr.bf16.mxu0 0
      %311 = vmatpush1.bf16.msra.mxu0 %v295
      %312 = vmatprep.subr.bf16.mxu0 0
      %313 = vmatpush1.bf16.msra.mxu0 %v294
      %314 = vmatprep.subr.bf16.mxu0 0
      %315 = vmatpush1.bf16.msra.mxu0 %v293
      %316 = vmatprep.subr.bf16.mxu0 0
      %317 = vmatpush1.bf16.msra.mxu0 %v292
      %318 = vmatprep.subr.bf16.mxu0 0
      %319 = vmatpush1.bf16.msra.mxu0 %v291
      %320 = vmatprep.subr.bf16.mxu0 0
      %321 = vmatpush1.bf16.msra.mxu0 %v290
      %322 = vmatprep.subr.bf16.mxu0 0
      %323 = vmatpush2.bf16.msra.mxu0 0
      %324 = vmatprep.subr.bf16.mxu0 0
      %325 = vmatpush2.bf16.msra.mxu0 0
      %326 = vmatprep.subr.bf16.mxu0 0
      %327 = vmatpush2.bf16.msra.mxu0 0
      %328 = vmatprep.subr.bf16.mxu0 0
      %329 = vmatpush2.bf16.msra.mxu0 0
      %330 = vmatprep.subr.bf16.mxu0 0
      %331 = vmatpush2.bf16.msra.mxu0 0
      %332 = vmatprep.subr.bf16.mxu0 0
      %333 = vmatpush2.bf16.msra.mxu0 0
      %334 = vmatprep.subr.bf16.mxu0 0
      %335 = vmatpush2.bf16.msra.mxu0 0
      %336 = vmatprep.subr.bf16.mxu0 0
      %337 = vmatpush2.bf16.msra.mxu0 0
      %338 = vmatprep.mubr.bf16.mxu0 0
      %339 = vmatmul.mubr.bf16.gmra.mxu0 %v250
      %v340 = vpop.f32.mrf.mxu0
      %v341 = vadd.f32 0.0, %v340
      %v342 = vpop.f32.mrf.mxu0
      %v343 = vpop.f32.mrf.mxu0
      %v344 = vadd.f32 0.0, %v343
      %v345 = vpop.f32.mrf.mxu0
      %346 = vmatprep.mubr.bf16.mxu0 0
      %347 = vmatmul.mubr.bf16.gmra.mxu0 %v251
      %v348 = vpop.f32.mrf.mxu0
      %v349 = vadd.f32 0.0, %v348
      %v350 = vpop.f32.mrf.mxu0
      %v351 = vpop.f32.mrf.mxu0
      %v352 = vadd.f32 0.0, %v351
      %v353 = vpop.f32.mrf.mxu0
      %354 = vmatprep.mubr.bf16.mxu0 0
      %355 = vmatmul.mubr.bf16.gmra.mxu0 %v252
      %v356 = vpop.f32.mrf.mxu0
      %v357 = vadd.f32 0.0, %v356
      %v358 = vpop.f32.mrf.mxu0
      %v359 = vpop.f32.mrf.mxu0
      %v360 = vadd.f32 0.0, %v359
      %v361 = vpop.f32.mrf.mxu0
      %362 = vmatprep.mubr.bf16.mxu0 0
      %363 = vmatmul.mubr.bf16.gmra.mxu0 %v253
      %v364 = vpop.f32.mrf.mxu0
      %v365 = vadd.f32 0.0, %v364
      %v366 = vpop.f32.mrf.mxu0
      %v367 = vpop.f32.mrf.mxu0
      %v368 = vadd.f32 0.0, %v367
      %v369 = vpop.f32.mrf.mxu0
      %370 = vdwg.mxu0
      %v371 = vmax.f32 %v341, 0.0
      %v372 = vmax.f32 %v344, 0.0
      %v373 = vmax.f32 %v349, 0.0
      %v374 = vmax.f32 %v352, 0.0
      %v375 = vmax.f32 %v357, 0.0
      %v376 = vmax.f32 %v360, 0.0
      %v377 = vmax.f32 %v365, 0.0
      %v378 = vmax.f32 %v368, 0.0
      %vm379 = vcmask 130048
      %380 = vst.msk [vmem:[#allocation2] sm:$0xff] %vm379, 0.0
      %vm381 = vcmask 123904
      %382 = vst.msk [vmem:[#allocation2 + $0x8] sm:$0x3] %vm381, 0.0
      %383 = vst.msk [vmem:[#allocation2 + $0x10] sm:$0xff] %vm379, 0.0
      %384 = vst.msk [vmem:[#allocation2 + $0x18] sm:$0x3] %vm381, 0.0
      %385 = vst.msk [vmem:[#allocation2 + $0x20] sm:$0xff] %vm379, 0.0
      %386 = vst.msk [vmem:[#allocation2 + $0x28] sm:$0x3] %vm381, 0.0
      %387 = vst.msk [vmem:[#allocation2 + $0x30] sm:$0xff] %vm379, 0.0
      %388 = vst.msk [vmem:[#allocation2 + $0x38] sm:$0x3] %vm381, 0.0
      %389 = vst.msk [vmem:[#allocation2 + $0x40] sm:$0xff] %vm379, 0.0
      %390 = vst.msk [vmem:[#allocation2 + $0x48] sm:$0x3] %vm381, 0.0
      %391 = vst.msk [vmem:[#allocation2 + $0x50] sm:$0xff] %vm379, 0.0
      %392 = vst.msk [vmem:[#allocation2 + $0x58] sm:$0x3] %vm381, 0.0
      %393 = vst.msk [vmem:[#allocation2 + $0x60] sm:$0xff] %vm379, 0.0
      %394 = vst.msk [vmem:[#allocation2 + $0x68] sm:$0x3] %vm381, 0.0
      %395 = vst.msk [vmem:[#allocation2 + $0x70] sm:$0xff] %vm379, 0.0
      %396 = vst.msk [vmem:[#allocation2 + $0x78] sm:$0x3] %vm381, 0.0
      %397 = vst.msk [vmem:[#allocation2 + $0x80] sm:$0xff] %vm379, 0.0
      %398 = vst.msk [vmem:[#allocation2 + $0x88] sm:$0x3] %vm381, 0.0
      %399 = vst.msk [vmem:[#allocation2 + $0x90] sm:$0xff] %vm379, 0.0
      %400 = vst.msk [vmem:[#allocation2 + $0x98] sm:$0x3] %vm381, 0.0
      %s401 = scalar_lea.vmem [#allocation2], 16
      %402 = vst.msk [vmem:[%s401 + $0x1] sm:$0xff] %vm379, %v371
      %403 = vst.msk [vmem:[%s401 + $0x11] sm:$0xff] %vm379, %v372
      %404 = vst.msk [vmem:[%s401 + $0x21] sm:$0xff] %vm379, %v373
      %405 = vst.msk [vmem:[%s401 + $0x31] sm:$0xff] %vm379, %v374
      %406 = vst.msk [vmem:[%s401 + $0x41] sm:$0xff] %vm379, %v375
      %407 = vst.msk [vmem:[%s401 + $0x51] sm:$0xff] %vm379, %v376
      %408 = vst.msk [vmem:[%s401 + $0x61] sm:$0xff] %vm379, %v377
      %409 = vst.msk [vmem:[%s401 + $0x71] sm:$0xff] %vm379, %v378
      %v410 = vld [vmem:[#allocation2] sm:$0xff]
      %v411 = vld [vmem:[#allocation2 + $0x10] sm:$0xff]
      %v412 = vld [vmem:[#allocation2 + $0x20] sm:$0xff]
      %v413 = vld [vmem:[#allocation2 + $0x30] sm:$0xff]
      %v414 = vld [vmem:[#allocation2 + $0x40] sm:$0xff]
      %v415 = vld [vmem:[#allocation2 + $0x50] sm:$0xff]
      %v416 = vld [vmem:[#allocation2 + $0x60] sm:$0xff]
      %v417 = vld [vmem:[#allocation2 + $0x70] sm:$0xff]
      %v418 = vpack.c.bf16 %v411, %v410
      %v419 = vpack.c.bf16 %v413, %v412
      %v420 = vpack.c.bf16 %v415, %v414
      %v421 = vpack.c.bf16 %v417, %v416
      %v422 = vld [vmem:[%s2] sm:$0xf]
      %v423 = vld [vmem:[%s2 + $0x4] sm:$0xf]
      %v424 = vld [vmem:[#allocation2 + $0x1] sm:$0xff]
      %v425 = vld [vmem:[#allocation2 + $0x11] sm:$0xff]
      %v426 = vld [vmem:[#allocation2 + $0x21] sm:$0xff]
      %v427 = vld [vmem:[#allocation2 + $0x31] sm:$0xff]
      %v428 = vld [vmem:[#allocation2 + $0x41] sm:$0xff]
      %v429 = vld [vmem:[#allocation2 + $0x51] sm:$0xff]
      %v430 = vld [vmem:[#allocation2 + $0x61] sm:$0xff]
      %v431 = vld [vmem:[#allocation2 + $0x71] sm:$0xff]
      %v432 = vpack.c.bf16 %v425, %v424
      %v433 = vpack.c.bf16 %v427, %v426
      %v434 = vpack.c.bf16 %v429, %v428
      %v435 = vpack.c.bf16 %v431, %v430
      %s436 = scalar_lea.vmem %s2, 8
      %v437 = vld [vmem:[%s436] sm:$0xf]
      %v438 = vld [vmem:[%s436 + $0x4] sm:$0xf]
      %v441 = vunpack.c.l.b16 %v437
      %v442 = vunpack.c.l.b16 %v438
      %v443 = vpack.c.b16 %v442, %v441
      %v446 = vsel %vm379, %v432, 0
      %v449 = vsel %vm379, %v433, 0
      %v452 = vsel %vm379, %v434, 0
      %v455 = vsel %vm379, %v435, 0
      %457 = vmatprep.subr.bf16.mxu0 0
      %458 = vmatpush1.bf16.msra.mxu0 0
      %459 = vmatprep.subr.bf16.mxu0 0
      %460 = vmatpush1.bf16.msra.mxu0 0
      %461 = vmatprep.subr.bf16.mxu0 0
      %462 = vmatpush1.bf16.msra.mxu0 0
      %463 = vmatprep.subr.bf16.mxu0 0
      %464 = vmatpush1.bf16.msra.mxu0 0
      %465 = vmatprep.subr.bf16.mxu0 0
      %466 = vmatpush1.bf16.msra.mxu0 0
      %467 = vmatprep.subr.bf16.mxu0 0
      %468 = vmatpush1.bf16.msra.mxu0 0
      %469 = vmatprep.subr.bf16.mxu0 0
      %470 = vmatpush1.bf16.msra.mxu0 0
      %471 = vmatprep.subr.bf16.mxu0 0
      %472 = vmatpush1.bf16.msra.mxu0 %v443
      %473 = vmatprep.subr.bf16.mxu0 0
      %474 = vmatpush2.bf16.msra.mxu0 0
      %475 = vmatprep.subr.bf16.mxu0 0
      %476 = vmatpush2.bf16.msra.mxu0 0
      %477 = vmatprep.subr.bf16.mxu0 0
      %478 = vmatpush2.bf16.msra.mxu0 0
      %479 = vmatprep.subr.bf16.mxu0 0
      %480 = vmatpush2.bf16.msra.mxu0 0
      %481 = vmatprep.subr.bf16.mxu0 0
      %482 = vmatpush2.bf16.msra.mxu0 0
      %483 = vmatprep.subr.bf16.mxu0 0
      %484 = vmatpush2.bf16.msra.mxu0 0
      %485 = vmatprep.subr.bf16.mxu0 0
      %486 = vmatpush2.bf16.msra.mxu0 0
      %487 = vmatprep.subr.bf16.mxu0 0
      %488 = vmatpush2.bf16.msra.mxu0 0
      %489 = vmatprep.mubr.bf16.mxu0 0
      %490 = vmatmul.mubr.bf16.gmra.mxu0 %v446
      %v491 = vpop.f32.mrf.mxu0
      %v492 = vadd.f32 0.0, %v491
      %v493 = vpop.f32.mrf.mxu0
      %v494 = vpop.f32.mrf.mxu0
      %v495 = vadd.f32 0.0, %v494
      %v496 = vpop.f32.mrf.mxu0
      %497 = vmatprep.mubr.bf16.mxu0 0
      %498 = vmatmul.mubr.bf16.gmra.mxu0 %v449
      %v499 = vpop.f32.mrf.mxu0
      %v500 = vadd.f32 0.0, %v499
      %v501 = vpop.f32.mrf.mxu0
      %v502 = vpop.f32.mrf.mxu0
      %v503 = vadd.f32 0.0, %v502
      %v504 = vpop.f32.mrf.mxu0
      %505 = vmatprep.mubr.bf16.mxu0 0
      %506 = vmatmul.mubr.bf16.gmra.mxu0 %v452
      %v507 = vpop.f32.mrf.mxu0
      %v508 = vadd.f32 0.0, %v507
      %v509 = vpop.f32.mrf.mxu0
      %v510 = vpop.f32.mrf.mxu0
      %v511 = vadd.f32 0.0, %v510
      %v512 = vpop.f32.mrf.mxu0
      %513 = vmatprep.mubr.bf16.mxu0 0
      %514 = vmatmul.mubr.bf16.gmra.mxu0 %v455
      %v515 = vpop.f32.mrf.mxu0
      %v516 = vadd.f32 0.0, %v515
      %v517 = vpop.f32.mrf.mxu0
      %v518 = vpop.f32.mrf.mxu0
      %v519 = vadd.f32 0.0, %v518
      %v520 = vpop.f32.mrf.mxu0
      %521 = vdwg.mxu0
      %v524 = vunpack.c.l.b16 %v422
      %v525 = vunpack.c.l.b16 %v423
      %v526 = vpack.c.b16 %v525, %v524
      %v529 = vsel %vm379, %v418, 0
      %v532 = vsel %vm379, %v419, 0
      %v535 = vsel %vm379, %v420, 0
      %v538 = vsel %vm379, %v421, 0
      %540 = vmatprep.subr.bf16.mxu0 0
      %541 = vmatpush1.bf16.msra.mxu0 0
      %542 = vmatprep.subr.bf16.mxu0 0
      %543 = vmatpush1.bf16.msra.mxu0 0
      %544 = vmatprep.subr.bf16.mxu0 0
      %545 = vmatpush1.bf16.msra.mxu0 0
      %546 = vmatprep.subr.bf16.mxu0 0
      %547 = vmatpush1.bf16.msra.mxu0 0
      %548 = vmatprep.subr.bf16.mxu0 0
      %549 = vmatpush1.bf16.msra.mxu0 0
      %550 = vmatprep.subr.bf16.mxu0 0
      %551 = vmatpush1.bf16.msra.mxu0 0
      %552 = vmatprep.subr.bf16.mxu0 0
      %553 = vmatpush1.bf16.msra.mxu0 0
      %554 = vmatprep.subr.bf16.mxu0 0
      %555 = vmatpush1.bf16.msra.mxu0 %v526
      %556 = vmatprep.subr.bf16.mxu0 0
      %557 = vmatpush2.bf16.msra.mxu0 0
      %558 = vmatprep.subr.bf16.mxu0 0
      %559 = vmatpush2.bf16.msra.mxu0 0
      %560 = vmatprep.subr.bf16.mxu0 0
      %561 = vmatpush2.bf16.msra.mxu0 0
      %562 = vmatprep.subr.bf16.mxu0 0
      %563 = vmatpush2.bf16.msra.mxu0 0
      %564 = vmatprep.subr.bf16.mxu0 0
      %565 = vmatpush2.bf16.msra.mxu0 0
      %566 = vmatprep.subr.bf16.mxu0 0
      %567 = vmatpush2.bf16.msra.mxu0 0
      %568 = vmatprep.subr.bf16.mxu0 0
      %569 = vmatpush2.bf16.msra.mxu0 0
      %570 = vmatprep.subr.bf16.mxu0 0
      %571 = vmatpush2.bf16.msra.mxu0 0
      %572 = vmatprep.mubr.bf16.mxu0 0
      %573 = vmatmul.mubr.bf16.gmra.mxu0 %v529
      %v574 = vpop.f32.mrf.mxu0
      %v575 = vadd.f32 %v492, %v574
      %v576 = vpop.f32.mrf.mxu0
      %v577 = vpop.f32.mrf.mxu0
      %v578 = vadd.f32 %v495, %v577
      %v579 = vpop.f32.mrf.mxu0
      %580 = vmatprep.mubr.bf16.mxu0 0
      %581 = vmatmul.mubr.bf16.gmra.mxu0 %v532
      %v582 = vpop.f32.mrf.mxu0
      %v583 = vadd.f32 %v500, %v582
      %v584 = vpop.f32.mrf.mxu0
      %v585 = vpop.f32.mrf.mxu0
      %v586 = vadd.f32 %v503, %v585
      %v587 = vpop.f32.mrf.mxu0
      %588 = vmatprep.mubr.bf16.mxu0 0
      %589 = vmatmul.mubr.bf16.gmra.mxu0 %v535
      %v590 = vpop.f32.mrf.mxu0
      %v591 = vadd.f32 %v508, %v590
      %v592 = vpop.f32.mrf.mxu0
      %v593 = vpop.f32.mrf.mxu0
      %v594 = vadd.f32 %v511, %v593
      %v595 = vpop.f32.mrf.mxu0
      %596 = vmatprep.mubr.bf16.mxu0 0
      %597 = vmatmul.mubr.bf16.gmra.mxu0 %v538
      %v598 = vpop.f32.mrf.mxu0
      %v599 = vadd.f32 %v516, %v598
      %v600 = vpop.f32.mrf.mxu0
      %v601 = vpop.f32.mrf.mxu0
      %v602 = vadd.f32 %v519, %v601
      %v603 = vpop.f32.mrf.mxu0
      %604 = vdwg.mxu0
      %v605 = vld [vmem:[%s401] sm:$0xff]
      %v606 = vld [vmem:[%s401 + $0x10] sm:$0xff]
      %v607 = vld [vmem:[%s401 + $0x20] sm:$0xff]
      %v608 = vld [vmem:[%s401 + $0x30] sm:$0xff]
      %v609 = vld [vmem:[%s401 + $0x40] sm:$0xff]
      %v610 = vld [vmem:[%s401 + $0x50] sm:$0xff]
      %v611 = vld [vmem:[%s401 + $0x60] sm:$0xff]
      %v612 = vld [vmem:[%s401 + $0x70] sm:$0xff]
      %v613 = vpack.c.bf16 %v606, %v605
      %v614 = vpack.c.bf16 %v608, %v607
      %v615 = vpack.c.bf16 %v610, %v609
      %v616 = vpack.c.bf16 %v612, %v611
      %s617 = scalar_lea.vmem %s2, 16
      %v618 = vld [vmem:[%s617] sm:$0xf]
      %v619 = vld [vmem:[%s617 + $0x4] sm:$0xf]
      %v622 = vunpack.c.l.b16 %v618
      %v623 = vunpack.c.l.b16 %v619
      %v624 = vpack.c.b16 %v623, %v622
      %v627 = vsel %vm379, %v613, 0
      %v630 = vsel %vm379, %v614, 0
      %v633 = vsel %vm379, %v615, 0
      %v636 = vsel %vm379, %v616, 0
      %638 = vmatprep.subr.bf16.mxu0 0
      %639 = vmatpush1.bf16.msra.mxu0 0
      %640 = vmatprep.subr.bf16.mxu0 0
      %641 = vmatpush1.bf16.msra.mxu0 0
      %642 = vmatprep.subr.bf16.mxu0 0
      %643 = vmatpush1.bf16.msra.mxu0 0
      %644 = vmatprep.subr.bf16.mxu0 0
      %645 = vmatpush1.bf16.msra.mxu0 0
      %646 = vmatprep.subr.bf16.mxu0 0
      %647 = vmatpush1.bf16.msra.mxu0 0
      %648 = vmatprep.subr.bf16.mxu0 0
      %649 = vmatpush1.bf16.msra.mxu0 0
      %650 = vmatprep.subr.bf16.mxu0 0
      %651 = vmatpush1.bf16.msra.mxu0 0
      %652 = vmatprep.subr.bf16.mxu0 0
      %653 = vmatpush1.bf16.msra.mxu0 %v624
      %654 = vmatprep.subr.bf16.mxu0 0
      %655 = vmatpush2.bf16.msra.mxu0 0
      %656 = vmatprep.subr.bf16.mxu0 0
      %657 = vmatpush2.bf16.msra.mxu0 0
      %658 = vmatprep.subr.bf16.mxu0 0
      %659 = vmatpush2.bf16.msra.mxu0 0
      %660 = vmatprep.subr.bf16.mxu0 0
      %661 = vmatpush2.bf16.msra.mxu0 0
      %662 = vmatprep.subr.bf16.mxu0 0
      %663 = vmatpush2.bf16.msra.mxu0 0
      %664 = vmatprep.subr.bf16.mxu0 0
      %665 = vmatpush2.bf16.msra.mxu0 0
      %666 = vmatprep.subr.bf16.mxu0 0
      %667 = vmatpush2.bf16.msra.mxu0 0
      %668 = vmatprep.subr.bf16.mxu0 0
      %669 = vmatpush2.bf16.msra.mxu0 0
      %670 = vmatprep.mubr.bf16.mxu0 0
      %671 = vmatmul.mubr.bf16.gmra.mxu0 %v627
      %v672 = vpop.f32.mrf.mxu0
      %v673 = vadd.f32 0.0, %v672
      %v674 = vpop.f32.mrf.mxu0
      %v675 = vpop.f32.mrf.mxu0
      %v676 = vadd.f32 0.0, %v675
      %v677 = vpop.f32.mrf.mxu0
      %678 = vmatprep.mubr.bf16.mxu0 0
      %679 = vmatmul.mubr.bf16.gmra.mxu0 %v630
      %v680 = vpop.f32.mrf.mxu0
      %v681 = vadd.f32 0.0, %v680
      %v682 = vpop.f32.mrf.mxu0
      %v683 = vpop.f32.mrf.mxu0
      %v684 = vadd.f32 0.0, %v683
      %v685 = vpop.f32.mrf.mxu0
      %686 = vmatprep.mubr.bf16.mxu0 0
      %687 = vmatmul.mubr.bf16.gmra.mxu0 %v633
      %v688 = vpop.f32.mrf.mxu0
      %v689 = vadd.f32 0.0, %v688
      %v690 = vpop.f32.mrf.mxu0
      %v691 = vpop.f32.mrf.mxu0
      %v692 = vadd.f32 0.0, %v691
      %v693 = vpop.f32.mrf.mxu0
      %694 = vmatprep.mubr.bf16.mxu0 0
      %695 = vmatmul.mubr.bf16.gmra.mxu0 %v636
      %v696 = vpop.f32.mrf.mxu0
      %v697 = vadd.f32 0.0, %v696
      %v698 = vpop.f32.mrf.mxu0
      %v699 = vpop.f32.mrf.mxu0
      %v700 = vadd.f32 0.0, %v699
      %v701 = vpop.f32.mrf.mxu0
      %702 = vdwg.mxu0
      %v703 = vadd.f32 %v575, %v673
      %v704 = vadd.f32 %v578, %v676
      %v705 = vadd.f32 %v583, %v681
      %v706 = vadd.f32 %v586, %v684
      %v707 = vadd.f32 %v591, %v689
      %v708 = vadd.f32 %v594, %v692
      %v709 = vadd.f32 %v599, %v697
      %v710 = vadd.f32 %v602, %v700
      %v711 = vld [vmem:[%s401 + $0x1] sm:$0xff]
      %v712 = vld [vmem:[%s401 + $0x11] sm:$0xff]
      %v713 = vld [vmem:[%s401 + $0x21] sm:$0xff]
      %v714 = vld [vmem:[%s401 + $0x31] sm:$0xff]
      %v715 = vld [vmem:[%s401 + $0x41] sm:$0xff]
      %v716 = vld [vmem:[%s401 + $0x51] sm:$0xff]
      %v717 = vld [vmem:[%s401 + $0x61] sm:$0xff]
      %v718 = vld [vmem:[%s401 + $0x71] sm:$0xff]
      %v719 = vpack.c.bf16 %v712, %v711
      %v720 = vpack.c.bf16 %v714, %v713
      %v721 = vpack.c.bf16 %v716, %v715
      %v722 = vpack.c.bf16 %v718, %v717
      %s723 = scalar_lea.vmem %s2, 24
      %v724 = vld [vmem:[%s723] sm:$0xf]
      %v725 = vld [vmem:[%s723 + $0x4] sm:$0xf]
      %v728 = vunpack.c.l.b16 %v724
      %v729 = vunpack.c.l.b16 %v725
      %v730 = vpack.c.b16 %v729, %v728
      %v733 = vsel %vm379, %v719, 0
      %v736 = vsel %vm379, %v720, 0
      %v739 = vsel %vm379, %v721, 0
      %v742 = vsel %vm379, %v722, 0
      %744 = vmatprep.subr.bf16.mxu0 0
      %745 = vmatpush1.bf16.msra.mxu0 0
      %746 = vmatprep.subr.bf16.mxu0 0
      %747 = vmatpush1.bf16.msra.mxu0 0
      %748 = vmatprep.subr.bf16.mxu0 0
      %749 = vmatpush1.bf16.msra.mxu0 0
      %750 = vmatprep.subr.bf16.mxu0 0
      %751 = vmatpush1.bf16.msra.mxu0 0
      %752 = vmatprep.subr.bf16.mxu0 0
      %753 = vmatpush1.bf16.msra.mxu0 0
      %754 = vmatprep.subr.bf16.mxu0 0
      %755 = vmatpush1.bf16.msra.mxu0 0
      %756 = vmatprep.subr.bf16.mxu0 0
      %757 = vmatpush1.bf16.msra.mxu0 0
      %758 = vmatprep.subr.bf16.mxu0 0
      %759 = vmatpush1.bf16.msra.mxu0 %v730
      %760 = vmatprep.subr.bf16.mxu0 0
      %761 = vmatpush2.bf16.msra.mxu0 0
      %762 = vmatprep.subr.bf16.mxu0 0
      %763 = vmatpush2.bf16.msra.mxu0 0
      %764 = vmatprep.subr.bf16.mxu0 0
      %765 = vmatpush2.bf16.msra.mxu0 0
      %766 = vmatprep.subr.bf16.mxu0 0
      %767 = vmatpush2.bf16.msra.mxu0 0
      %768 = vmatprep.subr.bf16.mxu0 0
      %769 = vmatpush2.bf16.msra.mxu0 0
      %770 = vmatprep.subr.bf16.mxu0 0
      %771 = vmatpush2.bf16.msra.mxu0 0
      %772 = vmatprep.subr.bf16.mxu0 0
      %773 = vmatpush2.bf16.msra.mxu0 0
      %774 = vmatprep.subr.bf16.mxu0 0
      %775 = vmatpush2.bf16.msra.mxu0 0
      %776 = vmatprep.mubr.bf16.mxu0 0
      %777 = vmatmul.mubr.bf16.gmra.mxu0 %v733
      %v778 = vpop.f32.mrf.mxu0
      %v779 = vadd.f32 0.0, %v778
      %v780 = vpop.f32.mrf.mxu0
      %v781 = vpop.f32.mrf.mxu0
      %v782 = vadd.f32 0.0, %v781
      %v783 = vpop.f32.mrf.mxu0
      %784 = vmatprep.mubr.bf16.mxu0 0
      %785 = vmatmul.mubr.bf16.gmra.mxu0 %v736
      %v786 = vpop.f32.mrf.mxu0
      %v787 = vadd.f32 0.0, %v786
      %v788 = vpop.f32.mrf.mxu0
      %v789 = vpop.f32.mrf.mxu0
      %v790 = vadd.f32 0.0, %v789
      %v791 = vpop.f32.mrf.mxu0
      %792 = vmatprep.mubr.bf16.mxu0 0
      %793 = vmatmul.mubr.bf16.gmra.mxu0 %v739
      %v794 = vpop.f32.mrf.mxu0
      %v795 = vadd.f32 0.0, %v794
      %v796 = vpop.f32.mrf.mxu0
      %v797 = vpop.f32.mrf.mxu0
      %v798 = vadd.f32 0.0, %v797
      %v799 = vpop.f32.mrf.mxu0
      %800 = vmatprep.mubr.bf16.mxu0 0
      %801 = vmatmul.mubr.bf16.gmra.mxu0 %v742
      %v802 = vpop.f32.mrf.mxu0
      %v803 = vadd.f32 0.0, %v802
      %v804 = vpop.f32.mrf.mxu0
      %v805 = vpop.f32.mrf.mxu0
      %v806 = vadd.f32 0.0, %v805
      %v807 = vpop.f32.mrf.mxu0
      %808 = vdwg.mxu0
      %v809 = vadd.f32 %v703, %v779
      %v810 = vadd.f32 %v704, %v782
      %v811 = vadd.f32 %v705, %v787
      %v812 = vadd.f32 %v706, %v790
      %v813 = vadd.f32 %v707, %v795
      %v814 = vadd.f32 %v708, %v798
      %v815 = vadd.f32 %v709, %v803
      %v816 = vadd.f32 %v710, %v806
      %vm817 = vcmask 64512
      %818 = vst.msk [vmem:[%s204] sm:$0xff] %vm817, %v809
      %819 = vst.msk [vmem:[%s204 + $0x8] sm:$0xff] %vm817, %v810
      %820 = vst.msk [vmem:[%s204 + $0x10] sm:$0xff] %vm817, %v811
      %821 = vst.msk [vmem:[%s204 + $0x18] sm:$0xff] %vm817, %v812
      %822 = vst.msk [vmem:[%s204 + $0x20] sm:$0xff] %vm817, %v813
      %823 = vst.msk [vmem:[%s204 + $0x28] sm:$0xff] %vm817, %v814
      %824 = vst.msk [vmem:[%s204 + $0x30] sm:$0xff] %vm817, %v815
      %825 = vst.msk [vmem:[%s204 + $0x38] sm:$0xff] %vm817, %v816
      %v826 = vsel %vm817, %v809, 0.0
      %v827 = vsel %vm817, %v810, 0.0
      %v828 = vadd.f32 %v826, %v827
      %v829 = vsel %vm817, %v811, 0.0
      %v830 = vadd.f32 %v828, %v829
      %v831 = vsel %vm817, %v812, 0.0
      %v832 = vadd.f32 %v830, %v831
      %v833 = vsel %vm817, %v813, 0.0
      %v834 = vadd.f32 %v832, %v833
      %v835 = vsel %vm817, %v814, 0.0
      %v836 = vadd.f32 %v834, %v835
      %v837 = vsel %vm817, %v815, 0.0
      %v838 = vadd.f32 %v836, %v837
      %v839 = vsel %vm817, %v816, 0.0
      %v840 = vadd.f32 %v838, %v839
      %v841 = vrot.slane %v840, 4
      %v842 = vadd.f32 %v840, %v841
      %v843 = vrot.slane %v842, 2
      %v844 = vadd.f32 %v842, %v843
      %v845 = vrot.slane %v844, 1
      %v846 = vadd.f32 %v844, %v845
      %v847 = vadd.f32 %v846, 0.0
      %v848 = vmul.f32 %v809, %v809
      %v849 = vmul.f32 %v810, %v810
      %v850 = vmul.f32 %v811, %v811
      %v851 = vmul.f32 %v812, %v812
      %v852 = vmul.f32 %v813, %v813
      %v853 = vmul.f32 %v814, %v814
      %v854 = vmul.f32 %v815, %v815
      %v855 = vmul.f32 %v816, %v816
      %v856 = vsel %vm817, %v848, 0.0
      %v857 = vsel %vm817, %v849, 0.0
      %v858 = vadd.f32 %v856, %v857
      %v859 = vsel %vm817, %v850, 0.0
      %v860 = vadd.f32 %v858, %v859
      %v861 = vsel %vm817, %v851, 0.0
      %v862 = vadd.f32 %v860, %v861
      %v863 = vsel %vm817, %v852, 0.0
      %v864 = vadd.f32 %v862, %v863
      %v865 = vsel %vm817, %v853, 0.0
      %v866 = vadd.f32 %v864, %v865
      %v867 = vsel %vm817, %v854, 0.0
      %v868 = vadd.f32 %v866, %v867
      %v869 = vsel %vm817, %v855, 0.0
      %v870 = vadd.f32 %v868, %v869
      %v871 = vrot.slane %v870, 4
      %v872 = vadd.f32 %v870, %v871
      %v873 = vrot.slane %v872, 2
      %v874 = vadd.f32 %v872, %v873
      %v875 = vrot.slane %v874, 1
      %v876 = vadd.f32 %v874, %v875
      %v877 = vadd.f32 %v876, 0.0
      %v878 = vld [vmem:[#allocation2 + $0x1] sm:$0xff]
      %v879 = vld [vmem:[#allocation2 + $0x11] sm:$0xff]
      %v880 = vld [vmem:[#allocation2 + $0x21] sm:$0xff]
      %v881 = vld [vmem:[#allocation2 + $0x31] sm:$0xff]
      %v882 = vld [vmem:[#allocation2 + $0x41] sm:$0xff]
      %v883 = vld [vmem:[#allocation2 + $0x51] sm:$0xff]
      %v884 = vld [vmem:[#allocation2 + $0x61] sm:$0xff]
      %v885 = vld [vmem:[#allocation2 + $0x71] sm:$0xff]
      %v886 = vpack.c.bf16 %v879, %v878
      %v887 = vpack.c.bf16 %v881, %v880
      %v888 = vpack.c.bf16 %v883, %v882
      %v889 = vpack.c.bf16 %v885, %v884
      %s890 = scalar_lea.vmem %s2, 32
      %v891 = vld [vmem:[%s890] sm:$0xf]
      %v892 = vld [vmem:[%s890 + $0x4] sm:$0xf]
      %v893 = vld [vmem:[#allocation2 + $0x2] sm:$0xff]
      %v894 = vld [vmem:[#allocation2 + $0x12] sm:$0xff]
      %v895 = vld [vmem:[#allocation2 + $0x22] sm:$0xff]
      %v896 = vld [vmem:[#allocation2 + $0x32] sm:$0xff]
      %v897 = vld [vmem:[#allocation2 + $0x42] sm:$0xff]
      %v898 = vld [vmem:[#allocation2 + $0x52] sm:$0xff]
      %v899 = vld [vmem:[#allocation2 + $0x62] sm:$0xff]
      %v900 = vld [vmem:[#allocation2 + $0x72] sm:$0xff]
      %v901 = vpack.c.bf16 %v894, %v893
      %v902 = vpack.c.bf16 %v896, %v895
      %v903 = vpack.c.bf16 %v898, %v897
      %v904 = vpack.c.bf16 %v900, %v899
      %s905 = scalar_lea.vmem %s2, 40
      %v906 = vld [vmem:[%s905] sm:$0xf]
      %v907 = vld [vmem:[%s905 + $0x4] sm:$0xf]
      %v910 = vunpack.c.l.b16 %v906
      %v911 = vunpack.c.l.b16 %v907
      %v912 = vpack.c.b16 %v911, %v910
      %v915 = vsel %vm379, %v901, 0
      %v918 = vsel %vm379, %v902, 0
      %v921 = vsel %vm379, %v903, 0
      %v924 = vsel %vm379, %v904, 0
      %926 = vmatprep.subr.bf16.mxu0 0
      %927 = vmatpush1.bf16.msra.mxu0 0
      %928 = vmatprep.subr.bf16.mxu0 0
      %929 = vmatpush1.bf16.msra.mxu0 0
      %930 = vmatprep.subr.bf16.mxu0 0
      %931 = vmatpush1.bf16.msra.mxu0 0
      %932 = vmatprep.subr.bf16.mxu0 0
      %933 = vmatpush1.bf16.msra.mxu0 0
      %934 = vmatprep.subr.bf16.mxu0 0
      %935 = vmatpush1.bf16.msra.mxu0 0
      %936 = vmatprep.subr.bf16.mxu0 0
      %937 = vmatpush1.bf16.msra.mxu0 0
      %938 = vmatprep.subr.bf16.mxu0 0
      %939 = vmatpush1.bf16.msra.mxu0 0
      %940 = vmatprep.subr.bf16.mxu0 0
      %941 = vmatpush1.bf16.msra.mxu0 %v912
      %942 = vmatprep.subr.bf16.mxu0 0
      %943 = vmatpush2.bf16.msra.mxu0 0
      %944 = vmatprep.subr.bf16.mxu0 0
      %945 = vmatpush2.bf16.msra.mxu0 0
      %946 = vmatprep.subr.bf16.mxu0 0
      %947 = vmatpush2.bf16.msra.mxu0 0
      %948 = vmatprep.subr.bf16.mxu0 0
      %949 = vmatpush2.bf16.msra.mxu0 0
      %950 = vmatprep.subr.bf16.mxu0 0
      %951 = vmatpush2.bf16.msra.mxu0 0
      %952 = vmatprep.subr.bf16.mxu0 0
      %953 = vmatpush2.bf16.msra.mxu0 0
      %954 = vmatprep.subr.bf16.mxu0 0
      %955 = vmatpush2.bf16.msra.mxu0 0
      %956 = vmatprep.subr.bf16.mxu0 0
      %957 = vmatpush2.bf16.msra.mxu0 0
      %958 = vmatprep.mubr.bf16.mxu0 0
      %959 = vmatmul.mubr.bf16.gmra.mxu0 %v915
      %v960 = vpop.f32.mrf.mxu0
      %v961 = vadd.f32 0.0, %v960
      %v962 = vpop.f32.mrf.mxu0
      %v963 = vpop.f32.mrf.mxu0
      %v964 = vadd.f32 0.0, %v963
      %v965 = vpop.f32.mrf.mxu0
      %966 = vmatprep.mubr.bf16.mxu0 0
      %967 = vmatmul.mubr.bf16.gmra.mxu0 %v918
      %v968 = vpop.f32.mrf.mxu0
      %v969 = vadd.f32 0.0, %v968
      %v970 = vpop.f32.mrf.mxu0
      %v971 = vpop.f32.mrf.mxu0
      %v972 = vadd.f32 0.0, %v971
      %v973 = vpop.f32.mrf.mxu0
      %974 = vmatprep.mubr.bf16.mxu0 0
      %975 = vmatmul.mubr.bf16.gmra.mxu0 %v921
      %v976 = vpop.f32.mrf.mxu0
      %v977 = vadd.f32 0.0, %v976
      %v978 = vpop.f32.mrf.mxu0
      %v979 = vpop.f32.mrf.mxu0
      %v980 = vadd.f32 0.0, %v979
      %v981 = vpop.f32.mrf.mxu0
      %982 = vmatprep.mubr.bf16.mxu0 0
      %983 = vmatmul.mubr.bf16.gmra.mxu0 %v924
      %v984 = vpop.f32.mrf.mxu0
      %v985 = vadd.f32 0.0, %v984
      %v986 = vpop.f32.mrf.mxu0
      %v987 = vpop.f32.mrf.mxu0
      %v988 = vadd.f32 0.0, %v987
      %v989 = vpop.f32.mrf.mxu0
      %990 = vdwg.mxu0
      %v993 = vunpack.c.l.b16 %v891
      %v994 = vunpack.c.l.b16 %v892
      %v995 = vpack.c.b16 %v994, %v993
      %v998 = vsel %vm379, %v886, 0
      %v1001 = vsel %vm379, %v887, 0
      %v1004 = vsel %vm379, %v888, 0
      %v1007 = vsel %vm379, %v889, 0
      %1009 = vmatprep.subr.bf16.mxu0 0
      %1010 = vmatpush1.bf16.msra.mxu0 0
      %1011 = vmatprep.subr.bf16.mxu0 0
      %1012 = vmatpush1.bf16.msra.mxu0 0
      %1013 = vmatprep.subr.bf16.mxu0 0
      %1014 = vmatpush1.bf16.msra.mxu0 0
      %1015 = vmatprep.subr.bf16.mxu0 0
      %1016 = vmatpush1.bf16.msra.mxu0 0
      %1017 = vmatprep.subr.bf16.mxu0 0
      %1018 = vmatpush1.bf16.msra.mxu0 0
      %1019 = vmatprep.subr.bf16.mxu0 0
      %1020 = vmatpush1.bf16.msra.mxu0 0
      %1021 = vmatprep.subr.bf16.mxu0 0
      %1022 = vmatpush1.bf16.msra.mxu0 0
      %1023 = vmatprep.subr.bf16.mxu0 0
      %1024 = vmatpush1.bf16.msra.mxu0 %v995
      %1025 = vmatprep.subr.bf16.mxu0 0
      %1026 = vmatpush2.bf16.msra.mxu0 0
      %1027 = vmatprep.subr.bf16.mxu0 0
      %1028 = vmatpush2.bf16.msra.mxu0 0
      %1029 = vmatprep.subr.bf16.mxu0 0
      %1030 = vmatpush2.bf16.msra.mxu0 0
      %1031 = vmatprep.subr.bf16.mxu0 0
      %1032 = vmatpush2.bf16.msra.mxu0 0
      %1033 = vmatprep.subr.bf16.mxu0 0
      %1034 = vmatpush2.bf16.msra.mxu0 0
      %1035 = vmatprep.subr.bf16.mxu0 0
      %1036 = vmatpush2.bf16.msra.mxu0 0
      %1037 = vmatprep.subr.bf16.mxu0 0
      %1038 = vmatpush2.bf16.msra.mxu0 0
      %1039 = vmatprep.subr.bf16.mxu0 0
      %1040 = vmatpush2.bf16.msra.mxu0 0
      %1041 = vmatprep.mubr.bf16.mxu0 0
      %1042 = vmatmul.mubr.bf16.gmra.mxu0 %v998
      %v1043 = vpop.f32.mrf.mxu0
      %v1044 = vadd.f32 %v961, %v1043
      %v1045 = vpop.f32.mrf.mxu0
      %v1046 = vpop.f32.mrf.mxu0
      %v1047 = vadd.f32 %v964, %v1046
      %v1048 = vpop.f32.mrf.mxu0
      %1049 = vmatprep.mubr.bf16.mxu0 0
      %1050 = vmatmul.mubr.bf16.gmra.mxu0 %v1001
      %v1051 = vpop.f32.mrf.mxu0
      %v1052 = vadd.f32 %v969, %v1051
      %v1053 = vpop.f32.mrf.mxu0
      %v1054 = vpop.f32.mrf.mxu0
      %v1055 = vadd.f32 %v972, %v1054
      %v1056 = vpop.f32.mrf.mxu0
      %1057 = vmatprep.mubr.bf16.mxu0 0
      %1058 = vmatmul.mubr.bf16.gmra.mxu0 %v1004
      %v1059 = vpop.f32.mrf.mxu0
      %v1060 = vadd.f32 %v977, %v1059
      %v1061 = vpop.f32.mrf.mxu0
      %v1062 = vpop.f32.mrf.mxu0
      %v1063 = vadd.f32 %v980, %v1062
      %v1064 = vpop.f32.mrf.mxu0
      %1065 = vmatprep.mubr.bf16.mxu0 0
      %1066 = vmatmul.mubr.bf16.gmra.mxu0 %v1007
      %v1067 = vpop.f32.mrf.mxu0
      %v1068 = vadd.f32 %v985, %v1067
      %v1069 = vpop.f32.mrf.mxu0
      %v1070 = vpop.f32.mrf.mxu0
      %v1071 = vadd.f32 %v988, %v1070
      %v1072 = vpop.f32.mrf.mxu0
      %1073 = vdwg.mxu0
      %v1074 = vld [vmem:[%s401 + $0x1] sm:$0xff]
      %v1075 = vld [vmem:[%s401 + $0x11] sm:$0xff]
      %v1076 = vld [vmem:[%s401 + $0x21] sm:$0xff]
      %v1077 = vld [vmem:[%s401 + $0x31] sm:$0xff]
      %v1078 = vld [vmem:[%s401 + $0x41] sm:$0xff]
      %v1079 = vld [vmem:[%s401 + $0x51] sm:$0xff]
      %v1080 = vld [vmem:[%s401 + $0x61] sm:$0xff]
      %v1081 = vld [vmem:[%s401 + $0x71] sm:$0xff]
      %v1082 = vpack.c.bf16 %v1075, %v1074
      %v1083 = vpack.c.bf16 %v1077, %v1076
      %v1084 = vpack.c.bf16 %v1079, %v1078
      %v1085 = vpack.c.bf16 %v1081, %v1080
      %s1086 = scalar_lea.vmem %s2, 48
      %v1087 = vld [vmem:[%s1086] sm:$0xf]
      %v1088 = vld [vmem:[%s1086 + $0x4] sm:$0xf]
      %v1091 = vunpack.c.l.b16 %v1087
      %v1092 = vunpack.c.l.b16 %v1088
      %v1093 = vpack.c.b16 %v1092, %v1091
      %v1096 = vsel %vm379, %v1082, 0
      %v1099 = vsel %vm379, %v1083, 0
      %v1102 = vsel %vm379, %v1084, 0
      %v1105 = vsel %vm379, %v1085, 0
      %1107 = vmatprep.subr.bf16.mxu0 0
      %1108 = vmatpush1.bf16.msra.mxu0 0
      %1109 = vmatprep.subr.bf16.mxu0 0
      %1110 = vmatpush1.bf16.msra.mxu0 0
      %1111 = vmatprep.subr.bf16.mxu0 0
      %1112 = vmatpush1.bf16.msra.mxu0 0
      %1113 = vmatprep.subr.bf16.mxu0 0
      %1114 = vmatpush1.bf16.msra.mxu0 0
      %1115 = vmatprep.subr.bf16.mxu0 0
      %1116 = vmatpush1.bf16.msra.mxu0 0
      %1117 = vmatprep.subr.bf16.mxu0 0
      %1118 = vmatpush1.bf16.msra.mxu0 0
      %1119 = vmatprep.subr.bf16.mxu0 0
      %1120 = vmatpush1.bf16.msra.mxu0 0
      %1121 = vmatprep.subr.bf16.mxu0 0
      %1122 = vmatpush1.bf16.msra.mxu0 %v1093
      %1123 = vmatprep.subr.bf16.mxu0 0
      %1124 = vmatpush2.bf16.msra.mxu0 0
      %1125 = vmatprep.subr.bf16.mxu0 0
      %1126 = vmatpush2.bf16.msra.mxu0 0
      %1127 = vmatprep.subr.bf16.mxu0 0
      %1128 = vmatpush2.bf16.msra.mxu0 0
      %1129 = vmatprep.subr.bf16.mxu0 0
      %1130 = vmatpush2.bf16.msra.mxu0 0
      %1131 = vmatprep.subr.bf16.mxu0 0
      %1132 = vmatpush2.bf16.msra.mxu0 0
      %1133 = vmatprep.subr.bf16.mxu0 0
      %1134 = vmatpush2.bf16.msra.mxu0 0
      %1135 = vmatprep.subr.bf16.mxu0 0
      %1136 = vmatpush2.bf16.msra.mxu0 0
      %1137 = vmatprep.subr.bf16.mxu0 0
      %1138 = vmatpush2.bf16.msra.mxu0 0
      %1139 = vmatprep.mubr.bf16.mxu0 0
      %1140 = vmatmul.mubr.bf16.gmra.mxu0 %v1096
      %v1141 = vpop.f32.mrf.mxu0
      %v1142 = vadd.f32 0.0, %v1141
      %v1143 = vpop.f32.mrf.mxu0
      %v1144 = vpop.f32.mrf.mxu0
      %v1145 = vadd.f32 0.0, %v1144
      %v1146 = vpop.f32.mrf.mxu0
      %1147 = vmatprep.mubr.bf16.mxu0 0
      %1148 = vmatmul.mubr.bf16.gmra.mxu0 %v1099
      %v1149 = vpop.f32.mrf.mxu0
      %v1150 = vadd.f32 0.0, %v1149
      %v1151 = vpop.f32.mrf.mxu0
      %v1152 = vpop.f32.mrf.mxu0
      %v1153 = vadd.f32 0.0, %v1152
      %v1154 = vpop.f32.mrf.mxu0
      %1155 = vmatprep.mubr.bf16.mxu0 0
      %1156 = vmatmul.mubr.bf16.gmra.mxu0 %v1102
      %v1157 = vpop.f32.mrf.mxu0
      %v1158 = vadd.f32 0.0, %v1157
      %v1159 = vpop.f32.mrf.mxu0
      %v1160 = vpop.f32.mrf.mxu0
      %v1161 = vadd.f32 0.0, %v1160
      %v1162 = vpop.f32.mrf.mxu0
      %1163 = vmatprep.mubr.bf16.mxu0 0
      %1164 = vmatmul.mubr.bf16.gmra.mxu0 %v1105
      %v1165 = vpop.f32.mrf.mxu0
      %v1166 = vadd.f32 0.0, %v1165
      %v1167 = vpop.f32.mrf.mxu0
      %v1168 = vpop.f32.mrf.mxu0
      %v1169 = vadd.f32 0.0, %v1168
      %v1170 = vpop.f32.mrf.mxu0
      %1171 = vdwg.mxu0
      %v1172 = vadd.f32 %v1044, %v1142
      %v1173 = vadd.f32 %v1047, %v1145
      %v1174 = vadd.f32 %v1052, %v1150
      %v1175 = vadd.f32 %v1055, %v1153
      %v1176 = vadd.f32 %v1060, %v1158
      %v1177 = vadd.f32 %v1063, %v1161
      %v1178 = vadd.f32 %v1068, %v1166
      %v1179 = vadd.f32 %v1071, %v1169
      %v1180 = vld [vmem:[%s401 + $0x2] sm:$0xff]
      %v1181 = vld [vmem:[%s401 + $0x12] sm:$0xff]
      %v1182 = vld [vmem:[%s401 + $0x22] sm:$0xff]
      %v1183 = vld [vmem:[%s401 + $0x32] sm:$0xff]
      %v1184 = vld [vmem:[%s401 + $0x42] sm:$0xff]
      %v1185 = vld [vmem:[%s401 + $0x52] sm:$0xff]
      %v1186 = vld [vmem:[%s401 + $0x62] sm:$0xff]
      %v1187 = vld [vmem:[%s401 + $0x72] sm:$0xff]
      %v1188 = vpack.c.bf16 %v1181, %v1180
      %v1189 = vpack.c.bf16 %v1183, %v1182
      %v1190 = vpack.c.bf16 %v1185, %v1184
      %v1191 = vpack.c.bf16 %v1187, %v1186
      %s1192 = scalar_lea.vmem %s2, 56
      %v1193 = vld [vmem:[%s1192] sm:$0xf]
      %v1194 = vld [vmem:[%s1192 + $0x4] sm:$0xf]
      %v1197 = vunpack.c.l.b16 %v1193
      %v1198 = vunpack.c.l.b16 %v1194
      %v1199 = vpack.c.b16 %v1198, %v1197
      %v1202 = vsel %vm379, %v1188, 0
      %v1205 = vsel %vm379, %v1189, 0
      %v1208 = vsel %vm379, %v1190, 0
      %v1211 = vsel %vm379, %v1191, 0
      %1213 = vmatprep.subr.bf16.mxu0 0
      %1214 = vmatpush1.bf16.msra.mxu0 0
      %1215 = vmatprep.subr.bf16.mxu0 0
      %1216 = vmatpush1.bf16.msra.mxu0 0
      %1217 = vmatprep.subr.bf16.mxu0 0
      %1218 = vmatpush1.bf16.msra.mxu0 0
      %1219 = vmatprep.subr.bf16.mxu0 0
      %1220 = vmatpush1.bf16.msra.mxu0 0
      %1221 = vmatprep.subr.bf16.mxu0 0
      %1222 = vmatpush1.bf16.msra.mxu0 0
      %1223 = vmatprep.subr.bf16.mxu0 0
      %1224 = vmatpush1.bf16.msra.mxu0 0
      %1225 = vmatprep.subr.bf16.mxu0 0
      %1226 = vmatpush1.bf16.msra.mxu0 0
      %1227 = vmatprep.subr.bf16.mxu0 0
      %1228 = vmatpush1.bf16.msra.mxu0 %v1199
      %1229 = vmatprep.subr.bf16.mxu0 0
      %1230 = vmatpush2.bf16.msra.mxu0 0
      %1231 = vmatprep.subr.bf16.mxu0 0
      %1232 = vmatpush2.bf16.msra.mxu0 0
      %1233 = vmatprep.subr.bf16.mxu0 0
      %1234 = vmatpush2.bf16.msra.mxu0 0
      %1235 = vmatprep.subr.bf16.mxu0 0
      %1236 = vmatpush2.bf16.msra.mxu0 0
      %1237 = vmatprep.subr.bf16.mxu0 0
      %1238 = vmatpush2.bf16.msra.mxu0 0
      %1239 = vmatprep.subr.bf16.mxu0 0
      %1240 = vmatpush2.bf16.msra.mxu0 0
      %1241 = vmatprep.subr.bf16.mxu0 0
      %1242 = vmatpush2.bf16.msra.mxu0 0
      %1243 = vmatprep.subr.bf16.mxu0 0
      %1244 = vmatpush2.bf16.msra.mxu0 0
      %1245 = vmatprep.mubr.bf16.mxu0 0
      %1246 = vmatmul.mubr.bf16.gmra.mxu0 %v1202
      %v1247 = vpop.f32.mrf.mxu0
      %v1248 = vadd.f32 0.0, %v1247
      %v1249 = vpop.f32.mrf.mxu0
      %v1250 = vpop.f32.mrf.mxu0
      %v1251 = vadd.f32 0.0, %v1250
      %v1252 = vpop.f32.mrf.mxu0
      %1253 = vmatprep.mubr.bf16.mxu0 0
      %1254 = vmatmul.mubr.bf16.gmra.mxu0 %v1205
      %v1255 = vpop.f32.mrf.mxu0
      %v1256 = vadd.f32 0.0, %v1255
      %v1257 = vpop.f32.mrf.mxu0
      %v1258 = vpop.f32.mrf.mxu0
      %v1259 = vadd.f32 0.0, %v1258
      %v1260 = vpop.f32.mrf.mxu0
      %1261 = vmatprep.mubr.bf16.mxu0 0
      %1262 = vmatmul.mubr.bf16.gmra.mxu0 %v1208
      %v1263 = vpop.f32.mrf.mxu0
      %v1264 = vadd.f32 0.0, %v1263
      %v1265 = vpop.f32.mrf.mxu0
      %v1266 = vpop.f32.mrf.mxu0
      %v1267 = vadd.f32 0.0, %v1266
      %v1268 = vpop.f32.mrf.mxu0
      %1269 = vmatprep.mubr.bf16.mxu0 0
      %1270 = vmatmul.mubr.bf16.gmra.mxu0 %v1211
      %v1271 = vpop.f32.mrf.mxu0
      %v1272 = vadd.f32 0.0, %v1271
      %v1273 = vpop.f32.mrf.mxu0
      %v1274 = vpop.f32.mrf.mxu0
      %v1275 = vadd.f32 0.0, %v1274
      %v1276 = vpop.f32.mrf.mxu0
      %1277 = vdwg.mxu0
      %v1278 = vadd.f32 %v1172, %v1248
      %v1279 = vadd.f32 %v1173, %v1251
      %v1280 = vadd.f32 %v1174, %v1256
      %v1281 = vadd.f32 %v1175, %v1259
      %v1282 = vadd.f32 %v1176, %v1264
      %v1283 = vadd.f32 %v1177, %v1267
      %v1284 = vadd.f32 %v1178, %v1272
      %v1285 = vadd.f32 %v1179, %v1275
      %s1286 = scalar_lea.vmem %s204, 64
      %1287 = vst.msk [vmem:[%s1286] sm:$0xff] %vm817, %v1278
      %1288 = vst.msk [vmem:[%s1286 + $0x8] sm:$0xff] %vm817, %v1279
      %1289 = vst.msk [vmem:[%s1286 + $0x10] sm:$0xff] %vm817, %v1280
      %1290 = vst.msk [vmem:[%s1286 + $0x18] sm:$0xff] %vm817, %v1281
      %1291 = vst.msk [vmem:[%s1286 + $0x20] sm:$0xff] %vm817, %v1282
      %1292 = vst.msk [vmem:[%s1286 + $0x28] sm:$0xff] %vm817, %v1283
      %1293 = vst.msk [vmem:[%s1286 + $0x30] sm:$0xff] %vm817, %v1284
      %1294 = vst.msk [vmem:[%s1286 + $0x38] sm:$0xff] %vm817, %v1285
      %v1295 = vsel %vm817, %v1278, 0.0
      %v1296 = vsel %vm817, %v1279, 0.0
      %v1297 = vadd.f32 %v1295, %v1296
      %v1298 = vsel %vm817, %v1280, 0.0
      %v1299 = vadd.f32 %v1297, %v1298
      %v1300 = vsel %vm817, %v1281, 0.0
      %v1301 = vadd.f32 %v1299, %v1300
      %v1302 = vsel %vm817, %v1282, 0.0
      %v1303 = vadd.f32 %v1301, %v1302
      %v1304 = vsel %vm817, %v1283, 0.0
      %v1305 = vadd.f32 %v1303, %v1304
      %v1306 = vsel %vm817, %v1284, 0.0
      %v1307 = vadd.f32 %v1305, %v1306
      %v1308 = vsel %vm817, %v1285, 0.0
      %v1309 = vadd.f32 %v1307, %v1308
      %v1310 = vrot.slane %v1309, 4
      %v1311 = vadd.f32 %v1309, %v1310
      %v1312 = vrot.slane %v1311, 2
      %v1313 = vadd.f32 %v1311, %v1312
      %v1314 = vrot.slane %v1313, 1
      %v1315 = vadd.f32 %v1313, %v1314
      %v1316 = vadd.f32 %v847, %v1315
      %v1317 = vmul.f32 %v1278, %v1278
      %v1318 = vmul.f32 %v1279, %v1279
      %v1319 = vmul.f32 %v1280, %v1280
      %v1320 = vmul.f32 %v1281, %v1281
      %v1321 = vmul.f32 %v1282, %v1282
      %v1322 = vmul.f32 %v1283, %v1283
      %v1323 = vmul.f32 %v1284, %v1284
      %v1324 = vmul.f32 %v1285, %v1285
      %v1325 = vsel %vm817, %v1317, 0.0
      %v1326 = vsel %vm817, %v1318, 0.0
      %v1327 = vadd.f32 %v1325, %v1326
      %v1328 = vsel %vm817, %v1319, 0.0
      %v1329 = vadd.f32 %v1327, %v1328
      %v1330 = vsel %vm817, %v1320, 0.0
      %v1331 = vadd.f32 %v1329, %v1330
      %v1332 = vsel %vm817, %v1321, 0.0
      %v1333 = vadd.f32 %v1331, %v1332
      %v1334 = vsel %vm817, %v1322, 0.0
      %v1335 = vadd.f32 %v1333, %v1334
      %v1336 = vsel %vm817, %v1323, 0.0
      %v1337 = vadd.f32 %v1335, %v1336
      %v1338 = vsel %vm817, %v1324, 0.0
      %v1339 = vadd.f32 %v1337, %v1338
      %v1340 = vrot.slane %v1339, 4
      %v1341 = vadd.f32 %v1339, %v1340
      %v1342 = vrot.slane %v1341, 2
      %v1343 = vadd.f32 %v1341, %v1342
      %v1344 = vrot.slane %v1343, 1
      %v1345 = vadd.f32 %v1343, %v1344
      %v1346 = vadd.f32 %v877, %v1345
      %v1347 = vld [vmem:[%s401] sm:$0xff]
      %v1348 = vld [vmem:[%s401 + $0x10] sm:$0xff]
      %v1349 = vld [vmem:[%s401 + $0x20] sm:$0xff]
      %v1350 = vld [vmem:[%s401 + $0x30] sm:$0xff]
      %v1351 = vld [vmem:[%s401 + $0x40] sm:$0xff]
      %v1352 = vld [vmem:[%s401 + $0x50] sm:$0xff]
      %v1353 = vld [vmem:[%s401 + $0x60] sm:$0xff]
      %v1354 = vld [vmem:[%s401 + $0x70] sm:$0xff]
      %v1355 = vpack.c.bf16 %v1348, %v1347
      %v1356 = vpack.c.bf16 %v1350, %v1349
      %v1357 = vpack.c.bf16 %v1352, %v1351
      %v1358 = vpack.c.bf16 %v1354, %v1353
      %s1359 = scalar_lea.vmem %s2, 64
      %v1360 = vld [vmem:[%s1359] sm:$0xf]
      %v1361 = vld [vmem:[%s1359 + $0x4] sm:$0xf]
      %v1362 = vld [vmem:[%s401 + $0x1] sm:$0xff]
      %v1363 = vld [vmem:[%s401 + $0x11] sm:$0xff]
      %v1364 = vld [vmem:[%s401 + $0x21] sm:$0xff]
      %v1365 = vld [vmem:[%s401 + $0x31] sm:$0xff]
      %v1366 = vld [vmem:[%s401 + $0x41] sm:$0xff]
      %v1367 = vld [vmem:[%s401 + $0x51] sm:$0xff]
      %v1368 = vld [vmem:[%s401 + $0x61] sm:$0xff]
      %v1369 = vld [vmem:[%s401 + $0x71] sm:$0xff]
      %v1370 = vpack.c.bf16 %v1363, %v1362
      %v1371 = vpack.c.bf16 %v1365, %v1364
      %v1372 = vpack.c.bf16 %v1367, %v1366
      %v1373 = vpack.c.bf16 %v1369, %v1368
      %s1374 = scalar_lea.vmem %s2, 72
      %v1375 = vld [vmem:[%s1374] sm:$0xf]
      %v1376 = vld [vmem:[%s1374 + $0x4] sm:$0xf]
      %v1379 = vunpack.c.l.b16 %v1375
      %v1380 = vunpack.c.l.b16 %v1376
      %v1381 = vpack.c.b16 %v1380, %v1379
      %v1384 = vsel %vm379, %v1370, 0
      %v1387 = vsel %vm379, %v1371, 0
      %v1390 = vsel %vm379, %v1372, 0
      %v1393 = vsel %vm379, %v1373, 0
      %1395 = vmatprep.subr.bf16.mxu0 0
      %1396 = vmatpush1.bf16.msra.mxu0 0
      %1397 = vmatprep.subr.bf16.mxu0 0
      %1398 = vmatpush1.bf16.msra.mxu0 0
      %1399 = vmatprep.subr.bf16.mxu0 0
      %1400 = vmatpush1.bf16.msra.mxu0 0
      %1401 = vmatprep.subr.bf16.mxu0 0
      %1402 = vmatpush1.bf16.msra.mxu0 0
      %1403 = vmatprep.subr.bf16.mxu0 0
      %1404 = vmatpush1.bf16.msra.mxu0 0
      %1405 = vmatprep.subr.bf16.mxu0 0
      %1406 = vmatpush1.bf16.msra.mxu0 0
      %1407 = vmatprep.subr.bf16.mxu0 0
      %1408 = vmatpush1.bf16.msra.mxu0 0
      %1409 = vmatprep.subr.bf16.mxu0 0
      %1410 = vmatpush1.bf16.msra.mxu0 %v1381
      %1411 = vmatprep.subr.bf16.mxu0 0
      %1412 = vmatpush2.bf16.msra.mxu0 0
      %1413 = vmatprep.subr.bf16.mxu0 0
      %1414 = vmatpush2.bf16.msra.mxu0 0
      %1415 = vmatprep.subr.bf16.mxu0 0
      %1416 = vmatpush2.bf16.msra.mxu0 0
      %1417 = vmatprep.subr.bf16.mxu0 0
      %1418 = vmatpush2.bf16.msra.mxu0 0
      %1419 = vmatprep.subr.bf16.mxu0 0
      %1420 = vmatpush2.bf16.msra.mxu0 0
      %1421 = vmatprep.subr.bf16.mxu0 0
      %1422 = vmatpush2.bf16.msra.mxu0 0
      %1423 = vmatprep.subr.bf16.mxu0 0
      %1424 = vmatpush2.bf16.msra.mxu0 0
      %1425 = vmatprep.subr.bf16.mxu0 0
      %1426 = vmatpush2.bf16.msra.mxu0 0
      %1427 = vmatprep.mubr.bf16.mxu0 0
      %1428 = vmatmul.mubr.bf16.gmra.mxu0 %v1384
      %v1429 = vpop.f32.mrf.mxu0
      %v1430 = vadd.f32 0.0, %v1429
      %v1431 = vpop.f32.mrf.mxu0
      %v1432 = vpop.f32.mrf.mxu0
      %v1433 = vadd.f32 0.0, %v1432
      %v1434 = vpop.f32.mrf.mxu0
      %1435 = vmatprep.mubr.bf16.mxu0 0
      %1436 = vmatmul.mubr.bf16.gmra.mxu0 %v1387
      %v1437 = vpop.f32.mrf.mxu0
      %v1438 = vadd.f32 0.0, %v1437
      %v1439 = vpop.f32.mrf.mxu0
      %v1440 = vpop.f32.mrf.mxu0
      %v1441 = vadd.f32 0.0, %v1440
      %v1442 = vpop.f32.mrf.mxu0
      %1443 = vmatprep.mubr.bf16.mxu0 0
      %1444 = vmatmul.mubr.bf16.gmra.mxu0 %v1390
      %v1445 = vpop.f32.mrf.mxu0
      %v1446 = vadd.f32 0.0, %v1445
      %v1447 = vpop.f32.mrf.mxu0
      %v1448 = vpop.f32.mrf.mxu0
      %v1449 = vadd.f32 0.0, %v1448
      %v1450 = vpop.f32.mrf.mxu0
      %1451 = vmatprep.mubr.bf16.mxu0 0
      %1452 = vmatmul.mubr.bf16.gmra.mxu0 %v1393
      %v1453 = vpop.f32.mrf.mxu0
      %v1454 = vadd.f32 0.0, %v1453
      %v1455 = vpop.f32.mrf.mxu0
      %v1456 = vpop.f32.mrf.mxu0
      %v1457 = vadd.f32 0.0, %v1456
      %v1458 = vpop.f32.mrf.mxu0
      %1459 = vdwg.mxu0
      %v1462 = vunpack.c.l.b16 %v1360
      %v1463 = vunpack.c.l.b16 %v1361
      %v1464 = vpack.c.b16 %v1463, %v1462
      %v1467 = vsel %vm379, %v1355, 0
      %v1470 = vsel %vm379, %v1356, 0
      %v1473 = vsel %vm379, %v1357, 0
      %v1476 = vsel %vm379, %v1358, 0
      %1478 = vmatprep.subr.bf16.mxu0 0
      %1479 = vmatpush1.bf16.msra.mxu0 0
      %1480 = vmatprep.subr.bf16.mxu0 0
      %1481 = vmatpush1.bf16.msra.mxu0 0
      %1482 = vmatprep.subr.bf16.mxu0 0
      %1483 = vmatpush1.bf16.msra.mxu0 0
      %1484 = vmatprep.subr.bf16.mxu0 0
      %1485 = vmatpush1.bf16.msra.mxu0 0
      %1486 = vmatprep.subr.bf16.mxu0 0
      %1487 = vmatpush1.bf16.msra.mxu0 0
      %1488 = vmatprep.subr.bf16.mxu0 0
      %1489 = vmatpush1.bf16.msra.mxu0 0
      %1490 = vmatprep.subr.bf16.mxu0 0
      %1491 = vmatpush1.bf16.msra.mxu0 0
      %1492 = vmatprep.subr.bf16.mxu0 0
      %1493 = vmatpush1.bf16.msra.mxu0 %v1464
      %1494 = vmatprep.subr.bf16.mxu0 0
      %1495 = vmatpush2.bf16.msra.mxu0 0
      %1496 = vmatprep.subr.bf16.mxu0 0
      %1497 = vmatpush2.bf16.msra.mxu0 0
      %1498 = vmatprep.subr.bf16.mxu0 0
      %1499 = vmatpush2.bf16.msra.mxu0 0
      %1500 = vmatprep.subr.bf16.mxu0 0
      %1501 = vmatpush2.bf16.msra.mxu0 0
      %1502 = vmatprep.subr.bf16.mxu0 0
      %1503 = vmatpush2.bf16.msra.mxu0 0
      %1504 = vmatprep.subr.bf16.mxu0 0
      %1505 = vmatpush2.bf16.msra.mxu0 0
      %1506 = vmatprep.subr.bf16.mxu0 0
      %1507 = vmatpush2.bf16.msra.mxu0 0
      %1508 = vmatprep.subr.bf16.mxu0 0
      %1509 = vmatpush2.bf16.msra.mxu0 0
      %1510 = vmatprep.mubr.bf16.mxu0 0
      %1511 = vmatmul.mubr.bf16.gmra.mxu0 %v1467
      %v1512 = vpop.f32.mrf.mxu0
      %v1513 = vadd.f32 %v1430, %v1512
      %v1514 = vpop.f32.mrf.mxu0
      %v1515 = vpop.f32.mrf.mxu0
      %v1516 = vadd.f32 %v1433, %v1515
      %v1517 = vpop.f32.mrf.mxu0
      %1518 = vmatprep.mubr.bf16.mxu0 0
      %1519 = vmatmul.mubr.bf16.gmra.mxu0 %v1470
      %v1520 = vpop.f32.mrf.mxu0
      %v1521 = vadd.f32 %v1438, %v1520
      %v1522 = vpop.f32.mrf.mxu0
      %v1523 = vpop.f32.mrf.mxu0
      %v1524 = vadd.f32 %v1441, %v1523
      %v1525 = vpop.f32.mrf.mxu0
      %1526 = vmatprep.mubr.bf16.mxu0 0
      %1527 = vmatmul.mubr.bf16.gmra.mxu0 %v1473
      %v1528 = vpop.f32.mrf.mxu0
      %v1529 = vadd.f32 %v1446, %v1528
      %v1530 = vpop.f32.mrf.mxu0
      %v1531 = vpop.f32.mrf.mxu0
      %v1532 = vadd.f32 %v1449, %v1531
      %v1533 = vpop.f32.mrf.mxu0
      %1534 = vmatprep.mubr.bf16.mxu0 0
      %1535 = vmatmul.mubr.bf16.gmra.mxu0 %v1476
      %v1536 = vpop.f32.mrf.mxu0
      %v1537 = vadd.f32 %v1454, %v1536
      %v1538 = vpop.f32.mrf.mxu0
      %v1539 = vpop.f32.mrf.mxu0
      %v1540 = vadd.f32 %v1457, %v1539
      %v1541 = vpop.f32.mrf.mxu0
      %1542 = vdwg.mxu0
      %s1543 = scalar_lea.vmem [#allocation2], 32
      %v1544 = vld [vmem:[%s1543] sm:$0xff]
      %v1545 = vld [vmem:[%s1543 + $0x10] sm:$0xff]
      %v1546 = vld [vmem:[%s1543 + $0x20] sm:$0xff]
      %v1547 = vld [vmem:[%s1543 + $0x30] sm:$0xff]
      %v1548 = vld [vmem:[%s1543 + $0x40] sm:$0xff]
      %v1549 = vld [vmem:[%s1543 + $0x50] sm:$0xff]
      %v1550 = vld [vmem:[%s1543 + $0x60] sm:$0xff]
      %v1551 = vld [vmem:[%s1543 + $0x70] sm:$0xff]
      %v1552 = vpack.c.bf16 %v1545, %v1544
      %v1553 = vpack.c.bf16 %v1547, %v1546
      %v1554 = vpack.c.bf16 %v1549, %v1548
      %v1555 = vpack.c.bf16 %v1551, %v1550
      %s1556 = scalar_lea.vmem %s2, 80
      %v1557 = vld [vmem:[%s1556] sm:$0xf]
      %v1558 = vld [vmem:[%s1556 + $0x4] sm:$0xf]
      %v1561 = vunpack.c.l.b16 %v1557
      %v1562 = vunpack.c.l.b16 %v1558
      %v1563 = vpack.c.b16 %v1562, %v1561
      %v1566 = vsel %vm379, %v1552, 0
      %v1569 = vsel %vm379, %v1553, 0
      %v1572 = vsel %vm379, %v1554, 0
      %v1575 = vsel %vm379, %v1555, 0
      %1577 = vmatprep.subr.bf16.mxu0 0
      %1578 = vmatpush1.bf16.msra.mxu0 0
      %1579 = vmatprep.subr.bf16.mxu0 0
      %1580 = vmatpush1.bf16.msra.mxu0 0
      %1581 = vmatprep.subr.bf16.mxu0 0
      %1582 = vmatpush1.bf16.msra.mxu0 0
      %1583 = vmatprep.subr.bf16.mxu0 0
      %1584 = vmatpush1.bf16.msra.mxu0 0
      %1585 = vmatprep.subr.bf16.mxu0 0
      %1586 = vmatpush1.bf16.msra.mxu0 0
      %1587 = vmatprep.subr.bf16.mxu0 0
      %1588 = vmatpush1.bf16.msra.mxu0 0
      %1589 = vmatprep.subr.bf16.mxu0 0
      %1590 = vmatpush1.bf16.msra.mxu0 0
      %1591 = vmatprep.subr.bf16.mxu0 0
      %1592 = vmatpush1.bf16.msra.mxu0 %v1563
      %1593 = vmatprep.subr.bf16.mxu0 0
      %1594 = vmatpush2.bf16.msra.mxu0 0
      %1595 = vmatprep.subr.bf16.mxu0 0
      %1596 = vmatpush2.bf16.msra.mxu0 0
      %1597 = vmatprep.subr.bf16.mxu0 0
      %1598 = vmatpush2.bf16.msra.mxu0 0
      %1599 = vmatprep.subr.bf16.mxu0 0
      %1600 = vmatpush2.bf16.msra.mxu0 0
      %1601 = vmatprep.subr.bf16.mxu0 0
      %1602 = vmatpush2.bf16.msra.mxu0 0
      %1603 = vmatprep.subr.bf16.mxu0 0
      %1604 = vmatpush2.bf16.msra.mxu0 0
      %1605 = vmatprep.subr.bf16.mxu0 0
      %1606 = vmatpush2.bf16.msra.mxu0 0
      %1607 = vmatprep.subr.bf16.mxu0 0
      %1608 = vmatpush2.bf16.msra.mxu0 0
      %1609 = vmatprep.mubr.bf16.mxu0 0
      %1610 = vmatmul.mubr.bf16.gmra.mxu0 %v1566
      %v1611 = vpop.f32.mrf.mxu0
      %v1612 = vadd.f32 0.0, %v1611
      %v1613 = vpop.f32.mrf.mxu0
      %v1614 = vpop.f32.mrf.mxu0
      %v1615 = vadd.f32 0.0, %v1614
      %v1616 = vpop.f32.mrf.mxu0
      %1617 = vmatprep.mubr.bf16.mxu0 0
      %1618 = vmatmul.mubr.bf16.gmra.mxu0 %v1569
      %v1619 = vpop.f32.mrf.mxu0
      %v1620 = vadd.f32 0.0, %v1619
      %v1621 = vpop.f32.mrf.mxu0
      %v1622 = vpop.f32.mrf.mxu0
      %v1623 = vadd.f32 0.0, %v1622
      %v1624 = vpop.f32.mrf.mxu0
      %1625 = vmatprep.mubr.bf16.mxu0 0
      %1626 = vmatmul.mubr.bf16.gmra.mxu0 %v1572
      %v1627 = vpop.f32.mrf.mxu0
      %v1628 = vadd.f32 0.0, %v1627
      %v1629 = vpop.f32.mrf.mxu0
      %v1630 = vpop.f32.mrf.mxu0
      %v1631 = vadd.f32 0.0, %v1630
      %v1632 = vpop.f32.mrf.mxu0
      %1633 = vmatprep.mubr.bf16.mxu0 0
      %1634 = vmatmul.mubr.bf16.gmra.mxu0 %v1575
      %v1635 = vpop.f32.mrf.mxu0
      %v1636 = vadd.f32 0.0, %v1635
      %v1637 = vpop.f32.mrf.mxu0
      %v1638 = vpop.f32.mrf.mxu0
      %v1639 = vadd.f32 0.0, %v1638
      %v1640 = vpop.f32.mrf.mxu0
      %1641 = vdwg.mxu0
      %v1642 = vadd.f32 %v1513, %v1612
      %v1643 = vadd.f32 %v1516, %v1615
      %v1644 = vadd.f32 %v1521, %v1620
      %v1645 = vadd.f32 %v1524, %v1623
      %v1646 = vadd.f32 %v1529, %v1628
      %v1647 = vadd.f32 %v1532, %v1631
      %v1648 = vadd.f32 %v1537, %v1636
      %v1649 = vadd.f32 %v1540, %v1639
      %v1650 = vld [vmem:[%s1543 + $0x1] sm:$0xff]
      %v1651 = vld [vmem:[%s1543 + $0x11] sm:$0xff]
      %v1652 = vld [vmem:[%s1543 + $0x21] sm:$0xff]
      %v1653 = vld [vmem:[%s1543 + $0x31] sm:$0xff]
      %v1654 = vld [vmem:[%s1543 + $0x41] sm:$0xff]
      %v1655 = vld [vmem:[%s1543 + $0x51] sm:$0xff]
      %v1656 = vld [vmem:[%s1543 + $0x61] sm:$0xff]
      %v1657 = vld [vmem:[%s1543 + $0x71] sm:$0xff]
      %v1658 = vpack.c.bf16 %v1651, %v1650
      %v1659 = vpack.c.bf16 %v1653, %v1652
      %v1660 = vpack.c.bf16 %v1655, %v1654
      %v1661 = vpack.c.bf16 %v1657, %v1656
      %s1662 = scalar_lea.vmem %s2, 88
      %v1663 = vld [vmem:[%s1662] sm:$0xf]
      %v1664 = vld [vmem:[%s1662 + $0x4] sm:$0xf]
      %v1667 = vunpack.c.l.b16 %v1663
      %v1668 = vunpack.c.l.b16 %v1664
      %v1669 = vpack.c.b16 %v1668, %v1667
      %v1672 = vsel %vm379, %v1658, 0
      %v1675 = vsel %vm379, %v1659, 0
      %v1678 = vsel %vm379, %v1660, 0
      %v1681 = vsel %vm379, %v1661, 0
      %1683 = vmatprep.subr.bf16.mxu0 0
      %1684 = vmatpush1.bf16.msra.mxu0 0
      %1685 = vmatprep.subr.bf16.mxu0 0
      %1686 = vmatpush1.bf16.msra.mxu0 0
      %1687 = vmatprep.subr.bf16.mxu0 0
      %1688 = vmatpush1.bf16.msra.mxu0 0
      %1689 = vmatprep.subr.bf16.mxu0 0
      %1690 = vmatpush1.bf16.msra.mxu0 0
      %1691 = vmatprep.subr.bf16.mxu0 0
      %1692 = vmatpush1.bf16.msra.mxu0 0
      %1693 = vmatprep.subr.bf16.mxu0 0
      %1694 = vmatpush1.bf16.msra.mxu0 0
      %1695 = vmatprep.subr.bf16.mxu0 0
      %1696 = vmatpush1.bf16.msra.mxu0 0
      %1697 = vmatprep.subr.bf16.mxu0 0
      %1698 = vmatpush1.bf16.msra.mxu0 %v1669
      %1699 = vmatprep.subr.bf16.mxu0 0
      %1700 = vmatpush2.bf16.msra.mxu0 0
      %1701 = vmatprep.subr.bf16.mxu0 0
      %1702 = vmatpush2.bf16.msra.mxu0 0
      %1703 = vmatprep.subr.bf16.mxu0 0
      %1704 = vmatpush2.bf16.msra.mxu0 0
      %1705 = vmatprep.subr.bf16.mxu0 0
      %1706 = vmatpush2.bf16.msra.mxu0 0
      %1707 = vmatprep.subr.bf16.mxu0 0
      %1708 = vmatpush2.bf16.msra.mxu0 0
      %1709 = vmatprep.subr.bf16.mxu0 0
      %1710 = vmatpush2.bf16.msra.mxu0 0
      %1711 = vmatprep.subr.bf16.mxu0 0
      %1712 = vmatpush2.bf16.msra.mxu0 0
      %1713 = vmatprep.subr.bf16.mxu0 0
      %1714 = vmatpush2.bf16.msra.mxu0 0
      %1715 = vmatprep.mubr.bf16.mxu0 0
      %1716 = vmatmul.mubr.bf16.gmra.mxu0 %v1672
      %v1717 = vpop.f32.mrf.mxu0
      %v1718 = vadd.f32 0.0, %v1717
      %v1719 = vpop.f32.mrf.mxu0
      %v1720 = vpop.f32.mrf.mxu0
      %v1721 = vadd.f32 0.0, %v1720
      %v1722 = vpop.f32.mrf.mxu0
      %1723 = vmatprep.mubr.bf16.mxu0 0
      %1724 = vmatmul.mubr.bf16.gmra.mxu0 %v1675
      %v1725 = vpop.f32.mrf.mxu0
      %v1726 = vadd.f32 0.0, %v1725
      %v1727 = vpop.f32.mrf.mxu0
      %v1728 = vpop.f32.mrf.mxu0
      %v1729 = vadd.f32 0.0, %v1728
      %v1730 = vpop.f32.mrf.mxu0
      %1731 = vmatprep.mubr.bf16.mxu0 0
      %1732 = vmatmul.mubr.bf16.gmra.mxu0 %v1678
      %v1733 = vpop.f32.mrf.mxu0
      %v1734 = vadd.f32 0.0, %v1733
      %v1735 = vpop.f32.mrf.mxu0
      %v1736 = vpop.f32.mrf.mxu0
      %v1737 = vadd.f32 0.0, %v1736
      %v1738 = vpop.f32.mrf.mxu0
      %1739 = vmatprep.mubr.bf16.mxu0 0
      %1740 = vmatmul.mubr.bf16.gmra.mxu0 %v1681
      %v1741 = vpop.f32.mrf.mxu0
      %v1742 = vadd.f32 0.0, %v1741
      %v1743 = vpop.f32.mrf.mxu0
      %v1744 = vpop.f32.mrf.mxu0
      %v1745 = vadd.f32 0.0, %v1744
      %v1746 = vpop.f32.mrf.mxu0
      %1747 = vdwg.mxu0
      %v1748 = vadd.f32 %v1642, %v1718
      %v1749 = vadd.f32 %v1643, %v1721
      %v1750 = vadd.f32 %v1644, %v1726
      %v1751 = vadd.f32 %v1645, %v1729
      %v1752 = vadd.f32 %v1646, %v1734
      %v1753 = vadd.f32 %v1647, %v1737
      %v1754 = vadd.f32 %v1648, %v1742
      %v1755 = vadd.f32 %v1649, %v1745
      %s1756 = scalar_lea.vmem %s204, 128
      %1757 = vst.msk [vmem:[%s1756] sm:$0xff] %vm817, %v1748
      %1758 = vst.msk [vmem:[%s1756 + $0x8] sm:$0xff] %vm817, %v1749
      %1759 = vst.msk [vmem:[%s1756 + $0x10] sm:$0xff] %vm817, %v1750
      %1760 = vst.msk [vmem:[%s1756 + $0x18] sm:$0xff] %vm817, %v1751
      %1761 = vst.msk [vmem:[%s1756 + $0x20] sm:$0xff] %vm817, %v1752
      %1762 = vst.msk [vmem:[%s1756 + $0x28] sm:$0xff] %vm817, %v1753
      %1763 = vst.msk [vmem:[%s1756 + $0x30] sm:$0xff] %vm817, %v1754
      %1764 = vst.msk [vmem:[%s1756 + $0x38] sm:$0xff] %vm817, %v1755
      %v1765 = vsel %vm817, %v1748, 0.0
      %v1766 = vsel %vm817, %v1749, 0.0
      %v1767 = vadd.f32 %v1765, %v1766
      %v1768 = vsel %vm817, %v1750, 0.0
      %v1769 = vadd.f32 %v1767, %v1768
      %v1770 = vsel %vm817, %v1751, 0.0
      %v1771 = vadd.f32 %v1769, %v1770
      %v1772 = vsel %vm817, %v1752, 0.0
      %v1773 = vadd.f32 %v1771, %v1772
      %v1774 = vsel %vm817, %v1753, 0.0
      %v1775 = vadd.f32 %v1773, %v1774
      %v1776 = vsel %vm817, %v1754, 0.0
      %v1777 = vadd.f32 %v1775, %v1776
      %v1778 = vsel %vm817, %v1755, 0.0
      %v1779 = vadd.f32 %v1777, %v1778
      %v1780 = vrot.slane %v1779, 4
      %v1781 = vadd.f32 %v1779, %v1780
      %v1782 = vrot.slane %v1781, 2
      %v1783 = vadd.f32 %v1781, %v1782
      %v1784 = vrot.slane %v1783, 1
      %v1785 = vadd.f32 %v1783, %v1784
      %v1786 = vadd.f32 %v1316, %v1785
      %v1787 = vmul.f32 %v1748, %v1748
      %v1788 = vmul.f32 %v1749, %v1749
      %v1789 = vmul.f32 %v1750, %v1750
      %v1790 = vmul.f32 %v1751, %v1751
      %v1791 = vmul.f32 %v1752, %v1752
      %v1792 = vmul.f32 %v1753, %v1753
      %v1793 = vmul.f32 %v1754, %v1754
      %v1794 = vmul.f32 %v1755, %v1755
      %v1795 = vsel %vm817, %v1787, 0.0
      %v1796 = vsel %vm817, %v1788, 0.0
      %v1797 = vadd.f32 %v1795, %v1796
      %v1798 = vsel %vm817, %v1789, 0.0
      %v1799 = vadd.f32 %v1797, %v1798
      %v1800 = vsel %vm817, %v1790, 0.0
      %v1801 = vadd.f32 %v1799, %v1800
      %v1802 = vsel %vm817, %v1791, 0.0
      %v1803 = vadd.f32 %v1801, %v1802
      %v1804 = vsel %vm817, %v1792, 0.0
      %v1805 = vadd.f32 %v1803, %v1804
      %v1806 = vsel %vm817, %v1793, 0.0
      %v1807 = vadd.f32 %v1805, %v1806
      %v1808 = vsel %vm817, %v1794, 0.0
      %v1809 = vadd.f32 %v1807, %v1808
      %v1810 = vrot.slane %v1809, 4
      %v1811 = vadd.f32 %v1809, %v1810
      %v1812 = vrot.slane %v1811, 2
      %v1813 = vadd.f32 %v1811, %v1812
      %v1814 = vrot.slane %v1813, 1
      %v1815 = vadd.f32 %v1813, %v1814
      %v1816 = vadd.f32 %v1346, %v1815
      %v1817 = vld [vmem:[%s401 + $0x1] sm:$0xff]
      %v1818 = vld [vmem:[%s401 + $0x11] sm:$0xff]
      %v1819 = vld [vmem:[%s401 + $0x21] sm:$0xff]
      %v1820 = vld [vmem:[%s401 + $0x31] sm:$0xff]
      %v1821 = vld [vmem:[%s401 + $0x41] sm:$0xff]
      %v1822 = vld [vmem:[%s401 + $0x51] sm:$0xff]
      %v1823 = vld [vmem:[%s401 + $0x61] sm:$0xff]
      %v1824 = vld [vmem:[%s401 + $0x71] sm:$0xff]
      %v1825 = vpack.c.bf16 %v1818, %v1817
      %v1826 = vpack.c.bf16 %v1820, %v1819
      %v1827 = vpack.c.bf16 %v1822, %v1821
      %v1828 = vpack.c.bf16 %v1824, %v1823
      %s1829 = scalar_lea.vmem %s2, 96
      %v1830 = vld [vmem:[%s1829] sm:$0xf]
      %v1831 = vld [vmem:[%s1829 + $0x4] sm:$0xf]
      %v1832 = vld [vmem:[%s401 + $0x2] sm:$0xff]
      %v1833 = vld [vmem:[%s401 + $0x12] sm:$0xff]
      %v1834 = vld [vmem:[%s401 + $0x22] sm:$0xff]
      %v1835 = vld [vmem:[%s401 + $0x32] sm:$0xff]
      %v1836 = vld [vmem:[%s401 + $0x42] sm:$0xff]
      %v1837 = vld [vmem:[%s401 + $0x52] sm:$0xff]
      %v1838 = vld [vmem:[%s401 + $0x62] sm:$0xff]
      %v1839 = vld [vmem:[%s401 + $0x72] sm:$0xff]
      %v1840 = vpack.c.bf16 %v1833, %v1832
      %v1841 = vpack.c.bf16 %v1835, %v1834
      %v1842 = vpack.c.bf16 %v1837, %v1836
      %v1843 = vpack.c.bf16 %v1839, %v1838
      %s1844 = scalar_lea.vmem %s2, 104
      %v1845 = vld [vmem:[%s1844] sm:$0xf]
      %v1846 = vld [vmem:[%s1844 + $0x4] sm:$0xf]
      %v1849 = vunpack.c.l.b16 %v1845
      %v1850 = vunpack.c.l.b16 %v1846
      %v1851 = vpack.c.b16 %v1850, %v1849
      %v1854 = vsel %vm379, %v1840, 0
      %v1857 = vsel %vm379, %v1841, 0
      %v1860 = vsel %vm379, %v1842, 0
      %v1863 = vsel %vm379, %v1843, 0
      %1865 = vmatprep.subr.bf16.mxu0 0
      %1866 = vmatpush1.bf16.msra.mxu0 0
      %1867 = vmatprep.subr.bf16.mxu0 0
      %1868 = vmatpush1.bf16.msra.mxu0 0
      %1869 = vmatprep.subr.bf16.mxu0 0
      %1870 = vmatpush1.bf16.msra.mxu0 0
      %1871 = vmatprep.subr.bf16.mxu0 0
      %1872 = vmatpush1.bf16.msra.mxu0 0
      %1873 = vmatprep.subr.bf16.mxu0 0
      %1874 = vmatpush1.bf16.msra.mxu0 0
      %1875 = vmatprep.subr.bf16.mxu0 0
      %1876 = vmatpush1.bf16.msra.mxu0 0
      %1877 = vmatprep.subr.bf16.mxu0 0
      %1878 = vmatpush1.bf16.msra.mxu0 0
      %1879 = vmatprep.subr.bf16.mxu0 0
      %1880 = vmatpush1.bf16.msra.mxu0 %v1851
      %1881 = vmatprep.subr.bf16.mxu0 0
      %1882 = vmatpush2.bf16.msra.mxu0 0
      %1883 = vmatprep.subr.bf16.mxu0 0
      %1884 = vmatpush2.bf16.msra.mxu0 0
      %1885 = vmatprep.subr.bf16.mxu0 0
      %1886 = vmatpush2.bf16.msra.mxu0 0
      %1887 = vmatprep.subr.bf16.mxu0 0
      %1888 = vmatpush2.bf16.msra.mxu0 0
      %1889 = vmatprep.subr.bf16.mxu0 0
      %1890 = vmatpush2.bf16.msra.mxu0 0
      %1891 = vmatprep.subr.bf16.mxu0 0
      %1892 = vmatpush2.bf16.msra.mxu0 0
      %1893 = vmatprep.subr.bf16.mxu0 0
      %1894 = vmatpush2.bf16.msra.mxu0 0
      %1895 = vmatprep.subr.bf16.mxu0 0
      %1896 = vmatpush2.bf16.msra.mxu0 0
      %1897 = vmatprep.mubr.bf16.mxu0 0
      %1898 = vmatmul.mubr.bf16.gmra.mxu0 %v1854
      %v1899 = vpop.f32.mrf.mxu0
      %v1900 = vadd.f32 0.0, %v1899
      %v1901 = vpop.f32.mrf.mxu0
      %v1902 = vpop.f32.mrf.mxu0
      %v1903 = vadd.f32 0.0, %v1902
      %v1904 = vpop.f32.mrf.mxu0
      %1905 = vmatprep.mubr.bf16.mxu0 0
      %1906 = vmatmul.mubr.bf16.gmra.mxu0 %v1857
      %v1907 = vpop.f32.mrf.mxu0
      %v1908 = vadd.f32 0.0, %v1907
      %v1909 = vpop.f32.mrf.mxu0
      %v1910 = vpop.f32.mrf.mxu0
      %v1911 = vadd.f32 0.0, %v1910
      %v1912 = vpop.f32.mrf.mxu0
      %1913 = vmatprep.mubr.bf16.mxu0 0
      %1914 = vmatmul.mubr.bf16.gmra.mxu0 %v1860
      %v1915 = vpop.f32.mrf.mxu0
      %v1916 = vadd.f32 0.0, %v1915
      %v1917 = vpop.f32.mrf.mxu0
      %v1918 = vpop.f32.mrf.mxu0
      %v1919 = vadd.f32 0.0, %v1918
      %v1920 = vpop.f32.mrf.mxu0
      %1921 = vmatprep.mubr.bf16.mxu0 0
      %1922 = vmatmul.mubr.bf16.gmra.mxu0 %v1863
      %v1923 = vpop.f32.mrf.mxu0
      %v1924 = vadd.f32 0.0, %v1923
      %v1925 = vpop.f32.mrf.mxu0
      %v1926 = vpop.f32.mrf.mxu0
      %v1927 = vadd.f32 0.0, %v1926
      %v1928 = vpop.f32.mrf.mxu0
      %1929 = vdwg.mxu0
      %v1932 = vunpack.c.l.b16 %v1830
      %v1933 = vunpack.c.l.b16 %v1831
      %v1934 = vpack.c.b16 %v1933, %v1932
      %v1937 = vsel %vm379, %v1825, 0
      %v1940 = vsel %vm379, %v1826, 0
      %v1943 = vsel %vm379, %v1827, 0
      %v1946 = vsel %vm379, %v1828, 0
      %1948 = vmatprep.subr.bf16.mxu0 0
      %1949 = vmatpush1.bf16.msra.mxu0 0
      %1950 = vmatprep.subr.bf16.mxu0 0
      %1951 = vmatpush1.bf16.msra.mxu0 0
      %1952 = vmatprep.subr.bf16.mxu0 0
      %1953 = vmatpush1.bf16.msra.mxu0 0
      %1954 = vmatprep.subr.bf16.mxu0 0
      %1955 = vmatpush1.bf16.msra.mxu0 0
      %1956 = vmatprep.subr.bf16.mxu0 0
      %1957 = vmatpush1.bf16.msra.mxu0 0
      %1958 = vmatprep.subr.bf16.mxu0 0
      %1959 = vmatpush1.bf16.msra.mxu0 0
      %1960 = vmatprep.subr.bf16.mxu0 0
      %1961 = vmatpush1.bf16.msra.mxu0 0
      %1962 = vmatprep.subr.bf16.mxu0 0
      %1963 = vmatpush1.bf16.msra.mxu0 %v1934
      %1964 = vmatprep.subr.bf16.mxu0 0
      %1965 = vmatpush2.bf16.msra.mxu0 0
      %1966 = vmatprep.subr.bf16.mxu0 0
      %1967 = vmatpush2.bf16.msra.mxu0 0
      %1968 = vmatprep.subr.bf16.mxu0 0
      %1969 = vmatpush2.bf16.msra.mxu0 0
      %1970 = vmatprep.subr.bf16.mxu0 0
      %1971 = vmatpush2.bf16.msra.mxu0 0
      %1972 = vmatprep.subr.bf16.mxu0 0
      %1973 = vmatpush2.bf16.msra.mxu0 0
      %1974 = vmatprep.subr.bf16.mxu0 0
      %1975 = vmatpush2.bf16.msra.mxu0 0
      %1976 = vmatprep.subr.bf16.mxu0 0
      %1977 = vmatpush2.bf16.msra.mxu0 0
      %1978 = vmatprep.subr.bf16.mxu0 0
      %1979 = vmatpush2.bf16.msra.mxu0 0
      %1980 = vmatprep.mubr.bf16.mxu0 0
      %1981 = vmatmul.mubr.bf16.gmra.mxu0 %v1937
      %v1982 = vpop.f32.mrf.mxu0
      %v1983 = vadd.f32 %v1900, %v1982
      %v1984 = vpop.f32.mrf.mxu0
      %v1985 = vpop.f32.mrf.mxu0
      %v1986 = vadd.f32 %v1903, %v1985
      %v1987 = vpop.f32.mrf.mxu0
      %1988 = vmatprep.mubr.bf16.mxu0 0
      %1989 = vmatmul.mubr.bf16.gmra.mxu0 %v1940
      %v1990 = vpop.f32.mrf.mxu0
      %v1991 = vadd.f32 %v1908, %v1990
      %v1992 = vpop.f32.mrf.mxu0
      %v1993 = vpop.f32.mrf.mxu0
      %v1994 = vadd.f32 %v1911, %v1993
      %v1995 = vpop.f32.mrf.mxu0
      %1996 = vmatprep.mubr.bf16.mxu0 0
      %1997 = vmatmul.mubr.bf16.gmra.mxu0 %v1943
      %v1998 = vpop.f32.mrf.mxu0
      %v1999 = vadd.f32 %v1916, %v1998
      %v2000 = vpop.f32.mrf.mxu0
      %v2001 = vpop.f32.mrf.mxu0
      %v2002 = vadd.f32 %v1919, %v2001
      %v2003 = vpop.f32.mrf.mxu0
      %2004 = vmatprep.mubr.bf16.mxu0 0
      %2005 = vmatmul.mubr.bf16.gmra.mxu0 %v1946
      %v2006 = vpop.f32.mrf.mxu0
      %v2007 = vadd.f32 %v1924, %v2006
      %v2008 = vpop.f32.mrf.mxu0
      %v2009 = vpop.f32.mrf.mxu0
      %v2010 = vadd.f32 %v1927, %v2009
      %v2011 = vpop.f32.mrf.mxu0
      %2012 = vdwg.mxu0
      %v2013 = vld [vmem:[%s1543 + $0x1] sm:$0xff]
      %v2014 = vld [vmem:[%s1543 + $0x11] sm:$0xff]
      %v2015 = vld [vmem:[%s1543 + $0x21] sm:$0xff]
      %v2016 = vld [vmem:[%s1543 + $0x31] sm:$0xff]
      %v2017 = vld [vmem:[%s1543 + $0x41] sm:$0xff]
      %v2018 = vld [vmem:[%s1543 + $0x51] sm:$0xff]
      %v2019 = vld [vmem:[%s1543 + $0x61] sm:$0xff]
      %v2020 = vld [vmem:[%s1543 + $0x71] sm:$0xff]
      %v2021 = vpack.c.bf16 %v2014, %v2013
      %v2022 = vpack.c.bf16 %v2016, %v2015
      %v2023 = vpack.c.bf16 %v2018, %v2017
      %v2024 = vpack.c.bf16 %v2020, %v2019
      %s2025 = scalar_lea.vmem %s2, 112
      %v2026 = vld [vmem:[%s2025] sm:$0xf]
      %v2027 = vld [vmem:[%s2025 + $0x4] sm:$0xf]
      %v2030 = vunpack.c.l.b16 %v2026
      %v2031 = vunpack.c.l.b16 %v2027
      %v2032 = vpack.c.b16 %v2031, %v2030
      %v2035 = vsel %vm379, %v2021, 0
      %v2038 = vsel %vm379, %v2022, 0
      %v2041 = vsel %vm379, %v2023, 0
      %v2044 = vsel %vm379, %v2024, 0
      %2046 = vmatprep.subr.bf16.mxu0 0
      %2047 = vmatpush1.bf16.msra.mxu0 0
      %2048 = vmatprep.subr.bf16.mxu0 0
      %2049 = vmatpush1.bf16.msra.mxu0 0
      %2050 = vmatprep.subr.bf16.mxu0 0
      %2051 = vmatpush1.bf16.msra.mxu0 0
      %2052 = vmatprep.subr.bf16.mxu0 0
      %2053 = vmatpush1.bf16.msra.mxu0 0
      %2054 = vmatprep.subr.bf16.mxu0 0
      %2055 = vmatpush1.bf16.msra.mxu0 0
      %2056 = vmatprep.subr.bf16.mxu0 0
      %2057 = vmatpush1.bf16.msra.mxu0 0
      %2058 = vmatprep.subr.bf16.mxu0 0
      %2059 = vmatpush1.bf16.msra.mxu0 0
      %2060 = vmatprep.subr.bf16.mxu0 0
      %2061 = vmatpush1.bf16.msra.mxu0 %v2032
      %2062 = vmatprep.subr.bf16.mxu0 0
      %2063 = vmatpush2.bf16.msra.mxu0 0
      %2064 = vmatprep.subr.bf16.mxu0 0
      %2065 = vmatpush2.bf16.msra.mxu0 0
      %2066 = vmatprep.subr.bf16.mxu0 0
      %2067 = vmatpush2.bf16.msra.mxu0 0
      %2068 = vmatprep.subr.bf16.mxu0 0
      %2069 = vmatpush2.bf16.msra.mxu0 0
      %2070 = vmatprep.subr.bf16.mxu0 0
      %2071 = vmatpush2.bf16.msra.mxu0 0
      %2072 = vmatprep.subr.bf16.mxu0 0
      %2073 = vmatpush2.bf16.msra.mxu0 0
      %2074 = vmatprep.subr.bf16.mxu0 0
      %2075 = vmatpush2.bf16.msra.mxu0 0
      %2076 = vmatprep.subr.bf16.mxu0 0
      %2077 = vmatpush2.bf16.msra.mxu0 0
      %2078 = vmatprep.mubr.bf16.mxu0 0
      %2079 = vmatmul.mubr.bf16.gmra.mxu0 %v2035
      %v2080 = vpop.f32.mrf.mxu0
      %v2081 = vadd.f32 0.0, %v2080
      %v2082 = vpop.f32.mrf.mxu0
      %v2083 = vpop.f32.mrf.mxu0
      %v2084 = vadd.f32 0.0, %v2083
      %v2085 = vpop.f32.mrf.mxu0
      %2086 = vmatprep.mubr.bf16.mxu0 0
      %2087 = vmatmul.mubr.bf16.gmra.mxu0 %v2038
      %v2088 = vpop.f32.mrf.mxu0
      %v2089 = vadd.f32 0.0, %v2088
      %v2090 = vpop.f32.mrf.mxu0
      %v2091 = vpop.f32.mrf.mxu0
      %v2092 = vadd.f32 0.0, %v2091
      %v2093 = vpop.f32.mrf.mxu0
      %2094 = vmatprep.mubr.bf16.mxu0 0
      %2095 = vmatmul.mubr.bf16.gmra.mxu0 %v2041
      %v2096 = vpop.f32.mrf.mxu0
      %v2097 = vadd.f32 0.0, %v2096
      %v2098 = vpop.f32.mrf.mxu0
      %v2099 = vpop.f32.mrf.mxu0
      %v2100 = vadd.f32 0.0, %v2099
      %v2101 = vpop.f32.mrf.mxu0
      %2102 = vmatprep.mubr.bf16.mxu0 0
      %2103 = vmatmul.mubr.bf16.gmra.mxu0 %v2044
      %v2104 = vpop.f32.mrf.mxu0
      %v2105 = vadd.f32 0.0, %v2104
      %v2106 = vpop.f32.mrf.mxu0
      %v2107 = vpop.f32.mrf.mxu0
      %v2108 = vadd.f32 0.0, %v2107
      %v2109 = vpop.f32.mrf.mxu0
      %2110 = vdwg.mxu0
      %v2111 = vadd.f32 %v1983, %v2081
      %v2112 = vadd.f32 %v1986, %v2084
      %v2113 = vadd.f32 %v1991, %v2089
      %v2114 = vadd.f32 %v1994, %v2092
      %v2115 = vadd.f32 %v1999, %v2097
      %v2116 = vadd.f32 %v2002, %v2100
      %v2117 = vadd.f32 %v2007, %v2105
      %v2118 = vadd.f32 %v2010, %v2108
      %v2119 = vld [vmem:[%s1543 + $0x2] sm:$0xff]
      %v2120 = vld [vmem:[%s1543 + $0x12] sm:$0xff]
      %v2121 = vld [vmem:[%s1543 + $0x22] sm:$0xff]
      %v2122 = vld [vmem:[%s1543 + $0x32] sm:$0xff]
      %v2123 = vld [vmem:[%s1543 + $0x42] sm:$0xff]
      %v2124 = vld [vmem:[%s1543 + $0x52] sm:$0xff]
      %v2125 = vld [vmem:[%s1543 + $0x62] sm:$0xff]
      %v2126 = vld [vmem:[%s1543 + $0x72] sm:$0xff]
      %v2127 = vpack.c.bf16 %v2120, %v2119
      %v2128 = vpack.c.bf16 %v2122, %v2121
      %v2129 = vpack.c.bf16 %v2124, %v2123
      %v2130 = vpack.c.bf16 %v2126, %v2125
      %s2131 = scalar_lea.vmem %s2, 120
      %v2132 = vld [vmem:[%s2131] sm:$0xf]
      %v2133 = vld [vmem:[%s2131 + $0x4] sm:$0xf]
      %v2136 = vunpack.c.l.b16 %v2132
      %v2137 = vunpack.c.l.b16 %v2133
      %v2138 = vpack.c.b16 %v2137, %v2136
      %v2141 = vsel %vm379, %v2127, 0
      %v2144 = vsel %vm379, %v2128, 0
      %v2147 = vsel %vm379, %v2129, 0
      %v2150 = vsel %vm379, %v2130, 0
      %2152 = vmatprep.subr.bf16.mxu0 0
      %2153 = vmatpush1.bf16.msra.mxu0 0
      %2154 = vmatprep.subr.bf16.mxu0 0
      %2155 = vmatpush1.bf16.msra.mxu0 0
      %2156 = vmatprep.subr.bf16.mxu0 0
      %2157 = vmatpush1.bf16.msra.mxu0 0
      %2158 = vmatprep.subr.bf16.mxu0 0
      %2159 = vmatpush1.bf16.msra.mxu0 0
      %2160 = vmatprep.subr.bf16.mxu0 0
      %2161 = vmatpush1.bf16.msra.mxu0 0
      %2162 = vmatprep.subr.bf16.mxu0 0
      %2163 = vmatpush1.bf16.msra.mxu0 0
      %2164 = vmatprep.subr.bf16.mxu0 0
      %2165 = vmatpush1.bf16.msra.mxu0 0
      %2166 = vmatprep.subr.bf16.mxu0 0
      %2167 = vmatpush1.bf16.msra.mxu0 %v2138
      %2168 = vmatprep.subr.bf16.mxu0 0
      %2169 = vmatpush2.bf16.msra.mxu0 0
      %2170 = vmatprep.subr.bf16.mxu0 0
      %2171 = vmatpush2.bf16.msra.mxu0 0
      %2172 = vmatprep.subr.bf16.mxu0 0
      %2173 = vmatpush2.bf16.msra.mxu0 0
      %2174 = vmatprep.subr.bf16.mxu0 0
      %2175 = vmatpush2.bf16.msra.mxu0 0
      %2176 = vmatprep.subr.bf16.mxu0 0
      %2177 = vmatpush2.bf16.msra.mxu0 0
      %2178 = vmatprep.subr.bf16.mxu0 0
      %2179 = vmatpush2.bf16.msra.mxu0 0
      %2180 = vmatprep.subr.bf16.mxu0 0
      %2181 = vmatpush2.bf16.msra.mxu0 0
      %2182 = vmatprep.subr.bf16.mxu0 0
      %2183 = vmatpush2.bf16.msra.mxu0 0
      %2184 = vmatprep.mubr.bf16.mxu0 0
      %2185 = vmatmul.mubr.bf16.gmra.mxu0 %v2141
      %v2186 = vpop.f32.mrf.mxu0
      %v2187 = vadd.f32 0.0, %v2186
      %v2188 = vpop.f32.mrf.mxu0
      %v2189 = vpop.f32.mrf.mxu0
      %v2190 = vadd.f32 0.0, %v2189
      %v2191 = vpop.f32.mrf.mxu0
      %2192 = vmatprep.mubr.bf16.mxu0 0
      %2193 = vmatmul.mubr.bf16.gmra.mxu0 %v2144
      %v2194 = vpop.f32.mrf.mxu0
      %v2195 = vadd.f32 0.0, %v2194
      %v2196 = vpop.f32.mrf.mxu0
      %v2197 = vpop.f32.mrf.mxu0
      %v2198 = vadd.f32 0.0, %v2197
      %v2199 = vpop.f32.mrf.mxu0
      %2200 = vmatprep.mubr.bf16.mxu0 0
      %2201 = vmatmul.mubr.bf16.gmra.mxu0 %v2147
      %v2202 = vpop.f32.mrf.mxu0
      %v2203 = vadd.f32 0.0, %v2202
      %v2204 = vpop.f32.mrf.mxu0
      %v2205 = vpop.f32.mrf.mxu0
      %v2206 = vadd.f32 0.0, %v2205
      %v2207 = vpop.f32.mrf.mxu0
      %2208 = vmatprep.mubr.bf16.mxu0 0
      %2209 = vmatmul.mubr.bf16.gmra.mxu0 %v2150
      %v2210 = vpop.f32.mrf.mxu0
      %v2211 = vadd.f32 0.0, %v2210
      %v2212 = vpop.f32.mrf.mxu0
      %v2213 = vpop.f32.mrf.mxu0
      %v2214 = vadd.f32 0.0, %v2213
      %v2215 = vpop.f32.mrf.mxu0
      %2216 = vdwg.mxu0
      %v2217 = vadd.f32 %v2111, %v2187
      %v2218 = vadd.f32 %v2112, %v2190
      %v2219 = vadd.f32 %v2113, %v2195
      %v2220 = vadd.f32 %v2114, %v2198
      %v2221 = vadd.f32 %v2115, %v2203
      %v2222 = vadd.f32 %v2116, %v2206
      %v2223 = vadd.f32 %v2117, %v2211
      %v2224 = vadd.f32 %v2118, %v2214
      %s2225 = scalar_lea.vmem %s204, 192
      %2226 = vst.msk [vmem:[%s2225] sm:$0xff] %vm817, %v2217
      %2227 = vst.msk [vmem:[%s2225 + $0x8] sm:$0xff] %vm817, %v2218
      %2228 = vst.msk [vmem:[%s2225 + $0x10] sm:$0xff] %vm817, %v2219
      %2229 = vst.msk [vmem:[%s2225 + $0x18] sm:$0xff] %vm817, %v2220
      %2230 = vst.msk [vmem:[%s2225 + $0x20] sm:$0xff] %vm817, %v2221
      %2231 = vst.msk [vmem:[%s2225 + $0x28] sm:$0xff] %vm817, %v2222
      %2232 = vst.msk [vmem:[%s2225 + $0x30] sm:$0xff] %vm817, %v2223
      %2233 = vst.msk [vmem:[%s2225 + $0x38] sm:$0xff] %vm817, %v2224
      %v2234 = vsel %vm817, %v2217, 0.0
      %v2235 = vsel %vm817, %v2218, 0.0
      %v2236 = vadd.f32 %v2234, %v2235
      %v2237 = vsel %vm817, %v2219, 0.0
      %v2238 = vadd.f32 %v2236, %v2237
      %v2239 = vsel %vm817, %v2220, 0.0
      %v2240 = vadd.f32 %v2238, %v2239
      %v2241 = vsel %vm817, %v2221, 0.0
      %v2242 = vadd.f32 %v2240, %v2241
      %v2243 = vsel %vm817, %v2222, 0.0
      %v2244 = vadd.f32 %v2242, %v2243
      %v2245 = vsel %vm817, %v2223, 0.0
      %v2246 = vadd.f32 %v2244, %v2245
      %v2247 = vsel %vm817, %v2224, 0.0
      %v2248 = vadd.f32 %v2246, %v2247
      %v2249 = vrot.slane %v2248, 4
      %v2250 = vadd.f32 %v2248, %v2249
      %v2251 = vrot.slane %v2250, 2
      %v2252 = vadd.f32 %v2250, %v2251
      %v2253 = vrot.slane %v2252, 1
      %v2254 = vadd.f32 %v2252, %v2253
      %v2255 = vadd.f32 %v1786, %v2254
      %v2256 = vmul.f32 %v2217, %v2217
      %v2257 = vmul.f32 %v2218, %v2218
      %v2258 = vmul.f32 %v2219, %v2219
      %v2259 = vmul.f32 %v2220, %v2220
      %v2260 = vmul.f32 %v2221, %v2221
      %v2261 = vmul.f32 %v2222, %v2222
      %v2262 = vmul.f32 %v2223, %v2223
      %v2263 = vmul.f32 %v2224, %v2224
      %v2264 = vsel %vm817, %v2256, 0.0
      %v2265 = vsel %vm817, %v2257, 0.0
      %v2266 = vadd.f32 %v2264, %v2265
      %v2267 = vsel %vm817, %v2258, 0.0
      %v2268 = vadd.f32 %v2266, %v2267
      %v2269 = vsel %vm817, %v2259, 0.0
      %v2270 = vadd.f32 %v2268, %v2269
      %v2271 = vsel %vm817, %v2260, 0.0
      %v2272 = vadd.f32 %v2270, %v2271
      %v2273 = vsel %vm817, %v2261, 0.0
      %v2274 = vadd.f32 %v2272, %v2273
      %v2275 = vsel %vm817, %v2262, 0.0
      %v2276 = vadd.f32 %v2274, %v2275
      %v2277 = vsel %vm817, %v2263, 0.0
      %v2278 = vadd.f32 %v2276, %v2277
      %v2279 = vrot.slane %v2278, 4
      %v2280 = vadd.f32 %v2278, %v2279
      %v2281 = vrot.slane %v2280, 2
      %v2282 = vadd.f32 %v2280, %v2281
      %v2283 = vrot.slane %v2282, 1
      %v2284 = vadd.f32 %v2282, %v2283
      %v2285 = vadd.f32 %v1816, %v2284
      %vm2286 = vcmask 57344
      %2287 = vst.msk [vmem:[%s208] sm:$0x1] %vm2286, %v2255
      %2288 = vst.msk [vmem:[%s208 + $0x1] sm:$0x1] %vm2286, %v2285
      %p2289 = scmp.lt.s32.totalorder %s16, 1
      %s2290 = scalar_select %p2289, %s16, 1
      %s2291 = smul.addr %s2290, 32
      %s2292 = smul.addr %s2291, 8
      %s2293 = scalar_lea.vmem %s3, %s2292
      %p2294 = scmp.lt.s32.totalorder %s16, 1
      %s2295 = scalar_select %p2294, %s16, 1
      %s2296 = smul.addr %s2295, 2
      %s2297 = scalar_lea.vmem %s4, %s2296
      // Predicated region
      $region33: #{unet_innermost_block.2} parent=31 // pred_check
        %p2298 = pneg %p102
      $region34: #{unet_innermost_block.2} parent=31 // pred_check_branch
        %2300 = sbr.rel (%p2298) target = $region36
      $region35: #{unet_innermost_block.2} parent=31 // pred_region
        _
      $region36: #{unet_innermost_block.2} parent=31 // pred_fallthru
        _
      // Predicated region
      $region37: #{unet_innermost_block.2} parent=31 // pred_check
        %p2301 = pneg %p128
      $region38: #{unet_innermost_block.2} parent=31 // pred_check_branch
        %2303 = sbr.rel (%p2301) target = $region40
      $region39: #{unet_innermost_block.2} parent=31 // pred_region
        _
      $region40: #{unet_innermost_block.2} parent=31 // pred_fallthru
        _
    $region32: #{unet_innermost_block.2} parent=5 // pred_fallthru
      _
    %p2304 = scmp.le.s32.totalorder 2, %s11
    // Predicated region
    $region41: #{unet_innermost_block.2} parent=5 // pred_check
      %p2305 = pneg %p2304
    $region42: #{unet_innermost_block.2} parent=5 // pred_check_branch
      %2307 = sbr.rel (%p2305) target = $region44
    $region43: #{unet_innermost_block.2} parent=5 // pred_region
      %s2308 = ssub.s32 %s11, 2
      // Predicated region
      $region45: #{unet_innermost_block.2} parent=43 // pred_check
        %p2309 = pneg %p108
      $region46: #{unet_innermost_block.2} parent=43 // pred_check_branch
        %2311 = sbr.rel (%p2309) target = $region48
      $region47: #{unet_innermost_block.2} parent=43 // pred_region
        %p2312 = scmp.lt.s32.totalorder %s17, 1
        %s2313 = scalar_select %p2312, %s17, 1
        %s2314 = smul.addr %s2313, 32
        %s2315 = smul.addr %s2314, 8
        %s2316 = scalar_lea.vmem %s3, %s2315
      $region48: #{unet_innermost_block.2} parent=43 // pred_fallthru
        _
      // Predicated region
      $region49: #{unet_innermost_block.2} parent=43 // pred_check
        %p2317 = pneg %p134
      $region50: #{unet_innermost_block.2} parent=43 // pred_check_branch
        %2319 = sbr.rel (%p2317) target = $region52
      $region51: #{unet_innermost_block.2} parent=43 // pred_region
        %p2320 = scmp.lt.s32.totalorder %s17, 1
        %s2321 = scalar_select %p2320, %s17, 1
        %s2322 = smul.addr %s2321, 2
        %s2323 = scalar_lea.vmem %s4, %s2322
      $region52: #{unet_innermost_block.2} parent=43 // pred_fallthru
        _
    $region44: #{unet_innermost_block.2} parent=5 // pred_fallthru
      _
  $region6: #{unet_innermost_block.2} parent=0 // loop_footer
    %s15 = sadd.s32 1, %s11
  $region7: #{unet_innermost_block.2} parent=0 // loop_footer_branch
    %10 = sbr.rel target = $region3
  $region8: #{unet_innermost_block.2} parent=0 // loop_exit
    _

</llo_original>
